<compile_context>
chip_gen: v5e
topology: v5e:2x2
jax: 0.10.0
libtpu: 0.0.40
codegen_flags: <defaults>
</compile_context>

<pallas_src>
import functools

import numpy as np
import jax
import jax.numpy as jnp
from jax.experimental import pallas as pl
from jax.experimental.pallas import tpu as pltpu

BN_EPS = 1e-5
LRELU_SLOPE = 0.01                    # nn.LeakyReLU() default
VMEM_LIMIT = 32 * 1024 * 1024


def _leaky_relu(x):
    return jnp.where(x >= 0, x, LRELU_SLOPE * x)


def _row_tile(rows):
    """Largest convenient row tile that still yields >=2 grid steps
    (so both TensorCores get work); grows toward 1024 rows at scale."""
    for tm in (1024, 512, 256, 128, 64, 32, 16, 8):
        if rows % tm == 0 and rows // tm >= 2:
            return tm
    return rows


# ---------------------------------------------------------------------------
# Stage kernels
# ---------------------------------------------------------------------------

def _linear_stage_kernel(x_ref, s_ref, b_ref, w_ref, y_ref, st_ref, *, activate):
    """[folded BN of previous layer + leaky_relu] -> 1x1 conv (matmul)
    -> per-tile (sum, sum_sq) partial statistics for the next BatchNorm."""
    tm, c = x_ref.shape
    a = x_ref[...]                                    # (TM, C) f32
    a = a * s_ref[...] + b_ref[...]                   # one mul + one add
    if activate:
        a = _leaky_relu(a)
    y = jnp.dot(a.astype(jnp.bfloat16), w_ref[...],
                preferred_element_type=jnp.float32)   # bf16 MXU, f32 accum
    y_ref[...] = y
    ssum = jnp.sum(y, axis=0, keepdims=True)          # (1, C)
    ssq = jnp.sum(y * y, axis=0, keepdims=True)       # (1, C)
    st_ref[...] = jnp.concatenate([ssum, ssq], axis=0).reshape(1, 2, c)


def _conv2_stage_kernel(y1_ref, s_ref, b_ref, w_ref, y2_ref, st_ref, pad_ref):
    """folded bn1 + leaky_relu + grouped 3x3 conv as ONE im2col matmul
    + partial stats for bn2.  One image per grid step."""
    _, h, w, c = y1_ref.shape
    a = y1_ref[0]                                     # (H, W, C)
    a = a * s_ref[...].reshape(1, 1, c) + b_ref[...].reshape(1, 1, c)
    a = _leaky_relu(a)

    # padding=1 halo: zero only the boundary ring, write the interior once.
    zrow = jnp.zeros((1, w + 2, c), jnp.float32)
    zcol = jnp.zeros((h + 2, 1, c), jnp.float32)
    pad_ref[0:1, :, :] = zrow
    pad_ref[h + 1:h + 2, :, :] = zrow
    pad_ref[:, 0:1, :] = zcol
    pad_ref[:, w + 1:w + 2, :] = zcol
    pad_ref[1:h + 1, 1:w + 1, :] = a

    # im2col: stack the 9 shifted taps along the contraction axis and do a
    # single (H*W, 9C) @ (9C, C) MXU matmul (K = 9C = 576).
    # TODO(synk): the dx in {1,2} W-offset slices still pay a relayout copy per
    # tap; a pltpu.roll + edge-mask formulation would move that onto the XLU.
    taps = []
    for dy in range(3):
        for dx in range(3):
            taps.append(pad_ref[dy:dy + h, dx:dx + w, :].reshape(h * w, c))
    col = jnp.concatenate(taps, axis=-1).astype(jnp.bfloat16)   # (H*W, 9C)
    y = jnp.dot(col, w_ref[...], preferred_element_type=jnp.float32)

    y2_ref[...] = y.reshape(1, h, w, c)
    ssum = jnp.sum(y, axis=0, keepdims=True)
    ssq = jnp.sum(y * y, axis=0, keepdims=True)
    st_ref[...] = jnp.concatenate([ssum, ssq], axis=0).reshape(1, 2, c)


def _bn_skip_act_kernel(y_ref, x_ref, s_ref, b_ref, o_ref):
    """folded bn3 + residual add + leaky_relu on lane-dense (rows, W*C)."""
    o_ref[...] = _leaky_relu(y_ref[...] * s_ref[...] + b_ref[...] + x_ref[...])


# ---------------------------------------------------------------------------
# pallas_call wrappers
# ---------------------------------------------------------------------------

def _linear_stage(x2d, scale, bias, w_bf16, *, activate):
    rows, c = x2d.shape
    tm = _row_tile(rows)
    g = rows // tm
    kernel = functools.partial(_linear_stage_kernel, activate=activate)
    return pl.pallas_call(
        kernel,
        grid=(g,),
        in_specs=[
            pl.BlockSpec((tm, c), lambda i: (i, 0)),      # activation rows
            pl.BlockSpec((1, c), lambda i: (0, 0)),       # folded BN scale
            pl.BlockSpec((1, c), lambda i: (0, 0)),       # folded BN bias
            pl.BlockSpec((c, c), lambda i: (0, 0)),       # bf16 weight
        ],
        out_specs=(
            pl.BlockSpec((tm, c), lambda i: (i, 0)),      # conv output (pre-BN)
            pl.BlockSpec((1, 2, c), lambda i: (i, 0, 0)), # per-tile stats
        ),
        out_shape=(
            jax.ShapeDtypeStruct((rows, c), jnp.float32),
            jax.ShapeDtypeStruct((g, 2, c), jnp.float32),
        ),
        compiler_params=pltpu.CompilerParams(
            dimension_semantics=("parallel",),
            vmem_limit_bytes=VMEM_LIMIT),
    )(x2d, scale, bias, w_bf16)


def _conv2_stage(y1_4d, scale, bias, w2col_bf16):
    n, h, w, c = y1_4d.shape
    return pl.pallas_call(
        _conv2_stage_kernel,
        grid=(n,),
        in_specs=[
            pl.BlockSpec((1, h, w, c), lambda i: (i, 0, 0, 0)),
            pl.BlockSpec((1, c), lambda i: (0, 0)),
            pl.BlockSpec((1, c), lambda i: (0, 0)),
            pl.BlockSpec((9 * c, c), lambda i: (0, 0)),   # bf16 im2col weight
        ],
        out_specs=(
            pl.BlockSpec((1, h, w, c), lambda i: (i, 0, 0, 0)),
            pl.BlockSpec((1, 2, c), lambda i: (i, 0, 0)),
        ),
        out_shape=(
            jax.ShapeDtypeStruct((n, h, w, c), jnp.float32),
            jax.ShapeDtypeStruct((n, 2, c), jnp.float32),
        ),
        scratch_shapes=[pltpu.VMEM((h + 2, w + 2, c), jnp.float32)],
        compiler_params=pltpu.CompilerParams(
            dimension_semantics=("parallel",),
            vmem_limit_bytes=VMEM_LIMIT),
    )(y1_4d, scale, bias, w2col_bf16)


def _bn_skip_act_stage(y2d, x2d, scale_t, bias_t):
    rows, cols = y2d.shape          # cols = W*C, a multiple of 128
    tr = _row_tile(rows)
    g = rows // tr
    return pl.pallas_call(
        _bn_skip_act_kernel,
        grid=(g,),
        in_specs=[
            pl.BlockSpec((tr, cols), lambda i: (i, 0)),
            pl.BlockSpec((tr, cols), lambda i: (i, 0)),
            pl.BlockSpec((1, cols), lambda i: (0, 0)),
            pl.BlockSpec((1, cols), lambda i: (0, 0)),
        ],
        out_specs=pl.BlockSpec((tr, cols), lambda i: (i, 0)),
        out_shape=jax.ShapeDtypeStruct((rows, cols), jnp.float32),
        compiler_params=pltpu.CompilerParams(
            dimension_semantics=("parallel",),
            vmem_limit_bytes=VMEM_LIMIT),
    )(y2d, x2d, scale_t, bias_t)


def _fold_bn(partial_stats, nhw, gamma, beta):
    """Combine per-tile (sum, sum_sq) into one per-channel scale/bias
    (training-mode BN: batch mean, biased variance)."""
    tot = jnp.sum(partial_stats, axis=0)              # (2, C) f32 accumulators
    mean = tot[0] / nhw
    var = tot[1] / nhw - mean * mean                  # biased variance
    scale = gamma * jax.lax.rsqrt(var + BN_EPS)       # (1, C)
    bias = beta - mean * scale                        # (1, C)
    return scale, bias


def bottleneckx_forward(x_nhwc, params):
    w1, g1, b1, w2col, g2, b2, w3, g3, b3 = params
    n, h, w, c = x_nhwc.shape
    nhw = n * h * w
    x2d = x_nhwc.reshape(nhw, c)

    ones_c = jnp.ones((1, c), jnp.float32)
    zeros_c = jnp.zeros((1, c), jnp.float32)

    # conv1 (1x1) + partial stats for bn1
    y1, st1 = _linear_stage(x2d, ones_c, zeros_c, w1, activate=False)
    s1, bi1 = _fold_bn(st1, nhw, g1, b1)

    # bn1 + lrelu + grouped 3x3 conv (im2col) + partial stats for bn2
    y2, st2 = _conv2_stage(y1.reshape(n, h, w, c), s1, bi1, w2col)
    s2, bi2 = _fold_bn(st2, nhw, g2, b2)

    # bn2 + lrelu + conv3 (1x1) + partial stats for bn3
    y3, st3 = _linear_stage(y2.reshape(nhw, c), s2, bi2, w3, activate=True)
    s3, bi3 = _fold_bn(st3, nhw, g3, b3)

    # bn3 + skip (re-read x) + lrelu, lane-dense (N*H, W*C) views
    out2d = _bn_skip_act_stage(
        y3.reshape(n * h, w * c), x_nhwc.reshape(n * h, w * c),
        jnp.tile(s3, (1, w)), jnp.tile(bi3, (1, w)))
    return out2d.reshape(n, h, w, c)


# ---------------------------------------------------------------------------
# Parameters + pure-JAX reference
# ---------------------------------------------------------------------------

def make_params(key, in_channel, out_channel, groups=32):
    assert in_channel == out_channel, "residual add requires matching channels"
    assert out_channel % groups == 0
    cpg = out_channel // groups
    k1, k2, k3 = jax.random.split(key, 3)

    w1_t = jax.random.normal(k1, (out_channel, in_channel, 1, 1), jnp.float32) * 0.1
    w2_t = jax.random.normal(k2, (out_channel, cpg, 3, 3), jnp.float32) * 0.1
    w3_t = jax.random.normal(k3, (out_channel, out_channel, 1, 1), jnp.float32) * 0.1

    # 1x1 convs as (Cin, Cout) matmul weights, stored bf16 for the MXU.
    w1 = jnp.transpose(w1_t[:, :, 0, 0], (1, 0)).astype(jnp.bfloat16)
    w3 = jnp.transpose(w3_t[:, :, 0, 0], (1, 0)).astype(jnp.bfloat16)

    # grouped 3x3 conv -> block-diagonal dense im2col weight (9*Cin, Cout), bf16.
    w2_np = np.asarray(w2_t)
    dense = np.zeros((3, 3, out_channel, out_channel), np.float32)
    for co in range(out_channel):
        g = co // cpg
        for ci_g in range(cpg):
            ci = g * cpg + ci_g
            dense[:, :, ci, co] = w2_np[co, ci_g, :, :]
    w2col = jnp.asarray(dense.reshape(9 * out_channel, out_channel)).astype(jnp.bfloat16)

    # BatchNorm affine params (PyTorch default init: weight=1, bias=0)
    ones = jnp.ones((1, out_channel), jnp.float32)
    zeros = jnp.zeros((1, out_channel), jnp.float32)
    return (w1, ones, zeros, w2col, ones, zeros, w3, ones, zeros), (w1_t, w2_t, w3_t)


def reference_forward(x_nhwc, torch_weights):
    # pure-JAX f32 reference mirroring the PyTorch module (training-mode BN)
    w1_t, w2_t, w3_t = torch_weights

    def bn(y):
        m = jnp.mean(y, axis=(0, 1, 2), keepdims=True)
        v = jnp.mean((y - m) ** 2, axis=(0, 1, 2), keepdims=True)
        return (y - m) / jnp.sqrt(v + BN_EPS)

    dn = ("NHWC", "HWIO", "NHWC")
    w1 = jnp.transpose(w1_t, (2, 3, 1, 0))
    w2 = jnp.transpose(w2_t, (2, 3, 1, 0))
    w3 = jnp.transpose(w3_t, (2, 3, 1, 0))

    out = jax.lax.conv_general_dilated(x_nhwc, w1, (1, 1), "VALID",
                                       dimension_numbers=dn)
    out = _leaky_relu(bn(out))
    out = jax.lax.conv_general_dilated(out, w2, (1, 1), "SAME",
                                       dimension_numbers=dn,
                                       feature_group_count=32)
    out = _leaky_relu(bn(out))
    out = jax.lax.conv_general_dilated(out, w3, (1, 1), "VALID",
                                       dimension_numbers=dn)
    out = bn(out) + x_nhwc
    return _leaky_relu(out)


if __name__ == "__main__":
    N, C, H, W = 2, 64, 16, 16   # groups=32 requires C % 32 == 0; skip needs Cin == Cout
    key = jax.random.PRNGKey(0)
    kx, kp = jax.random.split(key)

    x_nchw = jax.random.normal(kx, (N, C, H, W), jnp.float32)    # PyTorch layout
    x_nhwc = jnp.transpose(x_nchw, (0, 2, 3, 1))                 # kernel layout

    params, torch_w = make_params(kp, C, C)

    fwd = jax.jit(bottleneckx_forward)
    out_nhwc = jax.block_until_ready(fwd(x_nhwc, params))

    ref = reference_forward(x_nhwc, torch_w)
    # kernel matmuls run in bf16 (f32 accumulation); reference is pure f32
    np.testing.assert_allclose(np.asarray(out_nhwc), np.asarray(ref),
                               rtol=2e-2, atol=3e-2)

    out_nchw = jnp.transpose(out_nhwc, (0, 3, 1, 2))             # back to NCHW
    jax.block_until_ready(out_nchw)
    print("KERNEL_OK")
</pallas_src>

<mosaic_0001>
module attributes {stable_mosaic.version = 11 : i64} {
  func.func @_linear_stage_kernel(%arg0: i32, %arg1: memref<256x64xf32, #tpu.memory_space<vmem>>, %arg2: memref<1x64xf32, #tpu.memory_space<vmem>>, %arg3: memref<1x64xf32, #tpu.memory_space<vmem>>, %arg4: memref<64x64xbf16, #tpu.memory_space<vmem>>, %arg5: memref<256x64xf32, #tpu.memory_space<vmem>>, %arg6: memref<1x2x64xf32, #tpu.memory_space<vmem>>) attributes {dimension_semantics = [#tpu.dimension_semantics<parallel>], iteration_bounds = array<i64: 2>, scalar_prefetch = 0 : i64, scratch_operands = 0 : i64, tpu.core_type = #tpu.core_type<tc>, window_params = [{transform_indices = @transform_0, window_bounds = array<i64: 256, 64>}, {pipeline_mode = #tpu.pipeline_mode<synchronous>, transform_indices = @transform_1, window_bounds = array<i64: 1, 64>}, {pipeline_mode = #tpu.pipeline_mode<synchronous>, transform_indices = @transform_2, window_bounds = array<i64: 1, 64>}, {pipeline_mode = #tpu.pipeline_mode<synchronous>, transform_indices = @transform_3, window_bounds = array<i64: 64, 64>}, {transform_indices = @transform_4, window_bounds = array<i64: 256, 64>}, {transform_indices = @transform_5, window_bounds = array<i64: 1, 2, 64>}]} {
    %c0 = arith.constant 0 : index
    %c0_0 = arith.constant 0 : index
    %0 = vector.load %arg1[%c0, %c0_0] : memref<256x64xf32, #tpu.memory_space<vmem>>, vector<256x64xf32>
    %c0_1 = arith.constant 0 : index
    %c0_2 = arith.constant 0 : index
    %1 = vector.load %arg2[%c0_1, %c0_2] : memref<1x64xf32, #tpu.memory_space<vmem>>, vector<1x64xf32>
    %2 = vector.broadcast %1 : vector<1x64xf32> to vector<256x64xf32>
    %3 = arith.mulf %0, %2 : vector<256x64xf32>
    %c0_3 = arith.constant 0 : index
    %c0_4 = arith.constant 0 : index
    %4 = vector.load %arg3[%c0_3, %c0_4] : memref<1x64xf32, #tpu.memory_space<vmem>>, vector<1x64xf32>
    %5 = vector.broadcast %4 : vector<1x64xf32> to vector<256x64xf32>
    %6 = arith.addf %3, %5 : vector<256x64xf32>
    %7 = arith.truncf %6 : vector<256x64xf32> to vector<256x64xbf16>
    %c0_5 = arith.constant 0 : index
    %c0_6 = arith.constant 0 : index
    %8 = vector.load %arg4[%c0_5, %c0_6] : memref<64x64xbf16, #tpu.memory_space<vmem>>, vector<64x64xbf16>
    %cst = arith.constant dense<0.000000e+00> : vector<256x64xf32>
    %9 = tpu.matmul %7, %8, %cst {dimension_numbers = #tpu.dot_dimension_numbers<[1], [0], [0], [1], [0, 0, 1, 1], [], []>} : vector<256x64xbf16>, vector<64x64xbf16>, vector<256x64xf32> -> vector<256x64xf32>
    %c0_7 = arith.constant 0 : index
    %c0_8 = arith.constant 0 : index
    %10 = vector.load %arg5[%c0_7, %c0_8] : memref<256x64xf32, #tpu.memory_space<vmem>>, vector<256x64xf32>
    tpu.vector_store %arg5[%c0_7, %c0_8], %9 {strides = array<i32>} : memref<256x64xf32, #tpu.memory_space<vmem>>, vector<256x64xf32>,
    %cst_9 = arith.constant dense<0.000000e+00> : vector<64xf32>
    %11 = vector.multi_reduction <add>, %9, %cst_9 [0] : vector<256x64xf32> to vector<64xf32>
    %12 = vector.shape_cast %11 : vector<64xf32> to vector<1x64xf32>
    %13 = arith.mulf %9, %9 : vector<256x64xf32>
    %cst_10 = arith.constant dense<0.000000e+00> : vector<64xf32>
    %14 = vector.multi_reduction <add>, %13, %cst_10 [0] : vector<256x64xf32> to vector<64xf32>
    %15 = vector.shape_cast %14 : vector<64xf32> to vector<1x64xf32>
    %16 = tpu.concatenate %12, %15 in 0 : vector<1x64xf32>, vector<1x64xf32> -> vector<2x64xf32>
    %17 = vector.shape_cast %16 : vector<2x64xf32> to vector<1x2x64xf32>
    %c0_11 = arith.constant 0 : index
    %c0_12 = arith.constant 0 : index
    %c0_13 = arith.constant 0 : index
    %18 = vector.load %arg6[%c0_11, %c0_12, %c0_13] : memref<1x2x64xf32, #tpu.memory_space<vmem>>, vector<1x2x64xf32>
    tpu.vector_store %arg6[%c0_11, %c0_12, %c0_13], %17 {strides = array<i32>} : memref<1x2x64xf32, #tpu.memory_space<vmem>>, vector<1x2x64xf32>,
    return
  }
  func.func @transform_0(%arg0: i32) -> (i32, i32) {
    %c0_i32 = arith.constant 0 : i32
    %c0_i32_0 = arith.constant 0 : i32
    return %arg0, %c0_i32 : i32, i32
  }
  func.func @transform_1(%arg0: i32) -> (i32, i32) {
    %c0_i32 = arith.constant 0 : i32
    %c0_i32_0 = arith.constant 0 : i32
    %c0_i32_1 = arith.constant 0 : i32
    return %c0_i32, %c0_i32_0 : i32, i32
  }
  func.func @transform_2(%arg0: i32) -> (i32, i32) {
    %c0_i32 = arith.constant 0 : i32
    %c0_i32_0 = arith.constant 0 : i32
    %c0_i32_1 = arith.constant 0 : i32
    return %c0_i32, %c0_i32_0 : i32, i32
  }
  func.func @transform_3(%arg0: i32) -> (i32, i32) {
    %c0_i32 = arith.constant 0 : i32
    %c0_i32_0 = arith.constant 0 : i32
    %c0_i32_1 = arith.constant 0 : i32
    return %c0_i32, %c0_i32_0 : i32, i32
  }
  func.func @transform_4(%arg0: i32) -> (i32, i32) {
    %c0_i32 = arith.constant 0 : i32
    %c0_i32_0 = arith.constant 0 : i32
    return %arg0, %c0_i32 : i32, i32
  }
  func.func @transform_5(%arg0: i32) -> (i32, i32, i32) {
    %c0_i32 = arith.constant 0 : i32
    %c0_i32_0 = arith.constant 0 : i32
    %c0_i32_1 = arith.constant 0 : i32
    return %arg0, %c0_i32, %c0_i32_0 : i32, i32, i32
  }
}

module attributes {stable_mosaic.version = 11 : i64} {
  func.func @_conv2_stage_kernel(%arg0: i32, %arg1: memref<1x16x16x64xf32, #tpu.memory_space<vmem>>, %arg2: memref<1x64xf32, #tpu.memory_space<vmem>>, %arg3: memref<1x64xf32, #tpu.memory_space<vmem>>, %arg4: memref<576x64xbf16, #tpu.memory_space<vmem>>, %arg5: memref<1x16x16x64xf32, #tpu.memory_space<vmem>>, %arg6: memref<1x2x64xf32, #tpu.memory_space<vmem>>, %arg7: memref<18x18x64xf32, #tpu.memory_space<vmem>>) attributes {dimension_semantics = [#tpu.dimension_semantics<parallel>], iteration_bounds = array<i64: 2>, scalar_prefetch = 0 : i64, scratch_operands = 1 : i64, tpu.core_type = #tpu.core_type<tc>, window_params = [{transform_indices = @transform_0, window_bounds = array<i64: 1, 16, 16, 64>}, {pipeline_mode = #tpu.pipeline_mode<synchronous>, transform_indices = @transform_1, window_bounds = array<i64: 1, 64>}, {pipeline_mode = #tpu.pipeline_mode<synchronous>, transform_indices = @transform_2, window_bounds = array<i64: 1, 64>}, {pipeline_mode = #tpu.pipeline_mode<synchronous>, transform_indices = @transform_3, window_bounds = array<i64: 576, 64>}, {transform_indices = @transform_4, window_bounds = array<i64: 1, 16, 16, 64>}, {transform_indices = @transform_5, window_bounds = array<i64: 1, 2, 64>}]} {
    %c0 = arith.constant 0 : index
    %c0_0 = arith.constant 0 : index
    %c0_1 = arith.constant 0 : index
    %c0_2 = arith.constant 0 : index
    %0 = vector.load %arg1[%c0, %c0_0, %c0_1, %c0_2] : memref<1x16x16x64xf32, #tpu.memory_space<vmem>>, vector<1x16x16x64xf32>
    %1 = vector.shape_cast %0 : vector<1x16x16x64xf32> to vector<16x16x64xf32>
    %c0_3 = arith.constant 0 : index
    %c0_4 = arith.constant 0 : index
    %2 = vector.load %arg2[%c0_3, %c0_4] : memref<1x64xf32, #tpu.memory_space<vmem>>, vector<1x64xf32>
    %3 = vector.shape_cast %2 : vector<1x64xf32> to vector<1x1x64xf32>
    %4 = vector.broadcast %3 : vector<1x1x64xf32> to vector<16x16x64xf32>
    %5 = arith.mulf %1, %4 : vector<16x16x64xf32>
    %c0_5 = arith.constant 0 : index
    %c0_6 = arith.constant 0 : index
    %6 = vector.load %arg3[%c0_5, %c0_6] : memref<1x64xf32, #tpu.memory_space<vmem>>, vector<1x64xf32>
    %7 = vector.shape_cast %6 : vector<1x64xf32> to vector<1x1x64xf32>
    %8 = vector.broadcast %7 : vector<1x1x64xf32> to vector<16x16x64xf32>
    %9 = arith.addf %5, %8 : vector<16x16x64xf32>
    %cst = arith.constant 0.000000e+00 : f32
    %10 = vector.broadcast %cst : f32 to vector<16x16x64xf32>
    %11 = arith.cmpf oge, %9, %10 : vector<16x16x64xf32>
    %cst_7 = arith.constant 0.00999999977 : f32
    %12 = vector.broadcast %cst_7 : f32 to vector<16x16x64xf32>
    %13 = arith.mulf %12, %9 : vector<16x16x64xf32>
    %14 = arith.select %11, %9, %13 : vector<16x16x64xi1>, vector<16x16x64xf32>
    %cst_8 = arith.constant 0.000000e+00 : f32
    %15 = vector.broadcast %cst_8 : f32 to vector<1x18x64xf32>
    %cst_9 = arith.constant 0.000000e+00 : f32
    %16 = vector.broadcast %cst_9 : f32 to vector<18x1x64xf32>
    %c0_10 = arith.constant 0 : index
    %c0_11 = arith.constant 0 : index
    %c0_12 = arith.constant 0 : index
    %17 = vector.load %arg7[%c0_10, %c0_11, %c0_12] : memref<18x18x64xf32, #tpu.memory_space<vmem>>, vector<1x18x64xf32>
    tpu.vector_store %arg7[%c0_10, %c0_11, %c0_12], %15 {strides = array<i32>} : memref<18x18x64xf32, #tpu.memory_space<vmem>>, vector<1x18x64xf32>,
    %c17 = arith.constant 17 : index
    %c0_13 = arith.constant 0 : index
    %c0_14 = arith.constant 0 : index
    %18 = vector.load %arg7[%c17, %c0_13, %c0_14] : memref<18x18x64xf32, #tpu.memory_space<vmem>>, vector<1x18x64xf32>
    tpu.vector_store %arg7[%c17, %c0_13, %c0_14], %15 {strides = array<i32>} : memref<18x18x64xf32, #tpu.memory_space<vmem>>, vector<1x18x64xf32>,
    %c0_15 = arith.constant 0 : index
    %c0_16 = arith.constant 0 : index
    %c0_17 = arith.constant 0 : index
    %19 = vector.load %arg7[%c0_15, %c0_16, %c0_17] : memref<18x18x64xf32, #tpu.memory_space<vmem>>, vector<18x1x64xf32>
    tpu.vector_store %arg7[%c0_15, %c0_16, %c0_17], %16 {strides = array<i32>} : memref<18x18x64xf32, #tpu.memory_space<vmem>>, vector<18x1x64xf32>,
    %c0_18 = arith.constant 0 : index
    %c17_19 = arith.constant 17 : index
    %c0_20 = arith.constant 0 : index
    %20 = vector.load %arg7[%c0_18, %c17_19, %c0_20] : memref<18x18x64xf32, #tpu.memory_space<vmem>>, vector<18x1x64xf32>
    tpu.vector_store %arg7[%c0_18, %c17_19, %c0_20], %16 {strides = array<i32>} : memref<18x18x64xf32, #tpu.memory_space<vmem>>, vector<18x1x64xf32>,
    %c1 = arith.constant 1 : index
    %c1_21 = arith.constant 1 : index
    %c0_22 = arith.constant 0 : index
    %21 = vector.load %arg7[%c1, %c1_21, %c0_22] : memref<18x18x64xf32, #tpu.memory_space<vmem>>, vector<16x16x64xf32>
    tpu.vector_store %arg7[%c1, %c1_21, %c0_22], %14 {strides = array<i32>} : memref<18x18x64xf32, #tpu.memory_space<vmem>>, vector<16x16x64xf32>,
    %c0_23 = arith.constant 0 : index
    %c0_24 = arith.constant 0 : index
    %c0_25 = arith.constant 0 : index
    %22 = vector.load %arg7[%c0_23, %c0_24, %c0_25] : memref<18x18x64xf32, #tpu.memory_space<vmem>>, vector<16x16x64xf32>
    %23 = vector.shape_cast %22 : vector<16x16x64xf32> to vector<256x64xf32>
    %c0_26 = arith.constant 0 : index
    %c1_27 = arith.constant 1 : index
    %c0_28 = arith.constant 0 : index
    %24 = vector.load %arg7[%c0_26, %c1_27, %c0_28] : memref<18x18x64xf32, #tpu.memory_space<vmem>>, vector<16x16x64xf32>
    %25 = vector.shape_cast %24 : vector<16x16x64xf32> to vector<256x64xf32>
    %c0_29 = arith.constant 0 : index
    %c2 = arith.constant 2 : index
    %c0_30 = arith.constant 0 : index
    %26 = vector.load %arg7[%c0_29, %c2, %c0_30] : memref<18x18x64xf32, #tpu.memory_space<vmem>>, vector<16x16x64xf32>
    %27 = vector.shape_cast %26 : vector<16x16x64xf32> to vector<256x64xf32>
    %c1_31 = arith.constant 1 : index
    %c0_32 = arith.constant 0 : index
    %c0_33 = arith.constant 0 : index
    %28 = vector.load %arg7[%c1_31, %c0_32, %c0_33] : memref<18x18x64xf32, #tpu.memory_space<vmem>>, vector<16x16x64xf32>
    %29 = vector.shape_cast %28 : vector<16x16x64xf32> to vector<256x64xf32>
    %c1_34 = arith.constant 1 : index
    %c1_35 = arith.constant 1 : index
    %c0_36 = arith.constant 0 : index
    %30 = vector.load %arg7[%c1_34, %c1_35, %c0_36] : memref<18x18x64xf32, #tpu.memory_space<vmem>>, vector<16x16x64xf32>
    %31 = vector.shape_cast %30 : vector<16x16x64xf32> to vector<256x64xf32>
    %c1_37 = arith.constant 1 : index
    %c2_38 = arith.constant 2 : index
    %c0_39 = arith.constant 0 : index
    %32 = vector.load %arg7[%c1_37, %c2_38, %c0_39] : memref<18x18x64xf32, #tpu.memory_space<vmem>>, vector<16x16x64xf32>
    %33 = vector.shape_cast %32 : vector<16x16x64xf32> to vector<256x64xf32>
    %c2_40 = arith.constant 2 : index
    %c0_41 = arith.constant 0 : index
    %c0_42 = arith.constant 0 : index
    %34 = vector.load %arg7[%c2_40, %c0_41, %c0_42] : memref<18x18x64xf32, #tpu.memory_space<vmem>>, vector<16x16x64xf32>
    %35 = vector.shape_cast %34 : vector<16x16x64xf32> to vector<256x64xf32>
    %c2_43 = arith.constant 2 : index
    %c1_44 = arith.constant 1 : index
    %c0_45 = arith.constant 0 : index
    %36 = vector.load %arg7[%c2_43, %c1_44, %c0_45] : memref<18x18x64xf32, #tpu.memory_space<vmem>>, vector<16x16x64xf32>
    %37 = vector.shape_cast %36 : vector<16x16x64xf32> to vector<256x64xf32>
    %c2_46 = arith.constant 2 : index
    %c2_47 = arith.constant 2 : index
    %c0_48 = arith.constant 0 : index
    %38 = vector.load %arg7[%c2_46, %c2_47, %c0_48] : memref<18x18x64xf32, #tpu.memory_space<vmem>>, vector<16x16x64xf32>
    %39 = vector.shape_cast %38 : vector<16x16x64xf32> to vector<256x64xf32>
    %40 = tpu.concatenate %23, %25, %27, %29, %31, %33, %35, %37, %39 in 1 : vector<256x64xf32>, vector<256x64xf32>, vector<256x64xf32>, vector<256x64xf32>, vector<256x64xf32>, vector<256x64xf32>, vector<256x64xf32>, vector<256x64xf32>, vector<256x64xf32> -> vector<256x576xf32>
    %41 = arith.truncf %40 : vector<256x576xf32> to vector<256x576xbf16>
    %c0_49 = arith.constant 0 : index
    %c0_50 = arith.constant 0 : index
    %42 = vector.load %arg4[%c0_49, %c0_50] : memref<576x64xbf16, #tpu.memory_space<vmem>>, vector<576x64xbf16>
    %cst_51 = arith.constant dense<0.000000e+00> : vector<256x64xf32>
    %43 = tpu.matmul %41, %42, %cst_51 {dimension_numbers = #tpu.dot_dimension_numbers<[1], [0], [0], [1], [0, 0, 1, 1], [], []>} : vector<256x576xbf16>, vector<576x64xbf16>, vector<256x64xf32> -> vector<256x64xf32>
    %44 = vector.shape_cast %43 : vector<256x64xf32> to vector<1x16x16x64xf32>
    %c0_52 = arith.constant 0 : index
    %c0_53 = arith.constant 0 : index
    %c0_54 = arith.constant 0 : index
    %c0_55 = arith.constant 0 : index
    %45 = vector.load %arg5[%c0_52, %c0_53, %c0_54, %c0_55] : memref<1x16x16x64xf32, #tpu.memory_space<vmem>>, vector<1x16x16x64xf32>
    tpu.vector_store %arg5[%c0_52, %c0_53, %c0_54, %c0_55], %44 {strides = array<i32>} : memref<1x16x16x64xf32, #tpu.memory_space<vmem>>, vector<1x16x16x64xf32>,
    %cst_56 = arith.constant dense<0.000000e+00> : vector<64xf32>
    %46 = vector.multi_reduction <add>, %43, %cst_56 [0] : vector<256x64xf32> to vector<64xf32>
    %47 = vector.shape_cast %46 : vector<64xf32> to vector<1x64xf32>
    %48 = arith.mulf %43, %43 : vector<256x64xf32>
    %cst_57 = arith.constant dense<0.000000e+00> : vector<64xf32>
    %49 = vector.multi_reduction <add>, %48, %cst_57 [0] : vector<256x64xf32> to vector<64xf32>
    %50 = vector.shape_cast %49 : vector<64xf32> to vector<1x64xf32>
    %51 = tpu.concatenate %47, %50 in 0 : vector<1x64xf32>, vector<1x64xf32> -> vector<2x64xf32>
    %52 = vector.shape_cast %51 : vector<2x64xf32> to vector<1x2x64xf32>
    %c0_58 = arith.constant 0 : index
    %c0_59 = arith.constant 0 : index
    %c0_60 = arith.constant 0 : index
    %53 = vector.load %arg6[%c0_58, %c0_59, %c0_60] : memref<1x2x64xf32, #tpu.memory_space<vmem>>, vector<1x2x64xf32>
    tpu.vector_store %arg6[%c0_58, %c0_59, %c0_60], %52 {strides = array<i32>} : memref<1x2x64xf32, #tpu.memory_space<vmem>>, vector<1x2x64xf32>,
    return
  }
  func.func @transform_0(%arg0: i32) -> (i32, i32, i32, i32) {
    %c0_i32 = arith.constant 0 : i32
    %c0_i32_0 = arith.constant 0 : i32
    %c0_i32_1 = arith.constant 0 : i32
    %c0_i32_2 = arith.constant 0 : i32
    return %arg0, %c0_i32, %c0_i32_0, %c0_i32_1 : i32, i32, i32, i32
  }
  func.func @transform_1(%arg0: i32) -> (i32, i32) {
    %c0_i32 = arith.constant 0 : i32
    %c0_i32_0 = arith.constant 0 : i32
    %c0_i32_1 = arith.constant 0 : i32
    return %c0_i32, %c0_i32_0 : i32, i32
  }
  func.func @transform_2(%arg0: i32) -> (i32, i32) {
    %c0_i32 = arith.constant 0 : i32
    %c0_i32_0 = arith.constant 0 : i32
    %c0_i32_1 = arith.constant 0 : i32
    return %c0_i32, %c0_i32_0 : i32, i32
  }
  func.func @transform_3(%arg0: i32) -> (i32, i32) {
    %c0_i32 = arith.constant 0 : i32
    %c0_i32_0 = arith.constant 0 : i32
    %c0_i32_1 = arith.constant 0 : i32
    return %c0_i32, %c0_i32_0 : i32, i32
  }
  func.func @transform_4(%arg0: i32) -> (i32, i32, i32, i32) {
    %c0_i32 = arith.constant 0 : i32
    %c0_i32_0 = arith.constant 0 : i32
    %c0_i32_1 = arith.constant 0 : i32
    %c0_i32_2 = arith.constant 0 : i32
    return %arg0, %c0_i32, %c0_i32_0, %c0_i32_1 : i32, i32, i32, i32
  }
  func.func @transform_5(%arg0: i32) -> (i32, i32, i32) {
    %c0_i32 = arith.constant 0 : i32
    %c0_i32_0 = arith.constant 0 : i32
    %c0_i32_1 = arith.constant 0 : i32
    return %arg0, %c0_i32, %c0_i32_0 : i32, i32, i32
  }
}

module attributes {stable_mosaic.version = 11 : i64} {
  func.func @_linear_stage_kernel(%arg0: i32, %arg1: memref<256x64xf32, #tpu.memory_space<vmem>>, %arg2: memref<1x64xf32, #tpu.memory_space<vmem>>, %arg3: memref<1x64xf32, #tpu.memory_space<vmem>>, %arg4: memref<64x64xbf16, #tpu.memory_space<vmem>>, %arg5: memref<256x64xf32, #tpu.memory_space<vmem>>, %arg6: memref<1x2x64xf32, #tpu.memory_space<vmem>>) attributes {dimension_semantics = [#tpu.dimension_semantics<parallel>], iteration_bounds = array<i64: 2>, scalar_prefetch = 0 : i64, scratch_operands = 0 : i64, tpu.core_type = #tpu.core_type<tc>, window_params = [{transform_indices = @transform_0, window_bounds = array<i64: 256, 64>}, {pipeline_mode = #tpu.pipeline_mode<synchronous>, transform_indices = @transform_1, window_bounds = array<i64: 1, 64>}, {pipeline_mode = #tpu.pipeline_mode<synchronous>, transform_indices = @transform_2, window_bounds = array<i64: 1, 64>}, {pipeline_mode = #tpu.pipeline_mode<synchronous>, transform_indices = @transform_3, window_bounds = array<i64: 64, 64>}, {transform_indices = @transform_4, window_bounds = array<i64: 256, 64>}, {transform_indices = @transform_5, window_bounds = array<i64: 1, 2, 64>}]} {
    %c0 = arith.constant 0 : index
    %c0_0 = arith.constant 0 : index
    %0 = vector.load %arg1[%c0, %c0_0] : memref<256x64xf32, #tpu.memory_space<vmem>>, vector<256x64xf32>
    %c0_1 = arith.constant 0 : index
    %c0_2 = arith.constant 0 : index
    %1 = vector.load %arg2[%c0_1, %c0_2] : memref<1x64xf32, #tpu.memory_space<vmem>>, vector<1x64xf32>
    %2 = vector.broadcast %1 : vector<1x64xf32> to vector<256x64xf32>
    %3 = arith.mulf %0, %2 : vector<256x64xf32>
    %c0_3 = arith.constant 0 : index
    %c0_4 = arith.constant 0 : index
    %4 = vector.load %arg3[%c0_3, %c0_4] : memref<1x64xf32, #tpu.memory_space<vmem>>, vector<1x64xf32>
    %5 = vector.broadcast %4 : vector<1x64xf32> to vector<256x64xf32>
    %6 = arith.addf %3, %5 : vector<256x64xf32>
    %cst = arith.constant 0.000000e+00 : f32
    %7 = vector.broadcast %cst : f32 to vector<256x64xf32>
    %8 = arith.cmpf oge, %6, %7 : vector<256x64xf32>
    %cst_5 = arith.constant 0.00999999977 : f32
    %9 = vector.broadcast %cst_5 : f32 to vector<256x64xf32>
    %10 = arith.mulf %9, %6 : vector<256x64xf32>
    %11 = arith.select %8, %6, %10 : vector<256x64xi1>, vector<256x64xf32>
    %12 = arith.truncf %11 : vector<256x64xf32> to vector<256x64xbf16>
    %c0_6 = arith.constant 0 : index
    %c0_7 = arith.constant 0 : index
    %13 = vector.load %arg4[%c0_6, %c0_7] : memref<64x64xbf16, #tpu.memory_space<vmem>>, vector<64x64xbf16>
    %cst_8 = arith.constant dense<0.000000e+00> : vector<256x64xf32>
    %14 = tpu.matmul %12, %13, %cst_8 {dimension_numbers = #tpu.dot_dimension_numbers<[1], [0], [0], [1], [0, 0, 1, 1], [], []>} : vector<256x64xbf16>, vector<64x64xbf16>, vector<256x64xf32> -> vector<256x64xf32>
    %c0_9 = arith.constant 0 : index
    %c0_10 = arith.constant 0 : index
    %15 = vector.load %arg5[%c0_9, %c0_10] : memref<256x64xf32, #tpu.memory_space<vmem>>, vector<256x64xf32>
    tpu.vector_store %arg5[%c0_9, %c0_10], %14 {strides = array<i32>} : memref<256x64xf32, #tpu.memory_space<vmem>>, vector<256x64xf32>,
    %cst_11 = arith.constant dense<0.000000e+00> : vector<64xf32>
    %16 = vector.multi_reduction <add>, %14, %cst_11 [0] : vector<256x64xf32> to vector<64xf32>
    %17 = vector.shape_cast %16 : vector<64xf32> to vector<1x64xf32>
    %18 = arith.mulf %14, %14 : vector<256x64xf32>
    %cst_12 = arith.constant dense<0.000000e+00> : vector<64xf32>
    %19 = vector.multi_reduction <add>, %18, %cst_12 [0] : vector<256x64xf32> to vector<64xf32>
    %20 = vector.shape_cast %19 : vector<64xf32> to vector<1x64xf32>
    %21 = tpu.concatenate %17, %20 in 0 : vector<1x64xf32>, vector<1x64xf32> -> vector<2x64xf32>
    %22 = vector.shape_cast %21 : vector<2x64xf32> to vector<1x2x64xf32>
    %c0_13 = arith.constant 0 : index
    %c0_14 = arith.constant 0 : index
    %c0_15 = arith.constant 0 : index
    %23 = vector.load %arg6[%c0_13, %c0_14, %c0_15] : memref<1x2x64xf32, #tpu.memory_space<vmem>>, vector<1x2x64xf32>
    tpu.vector_store %arg6[%c0_13, %c0_14, %c0_15], %22 {strides = array<i32>} : memref<1x2x64xf32, #tpu.memory_space<vmem>>, vector<1x2x64xf32>,
    return
  }
  func.func @transform_0(%arg0: i32) -> (i32, i32) {
    %c0_i32 = arith.constant 0 : i32
    %c0_i32_0 = arith.constant 0 : i32
    return %arg0, %c0_i32 : i32, i32
  }
  func.func @transform_1(%arg0: i32) -> (i32, i32) {
    %c0_i32 = arith.constant 0 : i32
    %c0_i32_0 = arith.constant 0 : i32
    %c0_i32_1 = arith.constant 0 : i32
    return %c0_i32, %c0_i32_0 : i32, i32
  }
  func.func @transform_2(%arg0: i32) -> (i32, i32) {
    %c0_i32 = arith.constant 0 : i32
    %c0_i32_0 = arith.constant 0 : i32
    %c0_i32_1 = arith.constant 0 : i32
    return %c0_i32, %c0_i32_0 : i32, i32
  }
  func.func @transform_3(%arg0: i32) -> (i32, i32) {
    %c0_i32 = arith.constant 0 : i32
    %c0_i32_0 = arith.constant 0 : i32
    %c0_i32_1 = arith.constant 0 : i32
    return %c0_i32, %c0_i32_0 : i32, i32
  }
  func.func @transform_4(%arg0: i32) -> (i32, i32) {
    %c0_i32 = arith.constant 0 : i32
    %c0_i32_0 = arith.constant 0 : i32
    return %arg0, %c0_i32 : i32, i32
  }
  func.func @transform_5(%arg0: i32) -> (i32, i32, i32) {
    %c0_i32 = arith.constant 0 : i32
    %c0_i32_0 = arith.constant 0 : i32
    %c0_i32_1 = arith.constant 0 : i32
    return %arg0, %c0_i32, %c0_i32_0 : i32, i32, i32
  }
}

module attributes {stable_mosaic.version = 11 : i64} {
  func.func @_bn_skip_act_kernel(%arg0: i32, %arg1: memref<16x1024xf32, #tpu.memory_space<vmem>>, %arg2: memref<16x1024xf32, #tpu.memory_space<vmem>>, %arg3: memref<1x1024xf32, #tpu.memory_space<vmem>>, %arg4: memref<1x1024xf32, #tpu.memory_space<vmem>>, %arg5: memref<16x1024xf32, #tpu.memory_space<vmem>>) attributes {dimension_semantics = [#tpu.dimension_semantics<parallel>], iteration_bounds = array<i64: 2>, scalar_prefetch = 0 : i64, scratch_operands = 0 : i64, tpu.core_type = #tpu.core_type<tc>, window_params = [{transform_indices = @transform_0, window_bounds = array<i64: 16, 1024>}, {transform_indices = @transform_1, window_bounds = array<i64: 16, 1024>}, {pipeline_mode = #tpu.pipeline_mode<synchronous>, transform_indices = @transform_2, window_bounds = array<i64: 1, 1024>}, {pipeline_mode = #tpu.pipeline_mode<synchronous>, transform_indices = @transform_3, window_bounds = array<i64: 1, 1024>}, {transform_indices = @transform_4, window_bounds = array<i64: 16, 1024>}]} {
    %c0 = arith.constant 0 : index
    %c0_0 = arith.constant 0 : index
    %0 = vector.load %arg1[%c0, %c0_0] : memref<16x1024xf32, #tpu.memory_space<vmem>>, vector<16x1024xf32>
    %c0_1 = arith.constant 0 : index
    %c0_2 = arith.constant 0 : index
    %1 = vector.load %arg3[%c0_1, %c0_2] : memref<1x1024xf32, #tpu.memory_space<vmem>>, vector<1x1024xf32>
    %2 = vector.broadcast %1 : vector<1x1024xf32> to vector<16x1024xf32>
    %3 = arith.mulf %0, %2 : vector<16x1024xf32>
    %c0_3 = arith.constant 0 : index
    %c0_4 = arith.constant 0 : index
    %4 = vector.load %arg4[%c0_3, %c0_4] : memref<1x1024xf32, #tpu.memory_space<vmem>>, vector<1x1024xf32>
    %5 = vector.broadcast %4 : vector<1x1024xf32> to vector<16x1024xf32>
    %6 = arith.addf %3, %5 : vector<16x1024xf32>
    %c0_5 = arith.constant 0 : index
    %c0_6 = arith.constant 0 : index
    %7 = vector.load %arg2[%c0_5, %c0_6] : memref<16x1024xf32, #tpu.memory_space<vmem>>, vector<16x1024xf32>
    %8 = arith.addf %6, %7 : vector<16x1024xf32>
    %cst = arith.constant 0.000000e+00 : f32
    %9 = vector.broadcast %cst : f32 to vector<16x1024xf32>
    %10 = arith.cmpf oge, %8, %9 : vector<16x1024xf32>
    %cst_7 = arith.constant 0.00999999977 : f32
    %11 = vector.broadcast %cst_7 : f32 to vector<16x1024xf32>
    %12 = arith.mulf %11, %8 : vector<16x1024xf32>
    %13 = arith.select %10, %8, %12 : vector<16x1024xi1>, vector<16x1024xf32>
    %c0_8 = arith.constant 0 : index
    %c0_9 = arith.constant 0 : index
    %14 = vector.load %arg5[%c0_8, %c0_9] : memref<16x1024xf32, #tpu.memory_space<vmem>>, vector<16x1024xf32>
    tpu.vector_store %arg5[%c0_8, %c0_9], %13 {strides = array<i32>} : memref<16x1024xf32, #tpu.memory_space<vmem>>, vector<16x1024xf32>,
    return
  }
  func.func @transform_0(%arg0: i32) -> (i32, i32) {
    %c0_i32 = arith.constant 0 : i32
    %c0_i32_0 = arith.constant 0 : i32
    return %arg0, %c0_i32 : i32, i32
  }
  func.func @transform_1(%arg0: i32) -> (i32, i32) {
    %c0_i32 = arith.constant 0 : i32
    %c0_i32_0 = arith.constant 0 : i32
    return %arg0, %c0_i32 : i32, i32
  }
  func.func @transform_2(%arg0: i32) -> (i32, i32) {
    %c0_i32 = arith.constant 0 : i32
    %c0_i32_0 = arith.constant 0 : i32
    %c0_i32_1 = arith.constant 0 : i32
    return %c0_i32, %c0_i32_0 : i32, i32
  }
  func.func @transform_3(%arg0: i32) -> (i32, i32) {
    %c0_i32 = arith.constant 0 : i32
    %c0_i32_0 = arith.constant 0 : i32
    %c0_i32_1 = arith.constant 0 : i32
    return %c0_i32, %c0_i32_0 : i32, i32
  }
  func.func @transform_4(%arg0: i32) -> (i32, i32) {
    %c0_i32 = arith.constant 0 : i32
    %c0_i32_0 = arith.constant 0 : i32
    return %arg0, %c0_i32 : i32, i32
  }
}

</mosaic_0001>

<llo_original>
// kernel: bottleneckx_forward.4
$region0: #{bottleneckx_forward.4}
  #allocation0 [shape = 'u32[]', space=smem, size = 0x4, offset = 0x4, fixed_abs, tag = 'smem constant byte address 0x4 - core index']
  #allocation1 [shape = 'u32[72,128]{1,0:T(1,128)}', space=vmem, size = 0x9000, scoped, tag = 'internal scratch']
  %s0 = inlined_call_operand.hbm [shape: f32[512,64], index: 0, kind: input, shape index: {}]
  %s1 = inlined_call_operand.vmem [shape: f32[1,64], index: 1, kind: input, shape index: {}]
  %s2 = inlined_call_operand.vmem [shape: f32[1,64], index: 2, kind: input, shape index: {}]
  %s3 = inlined_call_operand.hbm [shape: bf16[64,64], index: 3, kind: input, shape index: {}]
  %s4 = inlined_call_operand.vmem [shape: f32[512,64], index: 4, kind: output, shape index: {0}]
  %s5 = inlined_call_operand.vmem [shape: f32[2,2,64], index: 5, kind: output, shape index: {1}]
  %6 = xla_tuple %s4, %s5
  %s7 = sld [smem:[#allocation0]]
  $region65: #{bottleneckx_forward.4} parent=0
    _
  %s9 = ssub.s32 1, %s7
  %s10 = scalar_select 0, %s9, %s7
  $region1: #{bottleneckx_forward.4} parent=0
    #allocation2 [shape = 'u8[262144]{0}', space=vmem, size = 0x40000, scoped, tag = 'input window, operand 0']
    #allocation3 [shape = 's32[2]{0}', space=sflag, size = 0x8, scoped, tag = 'scoped memory for bottleneckx_forward.4']
    #allocation4 [shape = 'u8[16384]{0}', space=vmem, size = 0x4000, scoped, tag = 'input window, operand 3, single buffered']
    #allocation5 [shape = 's32[1]{0}', space=sflag, size = 0x4, scoped, tag = 'scoped memory for bottleneckx_forward.4']
    %11 = vsyncpa [#allocation3], 0
    %s12 = scalar_lea.sflag [#allocation3], 1
    %13 = vsyncpa %s12, 0
    %14 = vsyncpa [#allocation5], 0
    loop: start=0, step=1, limit=4
    $region2: #{bottleneckx_forward.4} parent=1 // loop_pre_header
      _
    $region3: #{bottleneckx_forward.4} parent=1 // loop_header
      %s16 = sphi 0, %s20
      %p17 = scmp.ge.s32.totalorder %s16, 4
      %s26 = sphi 0, %s28
      %s29 = sphi 0, %s26
      %s30 = sphi 0, %s29
      %s46 = sphi 0, %s30
      %s50 = sphi 0, %s50
      %s52 = sphi 0, %s50
      %s53 = sphi 0, %s52
      %s67 = sphi 0, %s53
      %s71 = sphi 0, %s71
      %s73 = sphi 0, %s71
      %s74 = sphi 0, %s73
      %s88 = sphi 0, %s74
      %s92 = sphi 0, %s92
      %s94 = sphi 0, %s92
      %s95 = sphi 0, %s94
      %s109 = sphi 0, %s95
      %s115 = sphi 0, %s117
      %s118 = sphi 0, %s115
      %s119 = sphi 0, %s118
      %s135 = sphi 0, %s119
      %s141 = sphi 0, %s143
      %s144 = sphi 0, %s141
      %s145 = sphi 0, %s144
      %s161 = sphi 0, %s145
    $region4: #{bottleneckx_forward.4} parent=1 // loop_header_branch
      %19 = sbr.rel (%p17) target = $region8
    $region5: #{bottleneckx_forward.4} parent=1 // loop_body
      %s21 = ssub.s32 %s16, 1
      %s22 = ssub.s32 %s16, 2
      %s23 = sadd.s32 %s16, 1
      %s24 = ssub.s32 %s16, %s23
      %p25 = scmp.eq.s32.totalorder %s24, 0
      %s27 = sadd.s32 %s26, 1
      %s28 = scalar_select %p25, %s26, %s27
      %p31 = pneg %p25
      %p32 = scmp.eq.s32.totalorder %s16, 1
      %p33 = por %p31, %p32
      %p34 = scmp.ne.s32.totalorder %s26, %s29
      %p35 = scmp.eq.s32.totalorder %s16, 0
      %p36 = por %p34, %p35
      %p37 = scmp.ne.s32.totalorder %s26, %s29
      %p38 = scmp.eq.s32.totalorder %s21, 1
      %p39 = por %p37, %p38
      %p40 = scmp.ne.s32.totalorder %s29, %s30
      %p41 = scmp.eq.s32.totalorder %s21, 0
      %p42 = por %p40, %p41
      %p43 = scmp.ne.s32.totalorder %s29, %s30
      %p44 = scmp.eq.s32.totalorder %s22, 1
      %p45 = por %p43, %p44
      %p47 = scmp.ne.s32.totalorder %s30, %s46
      %p48 = scmp.eq.s32.totalorder %s22, 0
      %p49 = por %p47, %p48
      %s51 = sadd.s32 %s50, 1
      %p54 = scmp.eq.s32.totalorder %s16, 1
      %p55 = scmp.ne.s32.totalorder %s50, %s52
      %p56 = scmp.eq.s32.totalorder %s16, 0
      %p57 = por %p55, %p56
      %p58 = scmp.ne.s32.totalorder %s50, %s52
      %p59 = scmp.eq.s32.totalorder %s21, 1
      %p60 = por %p58, %p59
      %p61 = scmp.ne.s32.totalorder %s52, %s53
      %p62 = scmp.eq.s32.totalorder %s21, 0
      %p63 = por %p61, %p62
      %p64 = scmp.ne.s32.totalorder %s52, %s53
      %p65 = scmp.eq.s32.totalorder %s22, 1
      %p66 = por %p64, %p65
      %p68 = scmp.ne.s32.totalorder %s53, %s67
      %p69 = scmp.eq.s32.totalorder %s22, 0
      %p70 = por %p68, %p69
      %s72 = sadd.s32 %s71, 1
      %p75 = scmp.eq.s32.totalorder %s16, 1
      %p76 = scmp.ne.s32.totalorder %s71, %s73
      %p77 = scmp.eq.s32.totalorder %s16, 0
      %p78 = por %p76, %p77
      %p79 = scmp.ne.s32.totalorder %s71, %s73
      %p80 = scmp.eq.s32.totalorder %s21, 1
      %p81 = por %p79, %p80
      %p82 = scmp.ne.s32.totalorder %s73, %s74
      %p83 = scmp.eq.s32.totalorder %s21, 0
      %p84 = por %p82, %p83
      %p85 = scmp.ne.s32.totalorder %s73, %s74
      %p86 = scmp.eq.s32.totalorder %s22, 1
      %p87 = por %p85, %p86
      %p89 = scmp.ne.s32.totalorder %s74, %s88
      %p90 = scmp.eq.s32.totalorder %s22, 0
      %p91 = por %p89, %p90
      %s93 = sadd.s32 %s92, 1
      %p96 = scmp.eq.s32.totalorder %s16, 1
      %p97 = scmp.ne.s32.totalorder %s92, %s94
      %p98 = scmp.eq.s32.totalorder %s16, 0
      %p99 = por %p97, %p98
      %p100 = scmp.ne.s32.totalorder %s92, %s94
      %p101 = scmp.eq.s32.totalorder %s21, 1
      %p102 = por %p100, %p101
      %p103 = scmp.ne.s32.totalorder %s94, %s95
      %p104 = scmp.eq.s32.totalorder %s21, 0
      %p105 = por %p103, %p104
      %p106 = scmp.ne.s32.totalorder %s94, %s95
      %p107 = scmp.eq.s32.totalorder %s22, 1
      %p108 = por %p106, %p107
      %p110 = scmp.ne.s32.totalorder %s95, %s109
      %p111 = scmp.eq.s32.totalorder %s22, 0
      %p112 = por %p110, %p111
      %s113 = ssub.s32 %s16, %s23
      %p114 = scmp.eq.s32.totalorder %s113, 0
      %s116 = sadd.s32 %s115, 1
      %s117 = scalar_select %p114, %s115, %s116
      %p120 = pneg %p114
      %p121 = scmp.eq.s32.totalorder %s16, 1
      %p122 = por %p120, %p121
      %p123 = scmp.ne.s32.totalorder %s115, %s118
      %p124 = scmp.eq.s32.totalorder %s16, 0
      %p125 = por %p123, %p124
      %p126 = scmp.ne.s32.totalorder %s115, %s118
      %p127 = scmp.eq.s32.totalorder %s21, 1
      %p128 = por %p126, %p127
      %p129 = scmp.ne.s32.totalorder %s118, %s119
      %p130 = scmp.eq.s32.totalorder %s21, 0
      %p131 = por %p129, %p130
      %p132 = scmp.ne.s32.totalorder %s118, %s119
      %p133 = scmp.eq.s32.totalorder %s22, 1
      %p134 = por %p132, %p133
      %p136 = scmp.ne.s32.totalorder %s119, %s135
      %p137 = scmp.eq.s32.totalorder %s22, 0
      %p138 = por %p136, %p137
      %s139 = ssub.s32 %s16, %s23
      %p140 = scmp.eq.s32.totalorder %s139, 0
      %s142 = sadd.s32 %s141, 1
      %s143 = scalar_select %p140, %s141, %s142
      %p146 = pneg %p140
      %p147 = scmp.eq.s32.totalorder %s16, 1
      %p148 = por %p146, %p147
      %p149 = scmp.ne.s32.totalorder %s141, %s144
      %p150 = scmp.eq.s32.totalorder %s16, 0
      %p151 = por %p149, %p150
      %p152 = scmp.ne.s32.totalorder %s141, %s144
      %p153 = scmp.eq.s32.totalorder %s21, 1
      %p154 = por %p152, %p153
      %p155 = scmp.ne.s32.totalorder %s144, %s145
      %p156 = scmp.eq.s32.totalorder %s21, 0
      %p157 = por %p155, %p156
      %p158 = scmp.ne.s32.totalorder %s144, %s145
      %p159 = scmp.eq.s32.totalorder %s22, 1
      %p160 = por %p158, %p159
      %p162 = scmp.ne.s32.totalorder %s145, %s161
      %p163 = scmp.eq.s32.totalorder %s22, 0
      %p164 = por %p162, %p163
      %p165 = scmp.le.s32.totalorder 1, %s16
      %p166 = scmp.lt.s32.totalorder %s16, 3
      %p167 = pnand %p165, %p166
      %p168 = pneg %p167
      // Predicated region
      $region9: #{bottleneckx_forward.4} parent=5 // pred_check
        _
      $region10: #{bottleneckx_forward.4} parent=5 // pred_check_branch
        %170 = sbr.rel (%p167) target = $region12
      $region11: #{bottleneckx_forward.4} parent=5 // pred_region
        %s171 = ssub.s32 %s16, 1
        // Predicated region
        $region13: #{bottleneckx_forward.4} parent=11 // pred_check
          %p172 = pneg %p63
        $region14: #{bottleneckx_forward.4} parent=11 // pred_check_branch
          %174 = sbr.rel (%p172) target = $region16
        $region15: #{bottleneckx_forward.4} parent=11 // pred_region
          _
        $region16: #{bottleneckx_forward.4} parent=11 // pred_fallthru
          _
        // Predicated region
        $region17: #{bottleneckx_forward.4} parent=11 // pred_check
          %p175 = pneg %p84
        $region18: #{bottleneckx_forward.4} parent=11 // pred_check_branch
          %177 = sbr.rel (%p175) target = $region20
        $region19: #{bottleneckx_forward.4} parent=11 // pred_region
          _
        $region20: #{bottleneckx_forward.4} parent=11 // pred_fallthru
          _
        // Predicated region
        $region21: #{bottleneckx_forward.4} parent=11 // pred_check
          %p178 = pneg %p105
        $region22: #{bottleneckx_forward.4} parent=11 // pred_check_branch
          %180 = sbr.rel (%p178) target = $region24
        $region23: #{bottleneckx_forward.4} parent=11 // pred_region
          %182 = vsyncadd [#allocation5], 0
          %s183 = sshll.u32 %s3, 4
          %s184 = int_to_ptr.hbm [resolvable:$true] %s183
          %s185 = sshll.u32 [#allocation4], 4
          %s186 = int_to_ptr.vmem [resolvable:$true] %s185
          %191 = dma.hbm_to_vmem [thread:$0]  %s184, 512, %s186, [#allocation5], 64, 64, 4
        $region24: #{bottleneckx_forward.4} parent=11 // pred_fallthru
          _
      $region12: #{bottleneckx_forward.4} parent=5 // pred_fallthru
        _
      %p192 = scmp.lt.s32.totalorder %s16, 2
      // Predicated region
      $region25: #{bottleneckx_forward.4} parent=5 // pred_check
        %p193 = pneg %p192
      $region26: #{bottleneckx_forward.4} parent=5 // pred_check_branch
        %195 = sbr.rel (%p193) target = $region28
      $region27: #{bottleneckx_forward.4} parent=5 // pred_region
        // Predicated region
        $region29: #{bottleneckx_forward.4} parent=27 // pred_check
          %p196 = pneg %p36
        $region30: #{bottleneckx_forward.4} parent=27 // pred_check_branch
          %198 = sbr.rel (%p196) target = $region32
        $region31: #{bottleneckx_forward.4} parent=27 // pred_region
          %s199 = sand.u32 %s26, 1
          %s200 = scalar_lea.sflag [#allocation3], %s199
          %s201 = sand.u32 %s26, 1
          %s202 = smul.addr %s201, 256
          %s203 = scalar_lea.vmem [#allocation2], %s202
          %s204 = smul.u32 32, %s16
          %206 = vsyncadd %s200, 0
          %s207 = smul.addr %s204, 8
          %s208 = scalar_lea.hbm %s0, %s207
          %s209 = sshll.u32 %s208, 4
          %s210 = int_to_ptr.hbm [resolvable:$true] %s209
          %s211 = sshll.u32 %s203, 4
          %s212 = int_to_ptr.vmem [resolvable:$true] %s211
          %217 = dma.hbm_to_vmem [thread:$0]  %s210, 4096, %s212, %s200, 128, 128, 8
        $region32: #{bottleneckx_forward.4} parent=27 // pred_fallthru
          _
      $region28: #{bottleneckx_forward.4} parent=5 // pred_fallthru
        _
      %p218 = scmp.le.s32.totalorder 1, %s16
      %p219 = scmp.lt.s32.totalorder %s16, 3
      %p220 = pnand %p218, %p219
      %p221 = pneg %p220
      // Predicated region
      $region33: #{bottleneckx_forward.4} parent=5 // pred_check
        _
      $region34: #{bottleneckx_forward.4} parent=5 // pred_check_branch
        %223 = sbr.rel (%p220) target = $region36
      $region35: #{bottleneckx_forward.4} parent=5 // pred_region
        %s224 = ssub.s32 %s16, 1
        %s225 = sand.u32 %s29, 1
        %s226 = scalar_lea.sflag [#allocation3], %s225
        %s227 = sand.u32 %s29, 1
        %s228 = smul.addr %s227, 256
        %s229 = scalar_lea.vmem [#allocation2], %s228
        // Predicated region
        $region37: #{bottleneckx_forward.4} parent=35 // pred_check
          %p230 = pneg %p42
        $region38: #{bottleneckx_forward.4} parent=35 // pred_check_branch
          %232 = sbr.rel (%p230) target = $region40
        $region39: #{bottleneckx_forward.4} parent=35 // pred_region
          %234 = dma.done %s226, 4096
        $region40: #{bottleneckx_forward.4} parent=35 // pred_fallthru
          _
        // Predicated region
        $region41: #{bottleneckx_forward.4} parent=35 // pred_check
          %p235 = pneg %p105
        $region42: #{bottleneckx_forward.4} parent=35 // pred_check_branch
          %237 = sbr.rel (%p235) target = $region44
        $region43: #{bottleneckx_forward.4} parent=35 // pred_region
          %239 = dma.done [#allocation5], 512
        $region44: #{bottleneckx_forward.4} parent=35 // pred_fallthru
          _
        %s240 = sand.u32 %s29, 1
        %s241 = scalar_lea.sflag [#allocation3], %s240
        %s242 = sand.u32 %s29, 1
        %s243 = smul.addr %s242, 256
        %s244 = scalar_lea.vmem [#allocation2], %s243
        %p245 = pneg %p42
        %p246 = pneg %p39
        %p247 = pneg %p63
        %p248 = pneg %p60
        %p249 = pneg %p84
        %p250 = pneg %p81
        %p251 = pneg %p105
        %p252 = pneg %p102
        %p253 = pneg %p131
        %p254 = pneg %p128
        %s255 = smul.u32 32, %s21
        %p256 = scmp.lt.s32.totalorder %s255, 63
        %s257 = scalar_select %p256, %s255, 63
        %s258 = smul.addr %s257, 8
        %s259 = scalar_lea.vmem %s4, %s258
        %p260 = pneg %p157
        %p261 = pneg %p154
        %p262 = scmp.lt.s32.totalorder %s21, 1
        %s263 = scalar_select %p262, %s21, 1
        %s264 = smul.addr %s263, 2
        %s265 = scalar_lea.vmem %s5, %s264
        %s266 = smul.u32 32, %s21
        %s267 = smul.u32 32, %s21
        %p268 = scmp.lt.s32.totalorder %s267, 63
        %s269 = scalar_select %p268, %s267, 63
        %s270 = smul.addr %s269, 8
        %s271 = scalar_lea.vmem %s4, %s270
        %s272 = smul.u32 32, %s21
        %p273 = scmp.lt.s32.totalorder %s21, 1
        %s274 = scalar_select %p273, %s21, 1
        %s275 = smul.addr %s274, 2
        %s276 = scalar_lea.vmem %s5, %s275
        %v278 = vld [vmem:[%s229] sm:$0xff]
        %v279 = vld [vmem:[%s229 + $0x8] sm:$0xff]
        %v280 = vld [vmem:[%s229 + $0x10] sm:$0xff]
        %v281 = vld [vmem:[%s229 + $0x18] sm:$0xff]
        %v282 = vld [vmem:[%s229 + $0x20] sm:$0xff]
        %v283 = vld [vmem:[%s229 + $0x28] sm:$0xff]
        %v284 = vld [vmem:[%s229 + $0x30] sm:$0xff]
        %v285 = vld [vmem:[%s229 + $0x38] sm:$0xff]
        %v286 = vld [vmem:[%s229 + $0x40] sm:$0xff]
        %v287 = vld [vmem:[%s229 + $0x48] sm:$0xff]
        %v288 = vld [vmem:[%s229 + $0x50] sm:$0xff]
        %v289 = vld [vmem:[%s229 + $0x58] sm:$0xff]
        %v290 = vld [vmem:[%s229 + $0x60] sm:$0xff]
        %v291 = vld [vmem:[%s229 + $0x68] sm:$0xff]
        %v292 = vld [vmem:[%s229 + $0x70] sm:$0xff]
        %v293 = vld [vmem:[%s229 + $0x78] sm:$0xff]
        %v294 = vld [vmem:[%s229 + $0x80] sm:$0xff]
        %v295 = vld [vmem:[%s229 + $0x88] sm:$0xff]
        %v296 = vld [vmem:[%s229 + $0x90] sm:$0xff]
        %v297 = vld [vmem:[%s229 + $0x98] sm:$0xff]
        %v298 = vld [vmem:[%s229 + $0xa0] sm:$0xff]
        %v299 = vld [vmem:[%s229 + $0xa8] sm:$0xff]
        %v300 = vld [vmem:[%s229 + $0xb0] sm:$0xff]
        %v301 = vld [vmem:[%s229 + $0xb8] sm:$0xff]
        %v302 = vld [vmem:[%s229 + $0xc0] sm:$0xff]
        %v303 = vld [vmem:[%s229 + $0xc8] sm:$0xff]
        %v304 = vld [vmem:[%s229 + $0xd0] sm:$0xff]
        %v305 = vld [vmem:[%s229 + $0xd8] sm:$0xff]
        %v306 = vld [vmem:[%s229 + $0xe0] sm:$0xff]
        %v307 = vld [vmem:[%s229 + $0xe8] sm:$0xff]
        %v308 = vld [vmem:[%s229 + $0xf0] sm:$0xff]
        %v309 = vld [vmem:[%s229 + $0xf8] sm:$0xff]
        %v310 = vld [vmem:[%s1] sm:$0x1]
        %v312 = vperm.slane %v310, 0
        %v314 = vmul.f32 %v278, %v312
        %v315 = vmul.f32 %v279, %v312
        %v316 = vmul.f32 %v280, %v312
        %v317 = vmul.f32 %v281, %v312
        %v318 = vmul.f32 %v282, %v312
        %v319 = vmul.f32 %v283, %v312
        %v320 = vmul.f32 %v284, %v312
        %v321 = vmul.f32 %v285, %v312
        %v322 = vmul.f32 %v286, %v312
        %v323 = vmul.f32 %v287, %v312
        %v324 = vmul.f32 %v288, %v312
        %v325 = vmul.f32 %v289, %v312
        %v326 = vmul.f32 %v290, %v312
        %v327 = vmul.f32 %v291, %v312
        %v328 = vmul.f32 %v292, %v312
        %v329 = vmul.f32 %v293, %v312
        %v330 = vmul.f32 %v294, %v312
        %v331 = vmul.f32 %v295, %v312
        %v332 = vmul.f32 %v296, %v312
        %v333 = vmul.f32 %v297, %v312
        %v334 = vmul.f32 %v298, %v312
        %v335 = vmul.f32 %v299, %v312
        %v336 = vmul.f32 %v300, %v312
        %v337 = vmul.f32 %v301, %v312
        %v338 = vmul.f32 %v302, %v312
        %v339 = vmul.f32 %v303, %v312
        %v340 = vmul.f32 %v304, %v312
        %v341 = vmul.f32 %v305, %v312
        %v342 = vmul.f32 %v306, %v312
        %v343 = vmul.f32 %v307, %v312
        %v344 = vmul.f32 %v308, %v312
        %v345 = vmul.f32 %v309, %v312
        %v346 = vld [vmem:[%s2] sm:$0x1]
        %v348 = vperm.slane %v346, 0
        %v350 = vadd.f32 %v314, %v348
        %v351 = vadd.f32 %v315, %v348
        %v352 = vadd.f32 %v316, %v348
        %v353 = vadd.f32 %v317, %v348
        %v354 = vadd.f32 %v318, %v348
        %v355 = vadd.f32 %v319, %v348
        %v356 = vadd.f32 %v320, %v348
        %v357 = vadd.f32 %v321, %v348
        %v358 = vadd.f32 %v322, %v348
        %v359 = vadd.f32 %v323, %v348
        %v360 = vadd.f32 %v324, %v348
        %v361 = vadd.f32 %v325, %v348
        %v362 = vadd.f32 %v326, %v348
        %v363 = vadd.f32 %v327, %v348
        %v364 = vadd.f32 %v328, %v348
        %v365 = vadd.f32 %v329, %v348
        %v366 = vadd.f32 %v330, %v348
        %v367 = vadd.f32 %v331, %v348
        %v368 = vadd.f32 %v332, %v348
        %v369 = vadd.f32 %v333, %v348
        %v370 = vadd.f32 %v334, %v348
        %v371 = vadd.f32 %v335, %v348
        %v372 = vadd.f32 %v336, %v348
        %v373 = vadd.f32 %v337, %v348
        %v374 = vadd.f32 %v338, %v348
        %v375 = vadd.f32 %v339, %v348
        %v376 = vadd.f32 %v340, %v348
        %v377 = vadd.f32 %v341, %v348
        %v378 = vadd.f32 %v342, %v348
        %v379 = vadd.f32 %v343, %v348
        %v380 = vadd.f32 %v344, %v348
        %v381 = vadd.f32 %v345, %v348
        %v382 = vpack.c.bf16 %v351, %v350
        %v383 = vpack.c.bf16 %v353, %v352
        %v384 = vpack.c.bf16 %v355, %v354
        %v385 = vpack.c.bf16 %v357, %v356
        %v386 = vpack.c.bf16 %v359, %v358
        %v387 = vpack.c.bf16 %v361, %v360
        %v388 = vpack.c.bf16 %v363, %v362
        %v389 = vpack.c.bf16 %v365, %v364
        %v390 = vpack.c.bf16 %v367, %v366
        %v391 = vpack.c.bf16 %v369, %v368
        %v392 = vpack.c.bf16 %v371, %v370
        %v393 = vpack.c.bf16 %v373, %v372
        %v394 = vpack.c.bf16 %v375, %v374
        %v395 = vpack.c.bf16 %v377, %v376
        %v396 = vpack.c.bf16 %v379, %v378
        %v397 = vpack.c.bf16 %v381, %v380
        %v398 = vld [vmem:[#allocation4] sm:$0xf]
        %v399 = vld [vmem:[#allocation4 + $0x4] sm:$0xf]
        %v400 = vld [vmem:[#allocation4 + $0x8] sm:$0xf]
        %v401 = vld [vmem:[#allocation4 + $0xc] sm:$0xf]
        %v402 = vld [vmem:[#allocation4 + $0x10] sm:$0xf]
        %v403 = vld [vmem:[#allocation4 + $0x14] sm:$0xf]
        %v404 = vld [vmem:[#allocation4 + $0x18] sm:$0xf]
        %v405 = vld [vmem:[#allocation4 + $0x1c] sm:$0xf]
        %v414 = vunpack.c.l.b16 %v398
        %v415 = vunpack.c.l.b16 %v399
        %v416 = vunpack.c.l.b16 %v400
        %v417 = vunpack.c.l.b16 %v401
        %v418 = vunpack.c.l.b16 %v402
        %v419 = vunpack.c.l.b16 %v403
        %v420 = vunpack.c.l.b16 %v404
        %v421 = vunpack.c.l.b16 %v405
        %v422 = vpack.c.b16 %v415, %v414
        %v423 = vpack.c.b16 %v417, %v416
        %v424 = vpack.c.b16 %v419, %v418
        %v425 = vpack.c.b16 %v421, %v420
        %vm430 = vcmask 523264
        %v432 = vsel %vm430, %v382, 0
        %v435 = vsel %vm430, %v383, 0
        %v438 = vsel %vm430, %v384, 0
        %v441 = vsel %vm430, %v385, 0
        %v444 = vsel %vm430, %v386, 0
        %v447 = vsel %vm430, %v387, 0
        %v450 = vsel %vm430, %v388, 0
        %v453 = vsel %vm430, %v389, 0
        %v456 = vsel %vm430, %v390, 0
        %v459 = vsel %vm430, %v391, 0
        %v462 = vsel %vm430, %v392, 0
        %v465 = vsel %vm430, %v393, 0
        %v468 = vsel %vm430, %v394, 0
        %v471 = vsel %vm430, %v395, 0
        %v474 = vsel %vm430, %v396, 0
        %v477 = vsel %vm430, %v397, 0
        %479 = vmatpush.bf16.msra.mxu0 0
        %480 = vmatpush.bf16.msra.mxu0 0
        %481 = vmatpush.bf16.msra.mxu0 0
        %482 = vmatpush.bf16.msra.mxu0 0
        %483 = vmatpush.bf16.msra.mxu0 %v425
        %484 = vmatpush.bf16.msra.mxu0 %v424
        %485 = vmatpush.bf16.msra.mxu0 %v423
        %486 = vmatpush.bf16.msra.mxu0 %v422
        %487 = vmatmul.bf16.gmra.mxu0 %v432
        %v488 = vpop.f32.mrf.mxu0
        %v489 = vadd.f32 0.0, %v488
        %v490 = vpop.f32.mrf.mxu0
        %v491 = vadd.f32 0.0, %v490
        %492 = vmatmul.bf16.gmra.mxu0 %v435
        %v493 = vpop.f32.mrf.mxu0
        %v494 = vadd.f32 0.0, %v493
        %v495 = vpop.f32.mrf.mxu0
        %v496 = vadd.f32 0.0, %v495
        %497 = vmatmul.bf16.gmra.mxu0 %v438
        %v498 = vpop.f32.mrf.mxu0
        %v499 = vadd.f32 0.0, %v498
        %v500 = vpop.f32.mrf.mxu0
        %v501 = vadd.f32 0.0, %v500
        %502 = vmatmul.bf16.gmra.mxu0 %v441
        %v503 = vpop.f32.mrf.mxu0
        %v504 = vadd.f32 0.0, %v503
        %v505 = vpop.f32.mrf.mxu0
        %v506 = vadd.f32 0.0, %v505
        %507 = vmatmul.bf16.gmra.mxu0 %v444
        %v508 = vpop.f32.mrf.mxu0
        %v509 = vadd.f32 0.0, %v508
        %v510 = vpop.f32.mrf.mxu0
        %v511 = vadd.f32 0.0, %v510
        %512 = vmatmul.bf16.gmra.mxu0 %v447
        %v513 = vpop.f32.mrf.mxu0
        %v514 = vadd.f32 0.0, %v513
        %v515 = vpop.f32.mrf.mxu0
        %v516 = vadd.f32 0.0, %v515
        %517 = vmatmul.bf16.gmra.mxu0 %v450
        %v518 = vpop.f32.mrf.mxu0
        %v519 = vadd.f32 0.0, %v518
        %v520 = vpop.f32.mrf.mxu0
        %v521 = vadd.f32 0.0, %v520
        %522 = vmatmul.bf16.gmra.mxu0 %v453
        %v523 = vpop.f32.mrf.mxu0
        %v524 = vadd.f32 0.0, %v523
        %v525 = vpop.f32.mrf.mxu0
        %v526 = vadd.f32 0.0, %v525
        %527 = vmatmul.bf16.gmra.mxu0 %v456
        %v528 = vpop.f32.mrf.mxu0
        %v529 = vadd.f32 0.0, %v528
        %v530 = vpop.f32.mrf.mxu0
        %v531 = vadd.f32 0.0, %v530
        %532 = vmatmul.bf16.gmra.mxu0 %v459
        %v533 = vpop.f32.mrf.mxu0
        %v534 = vadd.f32 0.0, %v533
        %v535 = vpop.f32.mrf.mxu0
        %v536 = vadd.f32 0.0, %v535
        %537 = vmatmul.bf16.gmra.mxu0 %v462
        %v538 = vpop.f32.mrf.mxu0
        %v539 = vadd.f32 0.0, %v538
        %v540 = vpop.f32.mrf.mxu0
        %v541 = vadd.f32 0.0, %v540
        %542 = vmatmul.bf16.gmra.mxu0 %v465
        %v543 = vpop.f32.mrf.mxu0
        %v544 = vadd.f32 0.0, %v543
        %v545 = vpop.f32.mrf.mxu0
        %v546 = vadd.f32 0.0, %v545
        %547 = vmatmul.bf16.gmra.mxu0 %v468
        %v548 = vpop.f32.mrf.mxu0
        %v549 = vadd.f32 0.0, %v548
        %v550 = vpop.f32.mrf.mxu0
        %v551 = vadd.f32 0.0, %v550
        %552 = vmatmul.bf16.gmra.mxu0 %v471
        %v553 = vpop.f32.mrf.mxu0
        %v554 = vadd.f32 0.0, %v553
        %v555 = vpop.f32.mrf.mxu0
        %v556 = vadd.f32 0.0, %v555
        %557 = vmatmul.bf16.gmra.mxu0 %v474
        %v558 = vpop.f32.mrf.mxu0
        %v559 = vadd.f32 0.0, %v558
        %v560 = vpop.f32.mrf.mxu0
        %v561 = vadd.f32 0.0, %v560
        %562 = vmatmul.bf16.gmra.mxu0 %v477
        %v563 = vpop.f32.mrf.mxu0
        %v564 = vadd.f32 0.0, %v563
        %v565 = vpop.f32.mrf.mxu0
        %v566 = vadd.f32 0.0, %v565
        %567 = vdwg.mxu0
        %568 = vst.msk [vmem:[%s271] sm:$0xff] %vm430, %v489
        %569 = vst.msk [vmem:[%s271 + $0x8] sm:$0xff] %vm430, %v491
        %570 = vst.msk [vmem:[%s271 + $0x10] sm:$0xff] %vm430, %v494
        %571 = vst.msk [vmem:[%s271 + $0x18] sm:$0xff] %vm430, %v496
        %572 = vst.msk [vmem:[%s271 + $0x20] sm:$0xff] %vm430, %v499
        %573 = vst.msk [vmem:[%s271 + $0x28] sm:$0xff] %vm430, %v501
        %574 = vst.msk [vmem:[%s271 + $0x30] sm:$0xff] %vm430, %v504
        %575 = vst.msk [vmem:[%s271 + $0x38] sm:$0xff] %vm430, %v506
        %576 = vst.msk [vmem:[%s271 + $0x40] sm:$0xff] %vm430, %v509
        %577 = vst.msk [vmem:[%s271 + $0x48] sm:$0xff] %vm430, %v511
        %578 = vst.msk [vmem:[%s271 + $0x50] sm:$0xff] %vm430, %v514
        %579 = vst.msk [vmem:[%s271 + $0x58] sm:$0xff] %vm430, %v516
        %580 = vst.msk [vmem:[%s271 + $0x60] sm:$0xff] %vm430, %v519
        %581 = vst.msk [vmem:[%s271 + $0x68] sm:$0xff] %vm430, %v521
        %582 = vst.msk [vmem:[%s271 + $0x70] sm:$0xff] %vm430, %v524
        %583 = vst.msk [vmem:[%s271 + $0x78] sm:$0xff] %vm430, %v526
        %584 = vst.msk [vmem:[%s271 + $0x80] sm:$0xff] %vm430, %v529
        %585 = vst.msk [vmem:[%s271 + $0x88] sm:$0xff] %vm430, %v531
        %586 = vst.msk [vmem:[%s271 + $0x90] sm:$0xff] %vm430, %v534
        %587 = vst.msk [vmem:[%s271 + $0x98] sm:$0xff] %vm430, %v536
        %588 = vst.msk [vmem:[%s271 + $0xa0] sm:$0xff] %vm430, %v539
        %589 = vst.msk [vmem:[%s271 + $0xa8] sm:$0xff] %vm430, %v541
        %590 = vst.msk [vmem:[%s271 + $0xb0] sm:$0xff] %vm430, %v544
        %591 = vst.msk [vmem:[%s271 + $0xb8] sm:$0xff] %vm430, %v546
        %592 = vst.msk [vmem:[%s271 + $0xc0] sm:$0xff] %vm430, %v549
        %593 = vst.msk [vmem:[%s271 + $0xc8] sm:$0xff] %vm430, %v551
        %594 = vst.msk [vmem:[%s271 + $0xd0] sm:$0xff] %vm430, %v554
        %595 = vst.msk [vmem:[%s271 + $0xd8] sm:$0xff] %vm430, %v556
        %596 = vst.msk [vmem:[%s271 + $0xe0] sm:$0xff] %vm430, %v559
        %597 = vst.msk [vmem:[%s271 + $0xe8] sm:$0xff] %vm430, %v561
        %598 = vst.msk [vmem:[%s271 + $0xf0] sm:$0xff] %vm430, %v564
        %599 = vst.msk [vmem:[%s271 + $0xf8] sm:$0xff] %vm430, %v566
        %v600 = vsel %vm430, %v489, 0.0
        %v601 = vsel %vm430, %v491, 0.0
        %v602 = vadd.f32 %v600, %v601
        %v603 = vsel %vm430, %v494, 0.0
        %v604 = vadd.f32 %v602, %v603
        %v605 = vsel %vm430, %v496, 0.0
        %v606 = vadd.f32 %v604, %v605
        %v607 = vsel %vm430, %v499, 0.0
        %v608 = vadd.f32 %v606, %v607
        %v609 = vsel %vm430, %v501, 0.0
        %v610 = vadd.f32 %v608, %v609
        %v611 = vsel %vm430, %v504, 0.0
        %v612 = vadd.f32 %v610, %v611
        %v613 = vsel %vm430, %v506, 0.0
        %v614 = vadd.f32 %v612, %v613
        %v615 = vsel %vm430, %v509, 0.0
        %v616 = vadd.f32 %v614, %v615
        %v617 = vsel %vm430, %v511, 0.0
        %v618 = vadd.f32 %v616, %v617
        %v619 = vsel %vm430, %v514, 0.0
        %v620 = vadd.f32 %v618, %v619
        %v621 = vsel %vm430, %v516, 0.0
        %v622 = vadd.f32 %v620, %v621
        %v623 = vsel %vm430, %v519, 0.0
        %v624 = vadd.f32 %v622, %v623
        %v625 = vsel %vm430, %v521, 0.0
        %v626 = vadd.f32 %v624, %v625
        %v627 = vsel %vm430, %v524, 0.0
        %v628 = vadd.f32 %v626, %v627
        %v629 = vsel %vm430, %v526, 0.0
        %v630 = vadd.f32 %v628, %v629
        %v631 = vsel %vm430, %v529, 0.0
        %v632 = vadd.f32 %v630, %v631
        %v633 = vsel %vm430, %v531, 0.0
        %v634 = vadd.f32 %v632, %v633
        %v635 = vsel %vm430, %v534, 0.0
        %v636 = vadd.f32 %v634, %v635
        %v637 = vsel %vm430, %v536, 0.0
        %v638 = vadd.f32 %v636, %v637
        %v639 = vsel %vm430, %v539, 0.0
        %v640 = vadd.f32 %v638, %v639
        %v641 = vsel %vm430, %v541, 0.0
        %v642 = vadd.f32 %v640, %v641
        %v643 = vsel %vm430, %v544, 0.0
        %v644 = vadd.f32 %v642, %v643
        %v645 = vsel %vm430, %v546, 0.0
        %v646 = vadd.f32 %v644, %v645
        %v647 = vsel %vm430, %v549, 0.0
        %v648 = vadd.f32 %v646, %v647
        %v649 = vsel %vm430, %v551, 0.0
        %v650 = vadd.f32 %v648, %v649
        %v651 = vsel %vm430, %v554, 0.0
        %v652 = vadd.f32 %v650, %v651
        %v653 = vsel %vm430, %v556, 0.0
        %v654 = vadd.f32 %v652, %v653
        %v655 = vsel %vm430, %v559, 0.0
        %v656 = vadd.f32 %v654, %v655
        %v657 = vsel %vm430, %v561, 0.0
        %v658 = vadd.f32 %v656, %v657
        %v659 = vsel %vm430, %v564, 0.0
        %v660 = vadd.f32 %v658, %v659
        %v661 = vsel %vm430, %v566, 0.0
        %v662 = vadd.f32 %v660, %v661
        %v663 = vrot.slane %v662, 4
        %v664 = vadd.f32 %v662, %v663
        %v665 = vrot.slane %v664, 2
        %v666 = vadd.f32 %v664, %v665
        %v667 = vrot.slane %v666, 1
        %v668 = vadd.f32 %v666, %v667
        %v669 = vmul.f32 %v489, %v489
        %v670 = vmul.f32 %v491, %v491
        %v671 = vmul.f32 %v494, %v494
        %v672 = vmul.f32 %v496, %v496
        %v673 = vmul.f32 %v499, %v499
        %v674 = vmul.f32 %v501, %v501
        %v675 = vmul.f32 %v504, %v504
        %v676 = vmul.f32 %v506, %v506
        %v677 = vmul.f32 %v509, %v509
        %v678 = vmul.f32 %v511, %v511
        %v679 = vmul.f32 %v514, %v514
        %v680 = vmul.f32 %v516, %v516
        %v681 = vmul.f32 %v519, %v519
        %v682 = vmul.f32 %v521, %v521
        %v683 = vmul.f32 %v524, %v524
        %v684 = vmul.f32 %v526, %v526
        %v685 = vmul.f32 %v529, %v529
        %v686 = vmul.f32 %v531, %v531
        %v687 = vmul.f32 %v534, %v534
        %v688 = vmul.f32 %v536, %v536
        %v689 = vmul.f32 %v539, %v539
        %v690 = vmul.f32 %v541, %v541
        %v691 = vmul.f32 %v544, %v544
        %v692 = vmul.f32 %v546, %v546
        %v693 = vmul.f32 %v549, %v549
        %v694 = vmul.f32 %v551, %v551
        %v695 = vmul.f32 %v554, %v554
        %v696 = vmul.f32 %v556, %v556
        %v697 = vmul.f32 %v559, %v559
        %v698 = vmul.f32 %v561, %v561
        %v699 = vmul.f32 %v564, %v564
        %v700 = vmul.f32 %v566, %v566
        %v701 = vsel %vm430, %v669, 0.0
        %v702 = vsel %vm430, %v670, 0.0
        %v703 = vadd.f32 %v701, %v702
        %v704 = vsel %vm430, %v671, 0.0
        %v705 = vadd.f32 %v703, %v704
        %v706 = vsel %vm430, %v672, 0.0
        %v707 = vadd.f32 %v705, %v706
        %v708 = vsel %vm430, %v673, 0.0
        %v709 = vadd.f32 %v707, %v708
        %v710 = vsel %vm430, %v674, 0.0
        %v711 = vadd.f32 %v709, %v710
        %v712 = vsel %vm430, %v675, 0.0
        %v713 = vadd.f32 %v711, %v712
        %v714 = vsel %vm430, %v676, 0.0
        %v715 = vadd.f32 %v713, %v714
        %v716 = vsel %vm430, %v677, 0.0
        %v717 = vadd.f32 %v715, %v716
        %v718 = vsel %vm430, %v678, 0.0
        %v719 = vadd.f32 %v717, %v718
        %v720 = vsel %vm430, %v679, 0.0
        %v721 = vadd.f32 %v719, %v720
        %v722 = vsel %vm430, %v680, 0.0
        %v723 = vadd.f32 %v721, %v722
        %v724 = vsel %vm430, %v681, 0.0
        %v725 = vadd.f32 %v723, %v724
        %v726 = vsel %vm430, %v682, 0.0
        %v727 = vadd.f32 %v725, %v726
        %v728 = vsel %vm430, %v683, 0.0
        %v729 = vadd.f32 %v727, %v728
        %v730 = vsel %vm430, %v684, 0.0
        %v731 = vadd.f32 %v729, %v730
        %v732 = vsel %vm430, %v685, 0.0
        %v733 = vadd.f32 %v731, %v732
        %v734 = vsel %vm430, %v686, 0.0
        %v735 = vadd.f32 %v733, %v734
        %v736 = vsel %vm430, %v687, 0.0
        %v737 = vadd.f32 %v735, %v736
        %v738 = vsel %vm430, %v688, 0.0
        %v739 = vadd.f32 %v737, %v738
        %v740 = vsel %vm430, %v689, 0.0
        %v741 = vadd.f32 %v739, %v740
        %v742 = vsel %vm430, %v690, 0.0
        %v743 = vadd.f32 %v741, %v742
        %v744 = vsel %vm430, %v691, 0.0
        %v745 = vadd.f32 %v743, %v744
        %v746 = vsel %vm430, %v692, 0.0
        %v747 = vadd.f32 %v745, %v746
        %v748 = vsel %vm430, %v693, 0.0
        %v749 = vadd.f32 %v747, %v748
        %v750 = vsel %vm430, %v694, 0.0
        %v751 = vadd.f32 %v749, %v750
        %v752 = vsel %vm430, %v695, 0.0
        %v753 = vadd.f32 %v751, %v752
        %v754 = vsel %vm430, %v696, 0.0
        %v755 = vadd.f32 %v753, %v754
        %v756 = vsel %vm430, %v697, 0.0
        %v757 = vadd.f32 %v755, %v756
        %v758 = vsel %vm430, %v698, 0.0
        %v759 = vadd.f32 %v757, %v758
        %v760 = vsel %vm430, %v699, 0.0
        %v761 = vadd.f32 %v759, %v760
        %v762 = vsel %vm430, %v700, 0.0
        %v763 = vadd.f32 %v761, %v762
        %v764 = vrot.slane %v763, 4
        %v765 = vadd.f32 %v763, %v764
        %v766 = vrot.slane %v765, 2
        %v767 = vadd.f32 %v765, %v766
        %v768 = vrot.slane %v767, 1
        %v769 = vadd.f32 %v767, %v768
        %vm770 = vcmask 1040384
        %v771 = vsel %vm770, %v668, %v769
        %vm772 = vcmask 517120
        %773 = vst.msk [vmem:[%s276] sm:$0x3] %vm772, %v771
        %s774 = smul.u32 32, %s21
        %p775 = scmp.lt.s32.totalorder %s774, 63
        %s776 = scalar_select %p775, %s774, 63
        %s777 = smul.addr %s776, 8
        %s778 = scalar_lea.vmem %s4, %s777
        %p779 = scmp.lt.s32.totalorder %s21, 1
        %s780 = scalar_select %p779, %s21, 1
        %s781 = smul.addr %s780, 2
        %s782 = scalar_lea.vmem %s5, %s781
        // Predicated region
        $region45: #{bottleneckx_forward.4} parent=35 // pred_check
          %p783 = pneg %p128
        $region46: #{bottleneckx_forward.4} parent=35 // pred_check_branch
          %785 = sbr.rel (%p783) target = $region48
        $region47: #{bottleneckx_forward.4} parent=35 // pred_region
          %s786 = smul.u32 32, %s21
        $region48: #{bottleneckx_forward.4} parent=35 // pred_fallthru
          _
        // Predicated region
        $region49: #{bottleneckx_forward.4} parent=35 // pred_check
          %p787 = pneg %p154
        $region50: #{bottleneckx_forward.4} parent=35 // pred_check_branch
          %789 = sbr.rel (%p787) target = $region52
        $region51: #{bottleneckx_forward.4} parent=35 // pred_region
          _
        $region52: #{bottleneckx_forward.4} parent=35 // pred_fallthru
          _
      $region36: #{bottleneckx_forward.4} parent=5 // pred_fallthru
        _
      %p790 = scmp.le.s32.totalorder 2, %s16
      // Predicated region
      $region53: #{bottleneckx_forward.4} parent=5 // pred_check
        %p791 = pneg %p790
      $region54: #{bottleneckx_forward.4} parent=5 // pred_check_branch
        %793 = sbr.rel (%p791) target = $region56
      $region55: #{bottleneckx_forward.4} parent=5 // pred_region
        %s794 = ssub.s32 %s16, 2
        // Predicated region
        $region57: #{bottleneckx_forward.4} parent=55 // pred_check
          %p795 = pneg %p134
        $region58: #{bottleneckx_forward.4} parent=55 // pred_check_branch
          %797 = sbr.rel (%p795) target = $region60
        $region59: #{bottleneckx_forward.4} parent=55 // pred_region
          %s798 = smul.u32 32, %s22
          %p799 = scmp.lt.s32.totalorder %s798, 63
          %s800 = scalar_select %p799, %s798, 63
          %s801 = smul.addr %s800, 8
          %s802 = scalar_lea.vmem %s4, %s801
        $region60: #{bottleneckx_forward.4} parent=55 // pred_fallthru
          _
        // Predicated region
        $region61: #{bottleneckx_forward.4} parent=55 // pred_check
          %p803 = pneg %p160
        $region62: #{bottleneckx_forward.4} parent=55 // pred_check_branch
          %805 = sbr.rel (%p803) target = $region64
        $region63: #{bottleneckx_forward.4} parent=55 // pred_region
          %p806 = scmp.lt.s32.totalorder %s22, 1
          %s807 = scalar_select %p806, %s22, 1
          %s808 = smul.addr %s807, 2
          %s809 = scalar_lea.vmem %s5, %s808
        $region64: #{bottleneckx_forward.4} parent=55 // pred_fallthru
          _
      $region56: #{bottleneckx_forward.4} parent=5 // pred_fallthru
        _
    $region6: #{bottleneckx_forward.4} parent=1 // loop_footer
      %s20 = sadd.s32 1, %s16
    $region7: #{bottleneckx_forward.4} parent=1 // loop_footer_branch
      %15 = sbr.rel target = $region3
    $region8: #{bottleneckx_forward.4} parent=1 // loop_exit
      _
    %810 = vsyncpa [#allocation3], 1
    %s811 = scalar_lea.sflag [#allocation3], 1
    %812 = vsyncpa %s811, 1
    %813 = vsyncpa [#allocation5], 1

// kernel: bottleneckx_forward.6
$region0: #{bottleneckx_forward.6}
  #allocation0 [shape = 'u32[]', space=smem, size = 0x4, offset = 0x4, fixed_abs, tag = 'smem constant byte address 0x4 - core index']
  #allocation1 [shape = 'u32[72,128]{1,0:T(1,128)}', space=vmem, size = 0x9000, scoped, tag = 'internal scratch']
  %s0 = inlined_call_operand.vmem [shape: f32[512,64], index: 0, kind: input, shape index: {}]
  %s1 = inlined_call_operand.vmem [shape: f32[1,64], index: 1, kind: input, shape index: {}]
  %s2 = inlined_call_operand.vmem [shape: f32[1,64], index: 2, kind: input, shape index: {}]
  %s3 = inlined_call_operand.vmem [shape: bf16[64,64], index: 3, kind: input, shape index: {}]
  %s4 = inlined_call_operand.vmem [shape: f32[512,64], index: 4, kind: output, shape index: {0}]
  %s5 = inlined_call_operand.vmem [shape: f32[2,2,64], index: 5, kind: output, shape index: {1}]
  %6 = xla_tuple %s4, %s5
  %s7 = sld [smem:[#allocation0]]
  $region57: #{bottleneckx_forward.6} parent=0
    _
  %s9 = ssub.s32 1, %s7
  %s10 = scalar_select 0, %s9, %s7
  loop: start=0, step=1, limit=4
  $region2: #{bottleneckx_forward.6} parent=0 // loop_pre_header
    _
  $region3: #{bottleneckx_forward.6} parent=0 // loop_header
    %s12 = sphi 0, %s16
    %p13 = scmp.ge.s32.totalorder %s12, 4
    %s22 = sphi 0, %s24
    %s25 = sphi 0, %s22
    %s26 = sphi 0, %s25
    %s42 = sphi 0, %s26
    %s46 = sphi 0, %s46
    %s48 = sphi 0, %s46
    %s49 = sphi 0, %s48
    %s63 = sphi 0, %s49
    %s67 = sphi 0, %s67
    %s69 = sphi 0, %s67
    %s70 = sphi 0, %s69
    %s84 = sphi 0, %s70
    %s88 = sphi 0, %s88
    %s90 = sphi 0, %s88
    %s91 = sphi 0, %s90
    %s105 = sphi 0, %s91
    %s111 = sphi 0, %s113
    %s114 = sphi 0, %s111
    %s115 = sphi 0, %s114
    %s131 = sphi 0, %s115
    %s137 = sphi 0, %s139
    %s140 = sphi 0, %s137
    %s141 = sphi 0, %s140
    %s157 = sphi 0, %s141
  $region4: #{bottleneckx_forward.6} parent=0 // loop_header_branch
    %15 = sbr.rel (%p13) target = $region8
  $region5: #{bottleneckx_forward.6} parent=0 // loop_body
    %s17 = ssub.s32 %s12, 1
    %s18 = ssub.s32 %s12, 2
    %s19 = sadd.s32 %s12, 1
    %s20 = ssub.s32 %s12, %s19
    %p21 = scmp.eq.s32.totalorder %s20, 0
    %s23 = sadd.s32 %s22, 1
    %s24 = scalar_select %p21, %s22, %s23
    %p27 = pneg %p21
    %p28 = scmp.eq.s32.totalorder %s12, 1
    %p29 = por %p27, %p28
    %p30 = scmp.ne.s32.totalorder %s22, %s25
    %p31 = scmp.eq.s32.totalorder %s12, 0
    %p32 = por %p30, %p31
    %p33 = scmp.ne.s32.totalorder %s22, %s25
    %p34 = scmp.eq.s32.totalorder %s17, 1
    %p35 = por %p33, %p34
    %p36 = scmp.ne.s32.totalorder %s25, %s26
    %p37 = scmp.eq.s32.totalorder %s17, 0
    %p38 = por %p36, %p37
    %p39 = scmp.ne.s32.totalorder %s25, %s26
    %p40 = scmp.eq.s32.totalorder %s18, 1
    %p41 = por %p39, %p40
    %p43 = scmp.ne.s32.totalorder %s26, %s42
    %p44 = scmp.eq.s32.totalorder %s18, 0
    %p45 = por %p43, %p44
    %s47 = sadd.s32 %s46, 1
    %p50 = scmp.eq.s32.totalorder %s12, 1
    %p51 = scmp.ne.s32.totalorder %s46, %s48
    %p52 = scmp.eq.s32.totalorder %s12, 0
    %p53 = por %p51, %p52
    %p54 = scmp.ne.s32.totalorder %s46, %s48
    %p55 = scmp.eq.s32.totalorder %s17, 1
    %p56 = por %p54, %p55
    %p57 = scmp.ne.s32.totalorder %s48, %s49
    %p58 = scmp.eq.s32.totalorder %s17, 0
    %p59 = por %p57, %p58
    %p60 = scmp.ne.s32.totalorder %s48, %s49
    %p61 = scmp.eq.s32.totalorder %s18, 1
    %p62 = por %p60, %p61
    %p64 = scmp.ne.s32.totalorder %s49, %s63
    %p65 = scmp.eq.s32.totalorder %s18, 0
    %p66 = por %p64, %p65
    %s68 = sadd.s32 %s67, 1
    %p71 = scmp.eq.s32.totalorder %s12, 1
    %p72 = scmp.ne.s32.totalorder %s67, %s69
    %p73 = scmp.eq.s32.totalorder %s12, 0
    %p74 = por %p72, %p73
    %p75 = scmp.ne.s32.totalorder %s67, %s69
    %p76 = scmp.eq.s32.totalorder %s17, 1
    %p77 = por %p75, %p76
    %p78 = scmp.ne.s32.totalorder %s69, %s70
    %p79 = scmp.eq.s32.totalorder %s17, 0
    %p80 = por %p78, %p79
    %p81 = scmp.ne.s32.totalorder %s69, %s70
    %p82 = scmp.eq.s32.totalorder %s18, 1
    %p83 = por %p81, %p82
    %p85 = scmp.ne.s32.totalorder %s70, %s84
    %p86 = scmp.eq.s32.totalorder %s18, 0
    %p87 = por %p85, %p86
    %s89 = sadd.s32 %s88, 1
    %p92 = scmp.eq.s32.totalorder %s12, 1
    %p93 = scmp.ne.s32.totalorder %s88, %s90
    %p94 = scmp.eq.s32.totalorder %s12, 0
    %p95 = por %p93, %p94
    %p96 = scmp.ne.s32.totalorder %s88, %s90
    %p97 = scmp.eq.s32.totalorder %s17, 1
    %p98 = por %p96, %p97
    %p99 = scmp.ne.s32.totalorder %s90, %s91
    %p100 = scmp.eq.s32.totalorder %s17, 0
    %p101 = por %p99, %p100
    %p102 = scmp.ne.s32.totalorder %s90, %s91
    %p103 = scmp.eq.s32.totalorder %s18, 1
    %p104 = por %p102, %p103
    %p106 = scmp.ne.s32.totalorder %s91, %s105
    %p107 = scmp.eq.s32.totalorder %s18, 0
    %p108 = por %p106, %p107
    %s109 = ssub.s32 %s12, %s19
    %p110 = scmp.eq.s32.totalorder %s109, 0
    %s112 = sadd.s32 %s111, 1
    %s113 = scalar_select %p110, %s111, %s112
    %p116 = pneg %p110
    %p117 = scmp.eq.s32.totalorder %s12, 1
    %p118 = por %p116, %p117
    %p119 = scmp.ne.s32.totalorder %s111, %s114
    %p120 = scmp.eq.s32.totalorder %s12, 0
    %p121 = por %p119, %p120
    %p122 = scmp.ne.s32.totalorder %s111, %s114
    %p123 = scmp.eq.s32.totalorder %s17, 1
    %p124 = por %p122, %p123
    %p125 = scmp.ne.s32.totalorder %s114, %s115
    %p126 = scmp.eq.s32.totalorder %s17, 0
    %p127 = por %p125, %p126
    %p128 = scmp.ne.s32.totalorder %s114, %s115
    %p129 = scmp.eq.s32.totalorder %s18, 1
    %p130 = por %p128, %p129
    %p132 = scmp.ne.s32.totalorder %s115, %s131
    %p133 = scmp.eq.s32.totalorder %s18, 0
    %p134 = por %p132, %p133
    %s135 = ssub.s32 %s12, %s19
    %p136 = scmp.eq.s32.totalorder %s135, 0
    %s138 = sadd.s32 %s137, 1
    %s139 = scalar_select %p136, %s137, %s138
    %p142 = pneg %p136
    %p143 = scmp.eq.s32.totalorder %s12, 1
    %p144 = por %p142, %p143
    %p145 = scmp.ne.s32.totalorder %s137, %s140
    %p146 = scmp.eq.s32.totalorder %s12, 0
    %p147 = por %p145, %p146
    %p148 = scmp.ne.s32.totalorder %s137, %s140
    %p149 = scmp.eq.s32.totalorder %s17, 1
    %p150 = por %p148, %p149
    %p151 = scmp.ne.s32.totalorder %s140, %s141
    %p152 = scmp.eq.s32.totalorder %s17, 0
    %p153 = por %p151, %p152
    %p154 = scmp.ne.s32.totalorder %s140, %s141
    %p155 = scmp.eq.s32.totalorder %s18, 1
    %p156 = por %p154, %p155
    %p158 = scmp.ne.s32.totalorder %s141, %s157
    %p159 = scmp.eq.s32.totalorder %s18, 0
    %p160 = por %p158, %p159
    %p161 = scmp.le.s32.totalorder 1, %s12
    %p162 = scmp.lt.s32.totalorder %s12, 3
    %p163 = pnand %p161, %p162
    %p164 = pneg %p163
    // Predicated region
    $region9: #{bottleneckx_forward.6} parent=5 // pred_check
      _
    $region10: #{bottleneckx_forward.6} parent=5 // pred_check_branch
      %166 = sbr.rel (%p163) target = $region12
    $region11: #{bottleneckx_forward.6} parent=5 // pred_region
      %s167 = ssub.s32 %s12, 1
      // Predicated region
      $region13: #{bottleneckx_forward.6} parent=11 // pred_check
        %p168 = pneg %p59
      $region14: #{bottleneckx_forward.6} parent=11 // pred_check_branch
        %170 = sbr.rel (%p168) target = $region16
      $region15: #{bottleneckx_forward.6} parent=11 // pred_region
        _
      $region16: #{bottleneckx_forward.6} parent=11 // pred_fallthru
        _
      // Predicated region
      $region17: #{bottleneckx_forward.6} parent=11 // pred_check
        %p171 = pneg %p80
      $region18: #{bottleneckx_forward.6} parent=11 // pred_check_branch
        %173 = sbr.rel (%p171) target = $region20
      $region19: #{bottleneckx_forward.6} parent=11 // pred_region
        _
      $region20: #{bottleneckx_forward.6} parent=11 // pred_fallthru
        _
      // Predicated region
      $region21: #{bottleneckx_forward.6} parent=11 // pred_check
        %p174 = pneg %p101
      $region22: #{bottleneckx_forward.6} parent=11 // pred_check_branch
        %176 = sbr.rel (%p174) target = $region24
      $region23: #{bottleneckx_forward.6} parent=11 // pred_region
        _
      $region24: #{bottleneckx_forward.6} parent=11 // pred_fallthru
        _
    $region12: #{bottleneckx_forward.6} parent=5 // pred_fallthru
      _
    %p177 = scmp.lt.s32.totalorder %s12, 2
    // Predicated region
    $region25: #{bottleneckx_forward.6} parent=5 // pred_check
      %p178 = pneg %p177
    $region26: #{bottleneckx_forward.6} parent=5 // pred_check_branch
      %180 = sbr.rel (%p178) target = $region28
    $region27: #{bottleneckx_forward.6} parent=5 // pred_region
      // Predicated region
      $region29: #{bottleneckx_forward.6} parent=27 // pred_check
        %p181 = pneg %p32
      $region30: #{bottleneckx_forward.6} parent=27 // pred_check_branch
        %183 = sbr.rel (%p181) target = $region32
      $region31: #{bottleneckx_forward.6} parent=27 // pred_region
        %s184 = smul.u32 32, %s12
        %p185 = scmp.lt.s32.totalorder %s184, 63
        %s186 = scalar_select %p185, %s184, 63
        %s187 = smul.addr %s186, 8
        %s188 = scalar_lea.vmem %s0, %s187
        %s189 = smul.u32 32, %s12
      $region32: #{bottleneckx_forward.6} parent=27 // pred_fallthru
        _
    $region28: #{bottleneckx_forward.6} parent=5 // pred_fallthru
      _
    %p190 = scmp.le.s32.totalorder 1, %s12
    %p191 = scmp.lt.s32.totalorder %s12, 3
    %p192 = pnand %p190, %p191
    %p193 = pneg %p192
    // Predicated region
    $region33: #{bottleneckx_forward.6} parent=5 // pred_check
      _
    $region34: #{bottleneckx_forward.6} parent=5 // pred_check_branch
      %195 = sbr.rel (%p192) target = $region36
    $region35: #{bottleneckx_forward.6} parent=5 // pred_region
      %s196 = ssub.s32 %s12, 1
      %s197 = smul.u32 32, %s17
      %p198 = scmp.lt.s32.totalorder %s197, 63
      %s199 = scalar_select %p198, %s197, 63
      %s200 = smul.addr %s199, 8
      %s201 = scalar_lea.vmem %s0, %s200
      %p202 = pneg %p38
      %p203 = pneg %p35
      %p204 = pneg %p59
      %p205 = pneg %p56
      %p206 = pneg %p80
      %p207 = pneg %p77
      %p208 = pneg %p101
      %p209 = pneg %p98
      %p210 = pneg %p127
      %p211 = pneg %p124
      %s212 = smul.u32 32, %s17
      %p213 = scmp.lt.s32.totalorder %s212, 63
      %s214 = scalar_select %p213, %s212, 63
      %s215 = smul.addr %s214, 8
      %s216 = scalar_lea.vmem %s4, %s215
      %p217 = pneg %p153
      %p218 = pneg %p150
      %p219 = scmp.lt.s32.totalorder %s17, 1
      %s220 = scalar_select %p219, %s17, 1
      %s221 = smul.addr %s220, 2
      %s222 = scalar_lea.vmem %s5, %s221
      %s223 = smul.u32 32, %s17
      %p224 = scmp.lt.s32.totalorder %s223, 63
      %s225 = scalar_select %p224, %s223, 63
      %s226 = smul.addr %s225, 8
      %s227 = scalar_lea.vmem %s0, %s226
      %s228 = smul.u32 32, %s17
      %s229 = smul.u32 32, %s17
      %p230 = scmp.lt.s32.totalorder %s229, 63
      %s231 = scalar_select %p230, %s229, 63
      %s232 = smul.addr %s231, 8
      %s233 = scalar_lea.vmem %s4, %s232
      %s234 = smul.u32 32, %s17
      %p235 = scmp.lt.s32.totalorder %s17, 1
      %s236 = scalar_select %p235, %s17, 1
      %s237 = smul.addr %s236, 2
      %s238 = scalar_lea.vmem %s5, %s237
      %v240 = vld [vmem:[%s227] sm:$0xff]
      %v241 = vld [vmem:[%s227 + $0x8] sm:$0xff]
      %v242 = vld [vmem:[%s227 + $0x10] sm:$0xff]
      %v243 = vld [vmem:[%s227 + $0x18] sm:$0xff]
      %v244 = vld [vmem:[%s227 + $0x20] sm:$0xff]
      %v245 = vld [vmem:[%s227 + $0x28] sm:$0xff]
      %v246 = vld [vmem:[%s227 + $0x30] sm:$0xff]
      %v247 = vld [vmem:[%s227 + $0x38] sm:$0xff]
      %v248 = vld [vmem:[%s227 + $0x40] sm:$0xff]
      %v249 = vld [vmem:[%s227 + $0x48] sm:$0xff]
      %v250 = vld [vmem:[%s227 + $0x50] sm:$0xff]
      %v251 = vld [vmem:[%s227 + $0x58] sm:$0xff]
      %v252 = vld [vmem:[%s227 + $0x60] sm:$0xff]
      %v253 = vld [vmem:[%s227 + $0x68] sm:$0xff]
      %v254 = vld [vmem:[%s227 + $0x70] sm:$0xff]
      %v255 = vld [vmem:[%s227 + $0x78] sm:$0xff]
      %v256 = vld [vmem:[%s227 + $0x80] sm:$0xff]
      %v257 = vld [vmem:[%s227 + $0x88] sm:$0xff]
      %v258 = vld [vmem:[%s227 + $0x90] sm:$0xff]
      %v259 = vld [vmem:[%s227 + $0x98] sm:$0xff]
      %v260 = vld [vmem:[%s227 + $0xa0] sm:$0xff]
      %v261 = vld [vmem:[%s227 + $0xa8] sm:$0xff]
      %v262 = vld [vmem:[%s227 + $0xb0] sm:$0xff]
      %v263 = vld [vmem:[%s227 + $0xb8] sm:$0xff]
      %v264 = vld [vmem:[%s227 + $0xc0] sm:$0xff]
      %v265 = vld [vmem:[%s227 + $0xc8] sm:$0xff]
      %v266 = vld [vmem:[%s227 + $0xd0] sm:$0xff]
      %v267 = vld [vmem:[%s227 + $0xd8] sm:$0xff]
      %v268 = vld [vmem:[%s227 + $0xe0] sm:$0xff]
      %v269 = vld [vmem:[%s227 + $0xe8] sm:$0xff]
      %v270 = vld [vmem:[%s227 + $0xf0] sm:$0xff]
      %v271 = vld [vmem:[%s227 + $0xf8] sm:$0xff]
      %v272 = vld [vmem:[%s1] sm:$0x1]
      %v274 = vperm.slane %v272, 0
      %v276 = vmul.f32 %v240, %v274
      %v277 = vmul.f32 %v241, %v274
      %v278 = vmul.f32 %v242, %v274
      %v279 = vmul.f32 %v243, %v274
      %v280 = vmul.f32 %v244, %v274
      %v281 = vmul.f32 %v245, %v274
      %v282 = vmul.f32 %v246, %v274
      %v283 = vmul.f32 %v247, %v274
      %v284 = vmul.f32 %v248, %v274
      %v285 = vmul.f32 %v249, %v274
      %v286 = vmul.f32 %v250, %v274
      %v287 = vmul.f32 %v251, %v274
      %v288 = vmul.f32 %v252, %v274
      %v289 = vmul.f32 %v253, %v274
      %v290 = vmul.f32 %v254, %v274
      %v291 = vmul.f32 %v255, %v274
      %v292 = vmul.f32 %v256, %v274
      %v293 = vmul.f32 %v257, %v274
      %v294 = vmul.f32 %v258, %v274
      %v295 = vmul.f32 %v259, %v274
      %v296 = vmul.f32 %v260, %v274
      %v297 = vmul.f32 %v261, %v274
      %v298 = vmul.f32 %v262, %v274
      %v299 = vmul.f32 %v263, %v274
      %v300 = vmul.f32 %v264, %v274
      %v301 = vmul.f32 %v265, %v274
      %v302 = vmul.f32 %v266, %v274
      %v303 = vmul.f32 %v267, %v274
      %v304 = vmul.f32 %v268, %v274
      %v305 = vmul.f32 %v269, %v274
      %v306 = vmul.f32 %v270, %v274
      %v307 = vmul.f32 %v271, %v274
      %v308 = vld [vmem:[%s2] sm:$0x1]
      %v310 = vperm.slane %v308, 0
      %v312 = vadd.f32 %v276, %v310
      %v313 = vadd.f32 %v277, %v310
      %v314 = vadd.f32 %v278, %v310
      %v315 = vadd.f32 %v279, %v310
      %v316 = vadd.f32 %v280, %v310
      %v317 = vadd.f32 %v281, %v310
      %v318 = vadd.f32 %v282, %v310
      %v319 = vadd.f32 %v283, %v310
      %v320 = vadd.f32 %v284, %v310
      %v321 = vadd.f32 %v285, %v310
      %v322 = vadd.f32 %v286, %v310
      %v323 = vadd.f32 %v287, %v310
      %v324 = vadd.f32 %v288, %v310
      %v325 = vadd.f32 %v289, %v310
      %v326 = vadd.f32 %v290, %v310
      %v327 = vadd.f32 %v291, %v310
      %v328 = vadd.f32 %v292, %v310
      %v329 = vadd.f32 %v293, %v310
      %v330 = vadd.f32 %v294, %v310
      %v331 = vadd.f32 %v295, %v310
      %v332 = vadd.f32 %v296, %v310
      %v333 = vadd.f32 %v297, %v310
      %v334 = vadd.f32 %v298, %v310
      %v335 = vadd.f32 %v299, %v310
      %v336 = vadd.f32 %v300, %v310
      %v337 = vadd.f32 %v301, %v310
      %v338 = vadd.f32 %v302, %v310
      %v339 = vadd.f32 %v303, %v310
      %v340 = vadd.f32 %v304, %v310
      %v341 = vadd.f32 %v305, %v310
      %v342 = vadd.f32 %v306, %v310
      %v343 = vadd.f32 %v307, %v310
      %vm344 = vcmp.ge.f32.partialorder %v312, 0.0
      %vm345 = vcmp.ge.f32.partialorder %v313, 0.0
      %vm346 = vcmp.ge.f32.partialorder %v314, 0.0
      %vm347 = vcmp.ge.f32.partialorder %v315, 0.0
      %vm348 = vcmp.ge.f32.partialorder %v316, 0.0
      %vm349 = vcmp.ge.f32.partialorder %v317, 0.0
      %vm350 = vcmp.ge.f32.partialorder %v318, 0.0
      %vm351 = vcmp.ge.f32.partialorder %v319, 0.0
      %vm352 = vcmp.ge.f32.partialorder %v320, 0.0
      %vm353 = vcmp.ge.f32.partialorder %v321, 0.0
      %vm354 = vcmp.ge.f32.partialorder %v322, 0.0
      %vm355 = vcmp.ge.f32.partialorder %v323, 0.0
      %vm356 = vcmp.ge.f32.partialorder %v324, 0.0
      %vm357 = vcmp.ge.f32.partialorder %v325, 0.0
      %vm358 = vcmp.ge.f32.partialorder %v326, 0.0
      %vm359 = vcmp.ge.f32.partialorder %v327, 0.0
      %vm360 = vcmp.ge.f32.partialorder %v328, 0.0
      %vm361 = vcmp.ge.f32.partialorder %v329, 0.0
      %vm362 = vcmp.ge.f32.partialorder %v330, 0.0
      %vm363 = vcmp.ge.f32.partialorder %v331, 0.0
      %vm364 = vcmp.ge.f32.partialorder %v332, 0.0
      %vm365 = vcmp.ge.f32.partialorder %v333, 0.0
      %vm366 = vcmp.ge.f32.partialorder %v334, 0.0
      %vm367 = vcmp.ge.f32.partialorder %v335, 0.0
      %vm368 = vcmp.ge.f32.partialorder %v336, 0.0
      %vm369 = vcmp.ge.f32.partialorder %v337, 0.0
      %vm370 = vcmp.ge.f32.partialorder %v338, 0.0
      %vm371 = vcmp.ge.f32.partialorder %v339, 0.0
      %vm372 = vcmp.ge.f32.partialorder %v340, 0.0
      %vm373 = vcmp.ge.f32.partialorder %v341, 0.0
      %vm374 = vcmp.ge.f32.partialorder %v342, 0.0
      %vm375 = vcmp.ge.f32.partialorder %v343, 0.0
      %v376 = vmul.f32 %v312, 0.01
      %v377 = vmul.f32 %v313, 0.01
      %v378 = vmul.f32 %v314, 0.01
      %v379 = vmul.f32 %v315, 0.01
      %v380 = vmul.f32 %v316, 0.01
      %v381 = vmul.f32 %v317, 0.01
      %v382 = vmul.f32 %v318, 0.01
      %v383 = vmul.f32 %v319, 0.01
      %v384 = vmul.f32 %v320, 0.01
      %v385 = vmul.f32 %v321, 0.01
      %v386 = vmul.f32 %v322, 0.01
      %v387 = vmul.f32 %v323, 0.01
      %v388 = vmul.f32 %v324, 0.01
      %v389 = vmul.f32 %v325, 0.01
      %v390 = vmul.f32 %v326, 0.01
      %v391 = vmul.f32 %v327, 0.01
      %v392 = vmul.f32 %v328, 0.01
      %v393 = vmul.f32 %v329, 0.01
      %v394 = vmul.f32 %v330, 0.01
      %v395 = vmul.f32 %v331, 0.01
      %v396 = vmul.f32 %v332, 0.01
      %v397 = vmul.f32 %v333, 0.01
      %v398 = vmul.f32 %v334, 0.01
      %v399 = vmul.f32 %v335, 0.01
      %v400 = vmul.f32 %v336, 0.01
      %v401 = vmul.f32 %v337, 0.01
      %v402 = vmul.f32 %v338, 0.01
      %v403 = vmul.f32 %v339, 0.01
      %v404 = vmul.f32 %v340, 0.01
      %v405 = vmul.f32 %v341, 0.01
      %v406 = vmul.f32 %v342, 0.01
      %v407 = vmul.f32 %v343, 0.01
      %v408 = vsel %vm344, %v312, %v376
      %v409 = vsel %vm345, %v313, %v377
      %v410 = vsel %vm346, %v314, %v378
      %v411 = vsel %vm347, %v315, %v379
      %v412 = vsel %vm348, %v316, %v380
      %v413 = vsel %vm349, %v317, %v381
      %v414 = vsel %vm350, %v318, %v382
      %v415 = vsel %vm351, %v319, %v383
      %v416 = vsel %vm352, %v320, %v384
      %v417 = vsel %vm353, %v321, %v385
      %v418 = vsel %vm354, %v322, %v386
      %v419 = vsel %vm355, %v323, %v387
      %v420 = vsel %vm356, %v324, %v388
      %v421 = vsel %vm357, %v325, %v389
      %v422 = vsel %vm358, %v326, %v390
      %v423 = vsel %vm359, %v327, %v391
      %v424 = vsel %vm360, %v328, %v392
      %v425 = vsel %vm361, %v329, %v393
      %v426 = vsel %vm362, %v330, %v394
      %v427 = vsel %vm363, %v331, %v395
      %v428 = vsel %vm364, %v332, %v396
      %v429 = vsel %vm365, %v333, %v397
      %v430 = vsel %vm366, %v334, %v398
      %v431 = vsel %vm367, %v335, %v399
      %v432 = vsel %vm368, %v336, %v400
      %v433 = vsel %vm369, %v337, %v401
      %v434 = vsel %vm370, %v338, %v402
      %v435 = vsel %vm371, %v339, %v403
      %v436 = vsel %vm372, %v340, %v404
      %v437 = vsel %vm373, %v341, %v405
      %v438 = vsel %vm374, %v342, %v406
      %v439 = vsel %vm375, %v343, %v407
      %v440 = vpack.c.bf16 %v409, %v408
      %v441 = vpack.c.bf16 %v411, %v410
      %v442 = vpack.c.bf16 %v413, %v412
      %v443 = vpack.c.bf16 %v415, %v414
      %v444 = vpack.c.bf16 %v417, %v416
      %v445 = vpack.c.bf16 %v419, %v418
      %v446 = vpack.c.bf16 %v421, %v420
      %v447 = vpack.c.bf16 %v423, %v422
      %v448 = vpack.c.bf16 %v425, %v424
      %v449 = vpack.c.bf16 %v427, %v426
      %v450 = vpack.c.bf16 %v429, %v428
      %v451 = vpack.c.bf16 %v431, %v430
      %v452 = vpack.c.bf16 %v433, %v432
      %v453 = vpack.c.bf16 %v435, %v434
      %v454 = vpack.c.bf16 %v437, %v436
      %v455 = vpack.c.bf16 %v439, %v438
      %v456 = vld [vmem:[%s3] sm:$0xf]
      %v457 = vld [vmem:[%s3 + $0x4] sm:$0xf]
      %v458 = vld [vmem:[%s3 + $0x8] sm:$0xf]
      %v459 = vld [vmem:[%s3 + $0xc] sm:$0xf]
      %v460 = vld [vmem:[%s3 + $0x10] sm:$0xf]
      %v461 = vld [vmem:[%s3 + $0x14] sm:$0xf]
      %v462 = vld [vmem:[%s3 + $0x18] sm:$0xf]
      %v463 = vld [vmem:[%s3 + $0x1c] sm:$0xf]
      %v472 = vunpack.c.l.b16 %v456
      %v473 = vunpack.c.l.b16 %v457
      %v474 = vunpack.c.l.b16 %v458
      %v475 = vunpack.c.l.b16 %v459
      %v476 = vunpack.c.l.b16 %v460
      %v477 = vunpack.c.l.b16 %v461
      %v478 = vunpack.c.l.b16 %v462
      %v479 = vunpack.c.l.b16 %v463
      %v480 = vpack.c.b16 %v473, %v472
      %v481 = vpack.c.b16 %v475, %v474
      %v482 = vpack.c.b16 %v477, %v476
      %v483 = vpack.c.b16 %v479, %v478
      %vm488 = vcmask 523264
      %v490 = vsel %vm488, %v440, 0
      %v493 = vsel %vm488, %v441, 0
      %v496 = vsel %vm488, %v442, 0
      %v499 = vsel %vm488, %v443, 0
      %v502 = vsel %vm488, %v444, 0
      %v505 = vsel %vm488, %v445, 0
      %v508 = vsel %vm488, %v446, 0
      %v511 = vsel %vm488, %v447, 0
      %v514 = vsel %vm488, %v448, 0
      %v517 = vsel %vm488, %v449, 0
      %v520 = vsel %vm488, %v450, 0
      %v523 = vsel %vm488, %v451, 0
      %v526 = vsel %vm488, %v452, 0
      %v529 = vsel %vm488, %v453, 0
      %v532 = vsel %vm488, %v454, 0
      %v535 = vsel %vm488, %v455, 0
      %537 = vmatpush.bf16.msra.mxu0 0
      %538 = vmatpush.bf16.msra.mxu0 0
      %539 = vmatpush.bf16.msra.mxu0 0
      %540 = vmatpush.bf16.msra.mxu0 0
      %541 = vmatpush.bf16.msra.mxu0 %v483
      %542 = vmatpush.bf16.msra.mxu0 %v482
      %543 = vmatpush.bf16.msra.mxu0 %v481
      %544 = vmatpush.bf16.msra.mxu0 %v480
      %545 = vmatmul.bf16.gmra.mxu0 %v490
      %v546 = vpop.f32.mrf.mxu0
      %v547 = vadd.f32 0.0, %v546
      %v548 = vpop.f32.mrf.mxu0
      %v549 = vadd.f32 0.0, %v548
      %550 = vmatmul.bf16.gmra.mxu0 %v493
      %v551 = vpop.f32.mrf.mxu0
      %v552 = vadd.f32 0.0, %v551
      %v553 = vpop.f32.mrf.mxu0
      %v554 = vadd.f32 0.0, %v553
      %555 = vmatmul.bf16.gmra.mxu0 %v496
      %v556 = vpop.f32.mrf.mxu0
      %v557 = vadd.f32 0.0, %v556
      %v558 = vpop.f32.mrf.mxu0
      %v559 = vadd.f32 0.0, %v558
      %560 = vmatmul.bf16.gmra.mxu0 %v499
      %v561 = vpop.f32.mrf.mxu0
      %v562 = vadd.f32 0.0, %v561
      %v563 = vpop.f32.mrf.mxu0
      %v564 = vadd.f32 0.0, %v563
      %565 = vmatmul.bf16.gmra.mxu0 %v502
      %v566 = vpop.f32.mrf.mxu0
      %v567 = vadd.f32 0.0, %v566
      %v568 = vpop.f32.mrf.mxu0
      %v569 = vadd.f32 0.0, %v568
      %570 = vmatmul.bf16.gmra.mxu0 %v505
      %v571 = vpop.f32.mrf.mxu0
      %v572 = vadd.f32 0.0, %v571
      %v573 = vpop.f32.mrf.mxu0
      %v574 = vadd.f32 0.0, %v573
      %575 = vmatmul.bf16.gmra.mxu0 %v508
      %v576 = vpop.f32.mrf.mxu0
      %v577 = vadd.f32 0.0, %v576
      %v578 = vpop.f32.mrf.mxu0
      %v579 = vadd.f32 0.0, %v578
      %580 = vmatmul.bf16.gmra.mxu0 %v511
      %v581 = vpop.f32.mrf.mxu0
      %v582 = vadd.f32 0.0, %v581
      %v583 = vpop.f32.mrf.mxu0
      %v584 = vadd.f32 0.0, %v583
      %585 = vmatmul.bf16.gmra.mxu0 %v514
      %v586 = vpop.f32.mrf.mxu0
      %v587 = vadd.f32 0.0, %v586
      %v588 = vpop.f32.mrf.mxu0
      %v589 = vadd.f32 0.0, %v588
      %590 = vmatmul.bf16.gmra.mxu0 %v517
      %v591 = vpop.f32.mrf.mxu0
      %v592 = vadd.f32 0.0, %v591
      %v593 = vpop.f32.mrf.mxu0
      %v594 = vadd.f32 0.0, %v593
      %595 = vmatmul.bf16.gmra.mxu0 %v520
      %v596 = vpop.f32.mrf.mxu0
      %v597 = vadd.f32 0.0, %v596
      %v598 = vpop.f32.mrf.mxu0
      %v599 = vadd.f32 0.0, %v598
      %600 = vmatmul.bf16.gmra.mxu0 %v523
      %v601 = vpop.f32.mrf.mxu0
      %v602 = vadd.f32 0.0, %v601
      %v603 = vpop.f32.mrf.mxu0
      %v604 = vadd.f32 0.0, %v603
      %605 = vmatmul.bf16.gmra.mxu0 %v526
      %v606 = vpop.f32.mrf.mxu0
      %v607 = vadd.f32 0.0, %v606
      %v608 = vpop.f32.mrf.mxu0
      %v609 = vadd.f32 0.0, %v608
      %610 = vmatmul.bf16.gmra.mxu0 %v529
      %v611 = vpop.f32.mrf.mxu0
      %v612 = vadd.f32 0.0, %v611
      %v613 = vpop.f32.mrf.mxu0
      %v614 = vadd.f32 0.0, %v613
      %615 = vmatmul.bf16.gmra.mxu0 %v532
      %v616 = vpop.f32.mrf.mxu0
      %v617 = vadd.f32 0.0, %v616
      %v618 = vpop.f32.mrf.mxu0
      %v619 = vadd.f32 0.0, %v618
      %620 = vmatmul.bf16.gmra.mxu0 %v535
      %v621 = vpop.f32.mrf.mxu0
      %v622 = vadd.f32 0.0, %v621
      %v623 = vpop.f32.mrf.mxu0
      %v624 = vadd.f32 0.0, %v623
      %625 = vdwg.mxu0
      %626 = vst.msk [vmem:[%s233] sm:$0xff] %vm488, %v547
      %627 = vst.msk [vmem:[%s233 + $0x8] sm:$0xff] %vm488, %v549
      %628 = vst.msk [vmem:[%s233 + $0x10] sm:$0xff] %vm488, %v552
      %629 = vst.msk [vmem:[%s233 + $0x18] sm:$0xff] %vm488, %v554
      %630 = vst.msk [vmem:[%s233 + $0x20] sm:$0xff] %vm488, %v557
      %631 = vst.msk [vmem:[%s233 + $0x28] sm:$0xff] %vm488, %v559
      %632 = vst.msk [vmem:[%s233 + $0x30] sm:$0xff] %vm488, %v562
      %633 = vst.msk [vmem:[%s233 + $0x38] sm:$0xff] %vm488, %v564
      %634 = vst.msk [vmem:[%s233 + $0x40] sm:$0xff] %vm488, %v567
      %635 = vst.msk [vmem:[%s233 + $0x48] sm:$0xff] %vm488, %v569
      %636 = vst.msk [vmem:[%s233 + $0x50] sm:$0xff] %vm488, %v572
      %637 = vst.msk [vmem:[%s233 + $0x58] sm:$0xff] %vm488, %v574
      %638 = vst.msk [vmem:[%s233 + $0x60] sm:$0xff] %vm488, %v577
      %639 = vst.msk [vmem:[%s233 + $0x68] sm:$0xff] %vm488, %v579
      %640 = vst.msk [vmem:[%s233 + $0x70] sm:$0xff] %vm488, %v582
      %641 = vst.msk [vmem:[%s233 + $0x78] sm:$0xff] %vm488, %v584
      %642 = vst.msk [vmem:[%s233 + $0x80] sm:$0xff] %vm488, %v587
      %643 = vst.msk [vmem:[%s233 + $0x88] sm:$0xff] %vm488, %v589
      %644 = vst.msk [vmem:[%s233 + $0x90] sm:$0xff] %vm488, %v592
      %645 = vst.msk [vmem:[%s233 + $0x98] sm:$0xff] %vm488, %v594
      %646 = vst.msk [vmem:[%s233 + $0xa0] sm:$0xff] %vm488, %v597
      %647 = vst.msk [vmem:[%s233 + $0xa8] sm:$0xff] %vm488, %v599
      %648 = vst.msk [vmem:[%s233 + $0xb0] sm:$0xff] %vm488, %v602
      %649 = vst.msk [vmem:[%s233 + $0xb8] sm:$0xff] %vm488, %v604
      %650 = vst.msk [vmem:[%s233 + $0xc0] sm:$0xff] %vm488, %v607
      %651 = vst.msk [vmem:[%s233 + $0xc8] sm:$0xff] %vm488, %v609
      %652 = vst.msk [vmem:[%s233 + $0xd0] sm:$0xff] %vm488, %v612
      %653 = vst.msk [vmem:[%s233 + $0xd8] sm:$0xff] %vm488, %v614
      %654 = vst.msk [vmem:[%s233 + $0xe0] sm:$0xff] %vm488, %v617
      %655 = vst.msk [vmem:[%s233 + $0xe8] sm:$0xff] %vm488, %v619
      %656 = vst.msk [vmem:[%s233 + $0xf0] sm:$0xff] %vm488, %v622
      %657 = vst.msk [vmem:[%s233 + $0xf8] sm:$0xff] %vm488, %v624
      %v658 = vsel %vm488, %v547, 0.0
      %v659 = vsel %vm488, %v549, 0.0
      %v660 = vadd.f32 %v658, %v659
      %v661 = vsel %vm488, %v552, 0.0
      %v662 = vadd.f32 %v660, %v661
      %v663 = vsel %vm488, %v554, 0.0
      %v664 = vadd.f32 %v662, %v663
      %v665 = vsel %vm488, %v557, 0.0
      %v666 = vadd.f32 %v664, %v665
      %v667 = vsel %vm488, %v559, 0.0
      %v668 = vadd.f32 %v666, %v667
      %v669 = vsel %vm488, %v562, 0.0
      %v670 = vadd.f32 %v668, %v669
      %v671 = vsel %vm488, %v564, 0.0
      %v672 = vadd.f32 %v670, %v671
      %v673 = vsel %vm488, %v567, 0.0
      %v674 = vadd.f32 %v672, %v673
      %v675 = vsel %vm488, %v569, 0.0
      %v676 = vadd.f32 %v674, %v675
      %v677 = vsel %vm488, %v572, 0.0
      %v678 = vadd.f32 %v676, %v677
      %v679 = vsel %vm488, %v574, 0.0
      %v680 = vadd.f32 %v678, %v679
      %v681 = vsel %vm488, %v577, 0.0
      %v682 = vadd.f32 %v680, %v681
      %v683 = vsel %vm488, %v579, 0.0
      %v684 = vadd.f32 %v682, %v683
      %v685 = vsel %vm488, %v582, 0.0
      %v686 = vadd.f32 %v684, %v685
      %v687 = vsel %vm488, %v584, 0.0
      %v688 = vadd.f32 %v686, %v687
      %v689 = vsel %vm488, %v587, 0.0
      %v690 = vadd.f32 %v688, %v689
      %v691 = vsel %vm488, %v589, 0.0
      %v692 = vadd.f32 %v690, %v691
      %v693 = vsel %vm488, %v592, 0.0
      %v694 = vadd.f32 %v692, %v693
      %v695 = vsel %vm488, %v594, 0.0
      %v696 = vadd.f32 %v694, %v695
      %v697 = vsel %vm488, %v597, 0.0
      %v698 = vadd.f32 %v696, %v697
      %v699 = vsel %vm488, %v599, 0.0
      %v700 = vadd.f32 %v698, %v699
      %v701 = vsel %vm488, %v602, 0.0
      %v702 = vadd.f32 %v700, %v701
      %v703 = vsel %vm488, %v604, 0.0
      %v704 = vadd.f32 %v702, %v703
      %v705 = vsel %vm488, %v607, 0.0
      %v706 = vadd.f32 %v704, %v705
      %v707 = vsel %vm488, %v609, 0.0
      %v708 = vadd.f32 %v706, %v707
      %v709 = vsel %vm488, %v612, 0.0
      %v710 = vadd.f32 %v708, %v709
      %v711 = vsel %vm488, %v614, 0.0
      %v712 = vadd.f32 %v710, %v711
      %v713 = vsel %vm488, %v617, 0.0
      %v714 = vadd.f32 %v712, %v713
      %v715 = vsel %vm488, %v619, 0.0
      %v716 = vadd.f32 %v714, %v715
      %v717 = vsel %vm488, %v622, 0.0
      %v718 = vadd.f32 %v716, %v717
      %v719 = vsel %vm488, %v624, 0.0
      %v720 = vadd.f32 %v718, %v719
      %v721 = vrot.slane %v720, 4
      %v722 = vadd.f32 %v720, %v721
      %v723 = vrot.slane %v722, 2
      %v724 = vadd.f32 %v722, %v723
      %v725 = vrot.slane %v724, 1
      %v726 = vadd.f32 %v724, %v725
      %v727 = vmul.f32 %v547, %v547
      %v728 = vmul.f32 %v549, %v549
      %v729 = vmul.f32 %v552, %v552
      %v730 = vmul.f32 %v554, %v554
      %v731 = vmul.f32 %v557, %v557
      %v732 = vmul.f32 %v559, %v559
      %v733 = vmul.f32 %v562, %v562
      %v734 = vmul.f32 %v564, %v564
      %v735 = vmul.f32 %v567, %v567
      %v736 = vmul.f32 %v569, %v569
      %v737 = vmul.f32 %v572, %v572
      %v738 = vmul.f32 %v574, %v574
      %v739 = vmul.f32 %v577, %v577
      %v740 = vmul.f32 %v579, %v579
      %v741 = vmul.f32 %v582, %v582
      %v742 = vmul.f32 %v584, %v584
      %v743 = vmul.f32 %v587, %v587
      %v744 = vmul.f32 %v589, %v589
      %v745 = vmul.f32 %v592, %v592
      %v746 = vmul.f32 %v594, %v594
      %v747 = vmul.f32 %v597, %v597
      %v748 = vmul.f32 %v599, %v599
      %v749 = vmul.f32 %v602, %v602
      %v750 = vmul.f32 %v604, %v604
      %v751 = vmul.f32 %v607, %v607
      %v752 = vmul.f32 %v609, %v609
      %v753 = vmul.f32 %v612, %v612
      %v754 = vmul.f32 %v614, %v614
      %v755 = vmul.f32 %v617, %v617
      %v756 = vmul.f32 %v619, %v619
      %v757 = vmul.f32 %v622, %v622
      %v758 = vmul.f32 %v624, %v624
      %v759 = vsel %vm488, %v727, 0.0
      %v760 = vsel %vm488, %v728, 0.0
      %v761 = vadd.f32 %v759, %v760
      %v762 = vsel %vm488, %v729, 0.0
      %v763 = vadd.f32 %v761, %v762
      %v764 = vsel %vm488, %v730, 0.0
      %v765 = vadd.f32 %v763, %v764
      %v766 = vsel %vm488, %v731, 0.0
      %v767 = vadd.f32 %v765, %v766
      %v768 = vsel %vm488, %v732, 0.0
      %v769 = vadd.f32 %v767, %v768
      %v770 = vsel %vm488, %v733, 0.0
      %v771 = vadd.f32 %v769, %v770
      %v772 = vsel %vm488, %v734, 0.0
      %v773 = vadd.f32 %v771, %v772
      %v774 = vsel %vm488, %v735, 0.0
      %v775 = vadd.f32 %v773, %v774
      %v776 = vsel %vm488, %v736, 0.0
      %v777 = vadd.f32 %v775, %v776
      %v778 = vsel %vm488, %v737, 0.0
      %v779 = vadd.f32 %v777, %v778
      %v780 = vsel %vm488, %v738, 0.0
      %v781 = vadd.f32 %v779, %v780
      %v782 = vsel %vm488, %v739, 0.0
      %v783 = vadd.f32 %v781, %v782
      %v784 = vsel %vm488, %v740, 0.0
      %v785 = vadd.f32 %v783, %v784
      %v786 = vsel %vm488, %v741, 0.0
      %v787 = vadd.f32 %v785, %v786
      %v788 = vsel %vm488, %v742, 0.0
      %v789 = vadd.f32 %v787, %v788
      %v790 = vsel %vm488, %v743, 0.0
      %v791 = vadd.f32 %v789, %v790
      %v792 = vsel %vm488, %v744, 0.0
      %v793 = vadd.f32 %v791, %v792
      %v794 = vsel %vm488, %v745, 0.0
      %v795 = vadd.f32 %v793, %v794
      %v796 = vsel %vm488, %v746, 0.0
      %v797 = vadd.f32 %v795, %v796
      %v798 = vsel %vm488, %v747, 0.0
      %v799 = vadd.f32 %v797, %v798
      %v800 = vsel %vm488, %v748, 0.0
      %v801 = vadd.f32 %v799, %v800
      %v802 = vsel %vm488, %v749, 0.0
      %v803 = vadd.f32 %v801, %v802
      %v804 = vsel %vm488, %v750, 0.0
      %v805 = vadd.f32 %v803, %v804
      %v806 = vsel %vm488, %v751, 0.0
      %v807 = vadd.f32 %v805, %v806
      %v808 = vsel %vm488, %v752, 0.0
      %v809 = vadd.f32 %v807, %v808
      %v810 = vsel %vm488, %v753, 0.0
      %v811 = vadd.f32 %v809, %v810
      %v812 = vsel %vm488, %v754, 0.0
      %v813 = vadd.f32 %v811, %v812
      %v814 = vsel %vm488, %v755, 0.0
      %v815 = vadd.f32 %v813, %v814
      %v816 = vsel %vm488, %v756, 0.0
      %v817 = vadd.f32 %v815, %v816
      %v818 = vsel %vm488, %v757, 0.0
      %v819 = vadd.f32 %v817, %v818
      %v820 = vsel %vm488, %v758, 0.0
      %v821 = vadd.f32 %v819, %v820
      %v822 = vrot.slane %v821, 4
      %v823 = vadd.f32 %v821, %v822
      %v824 = vrot.slane %v823, 2
      %v825 = vadd.f32 %v823, %v824
      %v826 = vrot.slane %v825, 1
      %v827 = vadd.f32 %v825, %v826
      %vm828 = vcmask 1040384
      %v829 = vsel %vm828, %v726, %v827
      %vm830 = vcmask 517120
      %831 = vst.msk [vmem:[%s238] sm:$0x3] %vm830, %v829
      %s832 = smul.u32 32, %s17
      %p833 = scmp.lt.s32.totalorder %s832, 63
      %s834 = scalar_select %p833, %s832, 63
      %s835 = smul.addr %s834, 8
      %s836 = scalar_lea.vmem %s4, %s835
      %p837 = scmp.lt.s32.totalorder %s17, 1
      %s838 = scalar_select %p837, %s17, 1
      %s839 = smul.addr %s838, 2
      %s840 = scalar_lea.vmem %s5, %s839
      // Predicated region
      $region37: #{bottleneckx_forward.6} parent=35 // pred_check
        %p841 = pneg %p124
      $region38: #{bottleneckx_forward.6} parent=35 // pred_check_branch
        %843 = sbr.rel (%p841) target = $region40
      $region39: #{bottleneckx_forward.6} parent=35 // pred_region
        %s844 = smul.u32 32, %s17
      $region40: #{bottleneckx_forward.6} parent=35 // pred_fallthru
        _
      // Predicated region
      $region41: #{bottleneckx_forward.6} parent=35 // pred_check
        %p845 = pneg %p150
      $region42: #{bottleneckx_forward.6} parent=35 // pred_check_branch
        %847 = sbr.rel (%p845) target = $region44
      $region43: #{bottleneckx_forward.6} parent=35 // pred_region
        _
      $region44: #{bottleneckx_forward.6} parent=35 // pred_fallthru
        _
    $region36: #{bottleneckx_forward.6} parent=5 // pred_fallthru
      _
    %p848 = scmp.le.s32.totalorder 2, %s12
    // Predicated region
    $region45: #{bottleneckx_forward.6} parent=5 // pred_check
      %p849 = pneg %p848
    $region46: #{bottleneckx_forward.6} parent=5 // pred_check_branch
      %851 = sbr.rel (%p849) target = $region48
    $region47: #{bottleneckx_forward.6} parent=5 // pred_region
      %s852 = ssub.s32 %s12, 2
      // Predicated region
      $region49: #{bottleneckx_forward.6} parent=47 // pred_check
        %p853 = pneg %p130
      $region50: #{bottleneckx_forward.6} parent=47 // pred_check_branch
        %855 = sbr.rel (%p853) target = $region52
      $region51: #{bottleneckx_forward.6} parent=47 // pred_region
        %s856 = smul.u32 32, %s18
        %p857 = scmp.lt.s32.totalorder %s856, 63
        %s858 = scalar_select %p857, %s856, 63
        %s859 = smul.addr %s858, 8
        %s860 = scalar_lea.vmem %s4, %s859
      $region52: #{bottleneckx_forward.6} parent=47 // pred_fallthru
        _
      // Predicated region
      $region53: #{bottleneckx_forward.6} parent=47 // pred_check
        %p861 = pneg %p156
      $region54: #{bottleneckx_forward.6} parent=47 // pred_check_branch
        %863 = sbr.rel (%p861) target = $region56
      $region55: #{bottleneckx_forward.6} parent=47 // pred_region
        %p864 = scmp.lt.s32.totalorder %s18, 1
        %s865 = scalar_select %p864, %s18, 1
        %s866 = smul.addr %s865, 2
        %s867 = scalar_lea.vmem %s5, %s866
      $region56: #{bottleneckx_forward.6} parent=47 // pred_fallthru
        _
    $region48: #{bottleneckx_forward.6} parent=5 // pred_fallthru
      _
  $region6: #{bottleneckx_forward.6} parent=0 // loop_footer
    %s16 = sadd.s32 1, %s12
  $region7: #{bottleneckx_forward.6} parent=0 // loop_footer_branch
    %11 = sbr.rel target = $region3
  $region8: #{bottleneckx_forward.6} parent=0 // loop_exit
    _

// kernel: bottleneckx_forward.7
$region0: #{bottleneckx_forward.7}
  #allocation0 [shape = 'u32[]', space=smem, size = 0x4, offset = 0x4, fixed_abs, tag = 'smem constant byte address 0x4 - core index']
  #allocation1 [shape = 'u32[72,128]{1,0:T(1,128)}', space=vmem, size = 0x9000, scoped, tag = 'internal scratch']
  %s0 = inlined_call_operand.vmem [shape: f32[32,1024], index: 0, kind: input, shape index: {}]
  %s1 = inlined_call_operand.vmem [shape: f32[32,1024], index: 1, kind: input, shape index: {}]
  %s2 = inlined_call_operand.vmem [shape: f32[1,1024], index: 2, kind: input, shape index: {}]
  %s3 = inlined_call_operand.vmem [shape: f32[1,1024], index: 3, kind: input, shape index: {}]
  %s4 = inlined_call_operand.vmem [shape: f32[32,1024], index: 4, kind: output, shape index: {}]
  %s5 = sld [smem:[#allocation0]]
  $region49: #{bottleneckx_forward.7} parent=0
    _
  %s7 = ssub.s32 1, %s5
  %s8 = scalar_select 0, %s7, %s5
  loop: start=0, step=1, limit=4
  $region2: #{bottleneckx_forward.7} parent=0 // loop_pre_header
    _
  $region3: #{bottleneckx_forward.7} parent=0 // loop_header
    %s10 = sphi 0, %s14
    %p11 = scmp.ge.s32.totalorder %s10, 4
    %s20 = sphi 0, %s22
    %s23 = sphi 0, %s20
    %s24 = sphi 0, %s23
    %s40 = sphi 0, %s24
    %s46 = sphi 0, %s48
    %s49 = sphi 0, %s46
    %s50 = sphi 0, %s49
    %s66 = sphi 0, %s50
    %s70 = sphi 0, %s70
    %s72 = sphi 0, %s70
    %s73 = sphi 0, %s72
    %s87 = sphi 0, %s73
    %s91 = sphi 0, %s91
    %s93 = sphi 0, %s91
    %s94 = sphi 0, %s93
    %s108 = sphi 0, %s94
    %s114 = sphi 0, %s116
    %s117 = sphi 0, %s114
    %s118 = sphi 0, %s117
    %s134 = sphi 0, %s118
  $region4: #{bottleneckx_forward.7} parent=0 // loop_header_branch
    %13 = sbr.rel (%p11) target = $region8
  $region5: #{bottleneckx_forward.7} parent=0 // loop_body
    %s15 = ssub.s32 %s10, 1
    %s16 = ssub.s32 %s10, 2
    %s17 = sadd.s32 %s10, 1
    %s18 = ssub.s32 %s10, %s17
    %p19 = scmp.eq.s32.totalorder %s18, 0
    %s21 = sadd.s32 %s20, 1
    %s22 = scalar_select %p19, %s20, %s21
    %p25 = pneg %p19
    %p26 = scmp.eq.s32.totalorder %s10, 1
    %p27 = por %p25, %p26
    %p28 = scmp.ne.s32.totalorder %s20, %s23
    %p29 = scmp.eq.s32.totalorder %s10, 0
    %p30 = por %p28, %p29
    %p31 = scmp.ne.s32.totalorder %s20, %s23
    %p32 = scmp.eq.s32.totalorder %s15, 1
    %p33 = por %p31, %p32
    %p34 = scmp.ne.s32.totalorder %s23, %s24
    %p35 = scmp.eq.s32.totalorder %s15, 0
    %p36 = por %p34, %p35
    %p37 = scmp.ne.s32.totalorder %s23, %s24
    %p38 = scmp.eq.s32.totalorder %s16, 1
    %p39 = por %p37, %p38
    %p41 = scmp.ne.s32.totalorder %s24, %s40
    %p42 = scmp.eq.s32.totalorder %s16, 0
    %p43 = por %p41, %p42
    %s44 = ssub.s32 %s10, %s17
    %p45 = scmp.eq.s32.totalorder %s44, 0
    %s47 = sadd.s32 %s46, 1
    %s48 = scalar_select %p45, %s46, %s47
    %p51 = pneg %p45
    %p52 = scmp.eq.s32.totalorder %s10, 1
    %p53 = por %p51, %p52
    %p54 = scmp.ne.s32.totalorder %s46, %s49
    %p55 = scmp.eq.s32.totalorder %s10, 0
    %p56 = por %p54, %p55
    %p57 = scmp.ne.s32.totalorder %s46, %s49
    %p58 = scmp.eq.s32.totalorder %s15, 1
    %p59 = por %p57, %p58
    %p60 = scmp.ne.s32.totalorder %s49, %s50
    %p61 = scmp.eq.s32.totalorder %s15, 0
    %p62 = por %p60, %p61
    %p63 = scmp.ne.s32.totalorder %s49, %s50
    %p64 = scmp.eq.s32.totalorder %s16, 1
    %p65 = por %p63, %p64
    %p67 = scmp.ne.s32.totalorder %s50, %s66
    %p68 = scmp.eq.s32.totalorder %s16, 0
    %p69 = por %p67, %p68
    %s71 = sadd.s32 %s70, 1
    %p74 = scmp.eq.s32.totalorder %s10, 1
    %p75 = scmp.ne.s32.totalorder %s70, %s72
    %p76 = scmp.eq.s32.totalorder %s10, 0
    %p77 = por %p75, %p76
    %p78 = scmp.ne.s32.totalorder %s70, %s72
    %p79 = scmp.eq.s32.totalorder %s15, 1
    %p80 = por %p78, %p79
    %p81 = scmp.ne.s32.totalorder %s72, %s73
    %p82 = scmp.eq.s32.totalorder %s15, 0
    %p83 = por %p81, %p82
    %p84 = scmp.ne.s32.totalorder %s72, %s73
    %p85 = scmp.eq.s32.totalorder %s16, 1
    %p86 = por %p84, %p85
    %p88 = scmp.ne.s32.totalorder %s73, %s87
    %p89 = scmp.eq.s32.totalorder %s16, 0
    %p90 = por %p88, %p89
    %s92 = sadd.s32 %s91, 1
    %p95 = scmp.eq.s32.totalorder %s10, 1
    %p96 = scmp.ne.s32.totalorder %s91, %s93
    %p97 = scmp.eq.s32.totalorder %s10, 0
    %p98 = por %p96, %p97
    %p99 = scmp.ne.s32.totalorder %s91, %s93
    %p100 = scmp.eq.s32.totalorder %s15, 1
    %p101 = por %p99, %p100
    %p102 = scmp.ne.s32.totalorder %s93, %s94
    %p103 = scmp.eq.s32.totalorder %s15, 0
    %p104 = por %p102, %p103
    %p105 = scmp.ne.s32.totalorder %s93, %s94
    %p106 = scmp.eq.s32.totalorder %s16, 1
    %p107 = por %p105, %p106
    %p109 = scmp.ne.s32.totalorder %s94, %s108
    %p110 = scmp.eq.s32.totalorder %s16, 0
    %p111 = por %p109, %p110
    %s112 = ssub.s32 %s10, %s17
    %p113 = scmp.eq.s32.totalorder %s112, 0
    %s115 = sadd.s32 %s114, 1
    %s116 = scalar_select %p113, %s114, %s115
    %p119 = pneg %p113
    %p120 = scmp.eq.s32.totalorder %s10, 1
    %p121 = por %p119, %p120
    %p122 = scmp.ne.s32.totalorder %s114, %s117
    %p123 = scmp.eq.s32.totalorder %s10, 0
    %p124 = por %p122, %p123
    %p125 = scmp.ne.s32.totalorder %s114, %s117
    %p126 = scmp.eq.s32.totalorder %s15, 1
    %p127 = por %p125, %p126
    %p128 = scmp.ne.s32.totalorder %s117, %s118
    %p129 = scmp.eq.s32.totalorder %s15, 0
    %p130 = por %p128, %p129
    %p131 = scmp.ne.s32.totalorder %s117, %s118
    %p132 = scmp.eq.s32.totalorder %s16, 1
    %p133 = por %p131, %p132
    %p135 = scmp.ne.s32.totalorder %s118, %s134
    %p136 = scmp.eq.s32.totalorder %s16, 0
    %p137 = por %p135, %p136
    %p138 = scmp.le.s32.totalorder 1, %s10
    %p139 = scmp.lt.s32.totalorder %s10, 3
    %p140 = pnand %p138, %p139
    %p141 = pneg %p140
    // Predicated region
    $region9: #{bottleneckx_forward.7} parent=5 // pred_check
      _
    $region10: #{bottleneckx_forward.7} parent=5 // pred_check_branch
      %143 = sbr.rel (%p140) target = $region12
    $region11: #{bottleneckx_forward.7} parent=5 // pred_region
      %s144 = ssub.s32 %s10, 1
      // Predicated region
      $region13: #{bottleneckx_forward.7} parent=11 // pred_check
        %p145 = pneg %p83
      $region14: #{bottleneckx_forward.7} parent=11 // pred_check_branch
        %147 = sbr.rel (%p145) target = $region16
      $region15: #{bottleneckx_forward.7} parent=11 // pred_region
        _
      $region16: #{bottleneckx_forward.7} parent=11 // pred_fallthru
        _
      // Predicated region
      $region17: #{bottleneckx_forward.7} parent=11 // pred_check
        %p148 = pneg %p104
      $region18: #{bottleneckx_forward.7} parent=11 // pred_check_branch
        %150 = sbr.rel (%p148) target = $region20
      $region19: #{bottleneckx_forward.7} parent=11 // pred_region
        _
      $region20: #{bottleneckx_forward.7} parent=11 // pred_fallthru
        _
    $region12: #{bottleneckx_forward.7} parent=5 // pred_fallthru
      _
    %p151 = scmp.lt.s32.totalorder %s10, 2
    // Predicated region
    $region21: #{bottleneckx_forward.7} parent=5 // pred_check
      %p152 = pneg %p151
    $region22: #{bottleneckx_forward.7} parent=5 // pred_check_branch
      %154 = sbr.rel (%p152) target = $region24
    $region23: #{bottleneckx_forward.7} parent=5 // pred_region
      // Predicated region
      $region25: #{bottleneckx_forward.7} parent=23 // pred_check
        %p155 = pneg %p30
      $region26: #{bottleneckx_forward.7} parent=23 // pred_check_branch
        %157 = sbr.rel (%p155) target = $region28
      $region27: #{bottleneckx_forward.7} parent=23 // pred_region
        %s158 = smul.u32 2, %s10
        %p159 = scmp.lt.s32.totalorder %s158, 3
        %s160 = scalar_select %p159, %s158, 3
        %s161 = smul.addr %s160, 8
        %s162 = smul.addr %s161, 8
        %s163 = scalar_lea.vmem %s0, %s162
        %s164 = smul.u32 2, %s10
      $region28: #{bottleneckx_forward.7} parent=23 // pred_fallthru
        _
      // Predicated region
      $region29: #{bottleneckx_forward.7} parent=23 // pred_check
        %p165 = pneg %p56
      $region30: #{bottleneckx_forward.7} parent=23 // pred_check_branch
        %167 = sbr.rel (%p165) target = $region32
      $region31: #{bottleneckx_forward.7} parent=23 // pred_region
        %s168 = smul.u32 2, %s10
        %p169 = scmp.lt.s32.totalorder %s168, 3
        %s170 = scalar_select %p169, %s168, 3
        %s171 = smul.addr %s170, 8
        %s172 = smul.addr %s171, 8
        %s173 = scalar_lea.vmem %s1, %s172
        %s174 = smul.u32 2, %s10
      $region32: #{bottleneckx_forward.7} parent=23 // pred_fallthru
        _
    $region24: #{bottleneckx_forward.7} parent=5 // pred_fallthru
      _
    %p175 = scmp.le.s32.totalorder 1, %s10
    %p176 = scmp.lt.s32.totalorder %s10, 3
    %p177 = pnand %p175, %p176
    %p178 = pneg %p177
    // Predicated region
    $region33: #{bottleneckx_forward.7} parent=5 // pred_check
      _
    $region34: #{bottleneckx_forward.7} parent=5 // pred_check_branch
      %180 = sbr.rel (%p177) target = $region36
    $region35: #{bottleneckx_forward.7} parent=5 // pred_region
      %s181 = ssub.s32 %s10, 1
      %s182 = smul.u32 2, %s15
      %p183 = scmp.lt.s32.totalorder %s182, 3
      %s184 = scalar_select %p183, %s182, 3
      %s185 = smul.addr %s184, 8
      %s186 = smul.addr %s185, 8
      %s187 = scalar_lea.vmem %s0, %s186
      %p188 = pneg %p36
      %p189 = pneg %p33
      %s190 = smul.u32 2, %s15
      %p191 = scmp.lt.s32.totalorder %s190, 3
      %s192 = scalar_select %p191, %s190, 3
      %s193 = smul.addr %s192, 8
      %s194 = smul.addr %s193, 8
      %s195 = scalar_lea.vmem %s1, %s194
      %p196 = pneg %p62
      %p197 = pneg %p59
      %p198 = pneg %p83
      %p199 = pneg %p80
      %p200 = pneg %p104
      %p201 = pneg %p101
      %p202 = pneg %p130
      %p203 = pneg %p127
      %s204 = smul.u32 2, %s15
      %p205 = scmp.lt.s32.totalorder %s204, 3
      %s206 = scalar_select %p205, %s204, 3
      %s207 = smul.addr %s206, 8
      %s208 = smul.addr %s207, 8
      %s209 = scalar_lea.vmem %s4, %s208
      %s210 = smul.u32 2, %s15
      %p211 = scmp.lt.s32.totalorder %s210, 3
      %s212 = scalar_select %p211, %s210, 3
      %s213 = smul.addr %s212, 8
      %s214 = smul.addr %s213, 8
      %s215 = scalar_lea.vmem %s0, %s214
      %s216 = smul.u32 2, %s15
      %s217 = smul.u32 2, %s15
      %p218 = scmp.lt.s32.totalorder %s217, 3
      %s219 = scalar_select %p218, %s217, 3
      %s220 = smul.addr %s219, 8
      %s221 = smul.addr %s220, 8
      %s222 = scalar_lea.vmem %s1, %s221
      %s223 = smul.u32 2, %s15
      %s224 = smul.u32 2, %s15
      %p225 = scmp.lt.s32.totalorder %s224, 3
      %s226 = scalar_select %p225, %s224, 3
      %s227 = smul.addr %s226, 8
      %s228 = smul.addr %s227, 8
      %s229 = scalar_lea.vmem %s4, %s228
      %s230 = smul.u32 2, %s15
      %v231 = vld [vmem:[%s215] sm:$0xff]
      %v232 = vld [vmem:[%s215 + $0x8] sm:$0xff]
      %v233 = vld [vmem:[%s215 + $0x10] sm:$0xff]
      %v234 = vld [vmem:[%s215 + $0x18] sm:$0xff]
      %v235 = vld [vmem:[%s215 + $0x20] sm:$0xff]
      %v236 = vld [vmem:[%s215 + $0x28] sm:$0xff]
      %v237 = vld [vmem:[%s215 + $0x30] sm:$0xff]
      %v238 = vld [vmem:[%s215 + $0x38] sm:$0xff]
      %v239 = vld [vmem:[%s215 + $0x40] sm:$0xff]
      %v240 = vld [vmem:[%s215 + $0x48] sm:$0xff]
      %v241 = vld [vmem:[%s215 + $0x50] sm:$0xff]
      %v242 = vld [vmem:[%s215 + $0x58] sm:$0xff]
      %v243 = vld [vmem:[%s215 + $0x60] sm:$0xff]
      %v244 = vld [vmem:[%s215 + $0x68] sm:$0xff]
      %v245 = vld [vmem:[%s215 + $0x70] sm:$0xff]
      %v246 = vld [vmem:[%s215 + $0x78] sm:$0xff]
      %v247 = vld [vmem:[%s2] sm:$0xff]
      %v249 = vperm.slane %v247, 0
      %v250 = vperm.slane %v247, 1
      %v251 = vperm.slane %v247, 2
      %v252 = vperm.slane %v247, 3
      %v253 = vperm.slane %v247, 4
      %v254 = vperm.slane %v247, 5
      %v255 = vperm.slane %v247, 6
      %v256 = vperm.slane %v247, 7
      %v265 = vmul.f32 %v231, %v249
      %v266 = vmul.f32 %v232, %v250
      %v267 = vmul.f32 %v233, %v251
      %v268 = vmul.f32 %v234, %v252
      %v269 = vmul.f32 %v235, %v253
      %v270 = vmul.f32 %v236, %v254
      %v271 = vmul.f32 %v237, %v255
      %v272 = vmul.f32 %v238, %v256
      %v273 = vmul.f32 %v239, %v249
      %v274 = vmul.f32 %v240, %v250
      %v275 = vmul.f32 %v241, %v251
      %v276 = vmul.f32 %v242, %v252
      %v277 = vmul.f32 %v243, %v253
      %v278 = vmul.f32 %v244, %v254
      %v279 = vmul.f32 %v245, %v255
      %v280 = vmul.f32 %v246, %v256
      %v281 = vld [vmem:[%s3] sm:$0xff]
      %v283 = vperm.slane %v281, 0
      %v284 = vperm.slane %v281, 1
      %v285 = vperm.slane %v281, 2
      %v286 = vperm.slane %v281, 3
      %v287 = vperm.slane %v281, 4
      %v288 = vperm.slane %v281, 5
      %v289 = vperm.slane %v281, 6
      %v290 = vperm.slane %v281, 7
      %v299 = vadd.f32 %v265, %v283
      %v300 = vadd.f32 %v266, %v284
      %v301 = vadd.f32 %v267, %v285
      %v302 = vadd.f32 %v268, %v286
      %v303 = vadd.f32 %v269, %v287
      %v304 = vadd.f32 %v270, %v288
      %v305 = vadd.f32 %v271, %v289
      %v306 = vadd.f32 %v272, %v290
      %v307 = vadd.f32 %v273, %v283
      %v308 = vadd.f32 %v274, %v284
      %v309 = vadd.f32 %v275, %v285
      %v310 = vadd.f32 %v276, %v286
      %v311 = vadd.f32 %v277, %v287
      %v312 = vadd.f32 %v278, %v288
      %v313 = vadd.f32 %v279, %v289
      %v314 = vadd.f32 %v280, %v290
      %v315 = vld [vmem:[%s222] sm:$0xff]
      %v316 = vld [vmem:[%s222 + $0x8] sm:$0xff]
      %v317 = vld [vmem:[%s222 + $0x10] sm:$0xff]
      %v318 = vld [vmem:[%s222 + $0x18] sm:$0xff]
      %v319 = vld [vmem:[%s222 + $0x20] sm:$0xff]
      %v320 = vld [vmem:[%s222 + $0x28] sm:$0xff]
      %v321 = vld [vmem:[%s222 + $0x30] sm:$0xff]
      %v322 = vld [vmem:[%s222 + $0x38] sm:$0xff]
      %v323 = vld [vmem:[%s222 + $0x40] sm:$0xff]
      %v324 = vld [vmem:[%s222 + $0x48] sm:$0xff]
      %v325 = vld [vmem:[%s222 + $0x50] sm:$0xff]
      %v326 = vld [vmem:[%s222 + $0x58] sm:$0xff]
      %v327 = vld [vmem:[%s222 + $0x60] sm:$0xff]
      %v328 = vld [vmem:[%s222 + $0x68] sm:$0xff]
      %v329 = vld [vmem:[%s222 + $0x70] sm:$0xff]
      %v330 = vld [vmem:[%s222 + $0x78] sm:$0xff]
      %v331 = vadd.f32 %v299, %v315
      %v332 = vadd.f32 %v300, %v316
      %v333 = vadd.f32 %v301, %v317
      %v334 = vadd.f32 %v302, %v318
      %v335 = vadd.f32 %v303, %v319
      %v336 = vadd.f32 %v304, %v320
      %v337 = vadd.f32 %v305, %v321
      %v338 = vadd.f32 %v306, %v322
      %v339 = vadd.f32 %v307, %v323
      %v340 = vadd.f32 %v308, %v324
      %v341 = vadd.f32 %v309, %v325
      %v342 = vadd.f32 %v310, %v326
      %v343 = vadd.f32 %v311, %v327
      %v344 = vadd.f32 %v312, %v328
      %v345 = vadd.f32 %v313, %v329
      %v346 = vadd.f32 %v314, %v330
      %vm347 = vcmp.ge.f32.partialorder %v331, 0.0
      %vm348 = vcmp.ge.f32.partialorder %v332, 0.0
      %vm349 = vcmp.ge.f32.partialorder %v333, 0.0
      %vm350 = vcmp.ge.f32.partialorder %v334, 0.0
      %vm351 = vcmp.ge.f32.partialorder %v335, 0.0
      %vm352 = vcmp.ge.f32.partialorder %v336, 0.0
      %vm353 = vcmp.ge.f32.partialorder %v337, 0.0
      %vm354 = vcmp.ge.f32.partialorder %v338, 0.0
      %vm355 = vcmp.ge.f32.partialorder %v339, 0.0
      %vm356 = vcmp.ge.f32.partialorder %v340, 0.0
      %vm357 = vcmp.ge.f32.partialorder %v341, 0.0
      %vm358 = vcmp.ge.f32.partialorder %v342, 0.0
      %vm359 = vcmp.ge.f32.partialorder %v343, 0.0
      %vm360 = vcmp.ge.f32.partialorder %v344, 0.0
      %vm361 = vcmp.ge.f32.partialorder %v345, 0.0
      %vm362 = vcmp.ge.f32.partialorder %v346, 0.0
      %v363 = vmul.f32 %v331, 0.01
      %v364 = vmul.f32 %v332, 0.01
      %v365 = vmul.f32 %v333, 0.01
      %v366 = vmul.f32 %v334, 0.01
      %v367 = vmul.f32 %v335, 0.01
      %v368 = vmul.f32 %v336, 0.01
      %v369 = vmul.f32 %v337, 0.01
      %v370 = vmul.f32 %v338, 0.01
      %v371 = vmul.f32 %v339, 0.01
      %v372 = vmul.f32 %v340, 0.01
      %v373 = vmul.f32 %v341, 0.01
      %v374 = vmul.f32 %v342, 0.01
      %v375 = vmul.f32 %v343, 0.01
      %v376 = vmul.f32 %v344, 0.01
      %v377 = vmul.f32 %v345, 0.01
      %v378 = vmul.f32 %v346, 0.01
      %v379 = vsel %vm347, %v331, %v363
      %v380 = vsel %vm348, %v332, %v364
      %v381 = vsel %vm349, %v333, %v365
      %v382 = vsel %vm350, %v334, %v366
      %v383 = vsel %vm351, %v335, %v367
      %v384 = vsel %vm352, %v336, %v368
      %v385 = vsel %vm353, %v337, %v369
      %v386 = vsel %vm354, %v338, %v370
      %v387 = vsel %vm355, %v339, %v371
      %v388 = vsel %vm356, %v340, %v372
      %v389 = vsel %vm357, %v341, %v373
      %v390 = vsel %vm358, %v342, %v374
      %v391 = vsel %vm359, %v343, %v375
      %v392 = vsel %vm360, %v344, %v376
      %v393 = vsel %vm361, %v345, %v377
      %v394 = vsel %vm362, %v346, %v378
      %395 = vst [vmem:[%s229] sm:$0xff] %v379
      %396 = vst [vmem:[%s229 + $0x8] sm:$0xff] %v380
      %397 = vst [vmem:[%s229 + $0x10] sm:$0xff] %v381
      %398 = vst [vmem:[%s229 + $0x18] sm:$0xff] %v382
      %399 = vst [vmem:[%s229 + $0x20] sm:$0xff] %v383
      %400 = vst [vmem:[%s229 + $0x28] sm:$0xff] %v384
      %401 = vst [vmem:[%s229 + $0x30] sm:$0xff] %v385
      %402 = vst [vmem:[%s229 + $0x38] sm:$0xff] %v386
      %403 = vst [vmem:[%s229 + $0x40] sm:$0xff] %v387
      %404 = vst [vmem:[%s229 + $0x48] sm:$0xff] %v388
      %405 = vst [vmem:[%s229 + $0x50] sm:$0xff] %v389
      %406 = vst [vmem:[%s229 + $0x58] sm:$0xff] %v390
      %407 = vst [vmem:[%s229 + $0x60] sm:$0xff] %v391
      %408 = vst [vmem:[%s229 + $0x68] sm:$0xff] %v392
      %409 = vst [vmem:[%s229 + $0x70] sm:$0xff] %v393
      %410 = vst [vmem:[%s229 + $0x78] sm:$0xff] %v394
      %s411 = smul.u32 2, %s15
      %p412 = scmp.lt.s32.totalorder %s411, 3
      %s413 = scalar_select %p412, %s411, 3
      %s414 = smul.addr %s413, 8
      %s415 = smul.addr %s414, 8
      %s416 = scalar_lea.vmem %s4, %s415
      // Predicated region
      $region37: #{bottleneckx_forward.7} parent=35 // pred_check
        %p417 = pneg %p127
      $region38: #{bottleneckx_forward.7} parent=35 // pred_check_branch
        %419 = sbr.rel (%p417) target = $region40
      $region39: #{bottleneckx_forward.7} parent=35 // pred_region
        %s420 = smul.u32 2, %s15
      $region40: #{bottleneckx_forward.7} parent=35 // pred_fallthru
        _
    $region36: #{bottleneckx_forward.7} parent=5 // pred_fallthru
      _
    %p421 = scmp.le.s32.totalorder 2, %s10
    // Predicated region
    $region41: #{bottleneckx_forward.7} parent=5 // pred_check
      %p422 = pneg %p421
    $region42: #{bottleneckx_forward.7} parent=5 // pred_check_branch
      %424 = sbr.rel (%p422) target = $region44
    $region43: #{bottleneckx_forward.7} parent=5 // pred_region
      %s425 = ssub.s32 %s10, 2
      // Predicated region
      $region45: #{bottleneckx_forward.7} parent=43 // pred_check
        %p426 = pneg %p133
      $region46: #{bottleneckx_forward.7} parent=43 // pred_check_branch
        %428 = sbr.rel (%p426) target = $region48
      $region47: #{bottleneckx_forward.7} parent=43 // pred_region
        %s429 = smul.u32 2, %s16
        %p430 = scmp.lt.s32.totalorder %s429, 3
        %s431 = scalar_select %p430, %s429, 3
        %s432 = smul.addr %s431, 8
        %s433 = smul.addr %s432, 8
        %s434 = scalar_lea.vmem %s4, %s433
      $region48: #{bottleneckx_forward.7} parent=43 // pred_fallthru
        _
    $region44: #{bottleneckx_forward.7} parent=5 // pred_fallthru
      _
  $region6: #{bottleneckx_forward.7} parent=0 // loop_footer
    %s14 = sadd.s32 1, %s10
  $region7: #{bottleneckx_forward.7} parent=0 // loop_footer_branch
    %9 = sbr.rel target = $region3
  $region8: #{bottleneckx_forward.7} parent=0 // loop_exit
    _

// kernel: bottleneckx_forward.5
$region0: #{bottleneckx_forward.5}
  #allocation0 [shape = 'u32[]', space=smem, size = 0x4, offset = 0x4, fixed_abs, tag = 'smem constant byte address 0x4 - core index']
  #allocation1 [shape = 'u32[72,128]{1,0:T(1,128)}', space=vmem, size = 0x9000, scoped, tag = 'internal scratch']
  #allocation2 [shape = 'f32[18,18,64]{2,1,0:T(8,128)}', space=vmem, size = 0x36000, scoped, tag = 'scratch operand']
  %s0 = inlined_call_operand.vmem [shape: f32[2,16,16,64], index: 0, kind: input, shape index: {}]
  %s1 = inlined_call_operand.vmem [shape: f32[1,64], index: 1, kind: input, shape index: {}]
  %s2 = inlined_call_operand.vmem [shape: f32[1,64], index: 2, kind: input, shape index: {}]
  %s3 = inlined_call_operand.vmem [shape: bf16[576,64], index: 3, kind: input, shape index: {}]
  %s4 = inlined_call_operand.vmem [shape: f32[2,16,16,64], index: 4, kind: output, shape index: {0}]
  %s5 = inlined_call_operand.vmem [shape: f32[2,2,64], index: 5, kind: output, shape index: {1}]
  %6 = xla_tuple %s4, %s5
  %s7 = sld [smem:[#allocation0]]
  $region57: #{bottleneckx_forward.5} parent=0
    _
  %s9 = ssub.s32 1, %s7
  %s10 = scalar_select 0, %s9, %s7
  loop: start=0, step=1, limit=4
  $region2: #{bottleneckx_forward.5} parent=0 // loop_pre_header
    _
  $region3: #{bottleneckx_forward.5} parent=0 // loop_header
    %s12 = sphi 0, %s16
    %p13 = scmp.ge.s32.totalorder %s12, 4
    %s22 = sphi 0, %s24
    %s25 = sphi 0, %s22
    %s26 = sphi 0, %s25
    %s42 = sphi 0, %s26
    %s46 = sphi 0, %s46
    %s48 = sphi 0, %s46
    %s49 = sphi 0, %s48
    %s63 = sphi 0, %s49
    %s67 = sphi 0, %s67
    %s69 = sphi 0, %s67
    %s70 = sphi 0, %s69
    %s84 = sphi 0, %s70
    %s88 = sphi 0, %s88
    %s90 = sphi 0, %s88
    %s91 = sphi 0, %s90
    %s105 = sphi 0, %s91
    %s111 = sphi 0, %s113
    %s114 = sphi 0, %s111
    %s115 = sphi 0, %s114
    %s131 = sphi 0, %s115
    %s137 = sphi 0, %s139
    %s140 = sphi 0, %s137
    %s141 = sphi 0, %s140
    %s157 = sphi 0, %s141
  $region4: #{bottleneckx_forward.5} parent=0 // loop_header_branch
    %15 = sbr.rel (%p13) target = $region8
  $region5: #{bottleneckx_forward.5} parent=0 // loop_body
    %s17 = ssub.s32 %s12, 1
    %s18 = ssub.s32 %s12, 2
    %s19 = sadd.s32 %s12, 1
    %s20 = ssub.s32 %s12, %s19
    %p21 = scmp.eq.s32.totalorder %s20, 0
    %s23 = sadd.s32 %s22, 1
    %s24 = scalar_select %p21, %s22, %s23
    %p27 = pneg %p21
    %p28 = scmp.eq.s32.totalorder %s12, 1
    %p29 = por %p27, %p28
    %p30 = scmp.ne.s32.totalorder %s22, %s25
    %p31 = scmp.eq.s32.totalorder %s12, 0
    %p32 = por %p30, %p31
    %p33 = scmp.ne.s32.totalorder %s22, %s25
    %p34 = scmp.eq.s32.totalorder %s17, 1
    %p35 = por %p33, %p34
    %p36 = scmp.ne.s32.totalorder %s25, %s26
    %p37 = scmp.eq.s32.totalorder %s17, 0
    %p38 = por %p36, %p37
    %p39 = scmp.ne.s32.totalorder %s25, %s26
    %p40 = scmp.eq.s32.totalorder %s18, 1
    %p41 = por %p39, %p40
    %p43 = scmp.ne.s32.totalorder %s26, %s42
    %p44 = scmp.eq.s32.totalorder %s18, 0
    %p45 = por %p43, %p44
    %s47 = sadd.s32 %s46, 1
    %p50 = scmp.eq.s32.totalorder %s12, 1
    %p51 = scmp.ne.s32.totalorder %s46, %s48
    %p52 = scmp.eq.s32.totalorder %s12, 0
    %p53 = por %p51, %p52
    %p54 = scmp.ne.s32.totalorder %s46, %s48
    %p55 = scmp.eq.s32.totalorder %s17, 1
    %p56 = por %p54, %p55
    %p57 = scmp.ne.s32.totalorder %s48, %s49
    %p58 = scmp.eq.s32.totalorder %s17, 0
    %p59 = por %p57, %p58
    %p60 = scmp.ne.s32.totalorder %s48, %s49
    %p61 = scmp.eq.s32.totalorder %s18, 1
    %p62 = por %p60, %p61
    %p64 = scmp.ne.s32.totalorder %s49, %s63
    %p65 = scmp.eq.s32.totalorder %s18, 0
    %p66 = por %p64, %p65
    %s68 = sadd.s32 %s67, 1
    %p71 = scmp.eq.s32.totalorder %s12, 1
    %p72 = scmp.ne.s32.totalorder %s67, %s69
    %p73 = scmp.eq.s32.totalorder %s12, 0
    %p74 = por %p72, %p73
    %p75 = scmp.ne.s32.totalorder %s67, %s69
    %p76 = scmp.eq.s32.totalorder %s17, 1
    %p77 = por %p75, %p76
    %p78 = scmp.ne.s32.totalorder %s69, %s70
    %p79 = scmp.eq.s32.totalorder %s17, 0
    %p80 = por %p78, %p79
    %p81 = scmp.ne.s32.totalorder %s69, %s70
    %p82 = scmp.eq.s32.totalorder %s18, 1
    %p83 = por %p81, %p82
    %p85 = scmp.ne.s32.totalorder %s70, %s84
    %p86 = scmp.eq.s32.totalorder %s18, 0
    %p87 = por %p85, %p86
    %s89 = sadd.s32 %s88, 1
    %p92 = scmp.eq.s32.totalorder %s12, 1
    %p93 = scmp.ne.s32.totalorder %s88, %s90
    %p94 = scmp.eq.s32.totalorder %s12, 0
    %p95 = por %p93, %p94
    %p96 = scmp.ne.s32.totalorder %s88, %s90
    %p97 = scmp.eq.s32.totalorder %s17, 1
    %p98 = por %p96, %p97
    %p99 = scmp.ne.s32.totalorder %s90, %s91
    %p100 = scmp.eq.s32.totalorder %s17, 0
    %p101 = por %p99, %p100
    %p102 = scmp.ne.s32.totalorder %s90, %s91
    %p103 = scmp.eq.s32.totalorder %s18, 1
    %p104 = por %p102, %p103
    %p106 = scmp.ne.s32.totalorder %s91, %s105
    %p107 = scmp.eq.s32.totalorder %s18, 0
    %p108 = por %p106, %p107
    %s109 = ssub.s32 %s12, %s19
    %p110 = scmp.eq.s32.totalorder %s109, 0
    %s112 = sadd.s32 %s111, 1
    %s113 = scalar_select %p110, %s111, %s112
    %p116 = pneg %p110
    %p117 = scmp.eq.s32.totalorder %s12, 1
    %p118 = por %p116, %p117
    %p119 = scmp.ne.s32.totalorder %s111, %s114
    %p120 = scmp.eq.s32.totalorder %s12, 0
    %p121 = por %p119, %p120
    %p122 = scmp.ne.s32.totalorder %s111, %s114
    %p123 = scmp.eq.s32.totalorder %s17, 1
    %p124 = por %p122, %p123
    %p125 = scmp.ne.s32.totalorder %s114, %s115
    %p126 = scmp.eq.s32.totalorder %s17, 0
    %p127 = por %p125, %p126
    %p128 = scmp.ne.s32.totalorder %s114, %s115
    %p129 = scmp.eq.s32.totalorder %s18, 1
    %p130 = por %p128, %p129
    %p132 = scmp.ne.s32.totalorder %s115, %s131
    %p133 = scmp.eq.s32.totalorder %s18, 0
    %p134 = por %p132, %p133
    %s135 = ssub.s32 %s12, %s19
    %p136 = scmp.eq.s32.totalorder %s135, 0
    %s138 = sadd.s32 %s137, 1
    %s139 = scalar_select %p136, %s137, %s138
    %p142 = pneg %p136
    %p143 = scmp.eq.s32.totalorder %s12, 1
    %p144 = por %p142, %p143
    %p145 = scmp.ne.s32.totalorder %s137, %s140
    %p146 = scmp.eq.s32.totalorder %s12, 0
    %p147 = por %p145, %p146
    %p148 = scmp.ne.s32.totalorder %s137, %s140
    %p149 = scmp.eq.s32.totalorder %s17, 1
    %p150 = por %p148, %p149
    %p151 = scmp.ne.s32.totalorder %s140, %s141
    %p152 = scmp.eq.s32.totalorder %s17, 0
    %p153 = por %p151, %p152
    %p154 = scmp.ne.s32.totalorder %s140, %s141
    %p155 = scmp.eq.s32.totalorder %s18, 1
    %p156 = por %p154, %p155
    %p158 = scmp.ne.s32.totalorder %s141, %s157
    %p159 = scmp.eq.s32.totalorder %s18, 0
    %p160 = por %p158, %p159
    %p161 = scmp.le.s32.totalorder 1, %s12
    %p162 = scmp.lt.s32.totalorder %s12, 3
    %p163 = pnand %p161, %p162
    %p164 = pneg %p163
    // Predicated region
    $region9: #{bottleneckx_forward.5} parent=5 // pred_check
      _
    $region10: #{bottleneckx_forward.5} parent=5 // pred_check_branch
      %166 = sbr.rel (%p163) target = $region12
    $region11: #{bottleneckx_forward.5} parent=5 // pred_region
      %s167 = ssub.s32 %s12, 1
      // Predicated region
      $region13: #{bottleneckx_forward.5} parent=11 // pred_check
        %p168 = pneg %p59
      $region14: #{bottleneckx_forward.5} parent=11 // pred_check_branch
        %170 = sbr.rel (%p168) target = $region16
      $region15: #{bottleneckx_forward.5} parent=11 // pred_region
        _
      $region16: #{bottleneckx_forward.5} parent=11 // pred_fallthru
        _
      // Predicated region
      $region17: #{bottleneckx_forward.5} parent=11 // pred_check
        %p171 = pneg %p80
      $region18: #{bottleneckx_forward.5} parent=11 // pred_check_branch
        %173 = sbr.rel (%p171) target = $region20
      $region19: #{bottleneckx_forward.5} parent=11 // pred_region
        _
      $region20: #{bottleneckx_forward.5} parent=11 // pred_fallthru
        _
      // Predicated region
      $region21: #{bottleneckx_forward.5} parent=11 // pred_check
        %p174 = pneg %p101
      $region22: #{bottleneckx_forward.5} parent=11 // pred_check_branch
        %176 = sbr.rel (%p174) target = $region24
      $region23: #{bottleneckx_forward.5} parent=11 // pred_region
        _
      $region24: #{bottleneckx_forward.5} parent=11 // pred_fallthru
        _
    $region12: #{bottleneckx_forward.5} parent=5 // pred_fallthru
      _
    %p177 = scmp.lt.s32.totalorder %s12, 2
    // Predicated region
    $region25: #{bottleneckx_forward.5} parent=5 // pred_check
      %p178 = pneg %p177
    $region26: #{bottleneckx_forward.5} parent=5 // pred_check_branch
      %180 = sbr.rel (%p178) target = $region28
    $region27: #{bottleneckx_forward.5} parent=5 // pred_region
      // Predicated region
      $region29: #{bottleneckx_forward.5} parent=27 // pred_check
        %p181 = pneg %p32
      $region30: #{bottleneckx_forward.5} parent=27 // pred_check_branch
        %183 = sbr.rel (%p181) target = $region32
      $region31: #{bottleneckx_forward.5} parent=27 // pred_region
        %p184 = scmp.lt.s32.totalorder %s12, 1
        %s185 = scalar_select %p184, %s12, 1
        %s186 = smul.addr %s185, 32
        %s187 = smul.addr %s186, 8
        %s188 = scalar_lea.vmem %s0, %s187
      $region32: #{bottleneckx_forward.5} parent=27 // pred_fallthru
        _
    $region28: #{bottleneckx_forward.5} parent=5 // pred_fallthru
      _
    %p189 = scmp.le.s32.totalorder 1, %s12
    %p190 = scmp.lt.s32.totalorder %s12, 3
    %p191 = pnand %p189, %p190
    %p192 = pneg %p191
    // Predicated region
    $region33: #{bottleneckx_forward.5} parent=5 // pred_check
      _
    $region34: #{bottleneckx_forward.5} parent=5 // pred_check_branch
      %194 = sbr.rel (%p191) target = $region36
    $region35: #{bottleneckx_forward.5} parent=5 // pred_region
      %s195 = ssub.s32 %s12, 1
      %p196 = scmp.lt.s32.totalorder %s17, 1
      %s197 = scalar_select %p196, %s17, 1
      %s198 = smul.addr %s197, 32
      %s199 = smul.addr %s198, 8
      %s200 = scalar_lea.vmem %s0, %s199
      %p201 = pneg %p38
      %p202 = pneg %p35
      %p203 = pneg %p59
      %p204 = pneg %p56
      %p205 = pneg %p80
      %p206 = pneg %p77
      %p207 = pneg %p101
      %p208 = pneg %p98
      %p209 = pneg %p127
      %p210 = pneg %p124
      %p211 = scmp.lt.s32.totalorder %s17, 1
      %s212 = scalar_select %p211, %s17, 1
      %s213 = smul.addr %s212, 32
      %s214 = smul.addr %s213, 8
      %s215 = scalar_lea.vmem %s4, %s214
      %p216 = pneg %p153
      %p217 = pneg %p150
      %p218 = scmp.lt.s32.totalorder %s17, 1
      %s219 = scalar_select %p218, %s17, 1
      %s220 = smul.addr %s219, 2
      %s221 = scalar_lea.vmem %s5, %s220
      %p222 = scmp.lt.s32.totalorder %s17, 1
      %s223 = scalar_select %p222, %s17, 1
      %s224 = smul.addr %s223, 32
      %s225 = smul.addr %s224, 8
      %s226 = scalar_lea.vmem %s0, %s225
      %p227 = scmp.lt.s32.totalorder %s17, 1
      %s228 = scalar_select %p227, %s17, 1
      %s229 = smul.addr %s228, 32
      %s230 = smul.addr %s229, 8
      %s231 = scalar_lea.vmem %s4, %s230
      %p232 = scmp.lt.s32.totalorder %s17, 1
      %s233 = scalar_select %p232, %s17, 1
      %s234 = smul.addr %s233, 2
      %s235 = scalar_lea.vmem %s5, %s234
      %v237 = vld [vmem:[%s226] sm:$0xff]
      %v238 = vld [vmem:[%s226 + $0x8] sm:$0xff]
      %v239 = vld [vmem:[%s226 + $0x10] sm:$0xff]
      %v240 = vld [vmem:[%s226 + $0x18] sm:$0xff]
      %v241 = vld [vmem:[%s226 + $0x20] sm:$0xff]
      %v242 = vld [vmem:[%s226 + $0x28] sm:$0xff]
      %v243 = vld [vmem:[%s226 + $0x30] sm:$0xff]
      %v244 = vld [vmem:[%s226 + $0x38] sm:$0xff]
      %v245 = vld [vmem:[%s226 + $0x40] sm:$0xff]
      %v246 = vld [vmem:[%s226 + $0x48] sm:$0xff]
      %v247 = vld [vmem:[%s226 + $0x50] sm:$0xff]
      %v248 = vld [vmem:[%s226 + $0x58] sm:$0xff]
      %v249 = vld [vmem:[%s226 + $0x60] sm:$0xff]
      %v250 = vld [vmem:[%s226 + $0x68] sm:$0xff]
      %v251 = vld [vmem:[%s226 + $0x70] sm:$0xff]
      %v252 = vld [vmem:[%s226 + $0x78] sm:$0xff]
      %v253 = vld [vmem:[%s226 + $0x80] sm:$0xff]
      %v254 = vld [vmem:[%s226 + $0x88] sm:$0xff]
      %v255 = vld [vmem:[%s226 + $0x90] sm:$0xff]
      %v256 = vld [vmem:[%s226 + $0x98] sm:$0xff]
      %v257 = vld [vmem:[%s226 + $0xa0] sm:$0xff]
      %v258 = vld [vmem:[%s226 + $0xa8] sm:$0xff]
      %v259 = vld [vmem:[%s226 + $0xb0] sm:$0xff]
      %v260 = vld [vmem:[%s226 + $0xb8] sm:$0xff]
      %v261 = vld [vmem:[%s226 + $0xc0] sm:$0xff]
      %v262 = vld [vmem:[%s226 + $0xc8] sm:$0xff]
      %v263 = vld [vmem:[%s226 + $0xd0] sm:$0xff]
      %v264 = vld [vmem:[%s226 + $0xd8] sm:$0xff]
      %v265 = vld [vmem:[%s226 + $0xe0] sm:$0xff]
      %v266 = vld [vmem:[%s226 + $0xe8] sm:$0xff]
      %v267 = vld [vmem:[%s226 + $0xf0] sm:$0xff]
      %v268 = vld [vmem:[%s226 + $0xf8] sm:$0xff]
      %v269 = vld [vmem:[%s1] sm:$0x1]
      %v271 = vperm.slane %v269, 0
      %v273 = vmul.f32 %v237, %v271
      %v274 = vmul.f32 %v238, %v271
      %v275 = vmul.f32 %v239, %v271
      %v276 = vmul.f32 %v240, %v271
      %v277 = vmul.f32 %v241, %v271
      %v278 = vmul.f32 %v242, %v271
      %v279 = vmul.f32 %v243, %v271
      %v280 = vmul.f32 %v244, %v271
      %v281 = vmul.f32 %v245, %v271
      %v282 = vmul.f32 %v246, %v271
      %v283 = vmul.f32 %v247, %v271
      %v284 = vmul.f32 %v248, %v271
      %v285 = vmul.f32 %v249, %v271
      %v286 = vmul.f32 %v250, %v271
      %v287 = vmul.f32 %v251, %v271
      %v288 = vmul.f32 %v252, %v271
      %v289 = vmul.f32 %v253, %v271
      %v290 = vmul.f32 %v254, %v271
      %v291 = vmul.f32 %v255, %v271
      %v292 = vmul.f32 %v256, %v271
      %v293 = vmul.f32 %v257, %v271
      %v294 = vmul.f32 %v258, %v271
      %v295 = vmul.f32 %v259, %v271
      %v296 = vmul.f32 %v260, %v271
      %v297 = vmul.f32 %v261, %v271
      %v298 = vmul.f32 %v262, %v271
      %v299 = vmul.f32 %v263, %v271
      %v300 = vmul.f32 %v264, %v271
      %v301 = vmul.f32 %v265, %v271
      %v302 = vmul.f32 %v266, %v271
      %v303 = vmul.f32 %v267, %v271
      %v304 = vmul.f32 %v268, %v271
      %v305 = vld [vmem:[%s2] sm:$0x1]
      %v307 = vperm.slane %v305, 0
      %v309 = vadd.f32 %v273, %v307
      %v310 = vadd.f32 %v274, %v307
      %v311 = vadd.f32 %v275, %v307
      %v312 = vadd.f32 %v276, %v307
      %v313 = vadd.f32 %v277, %v307
      %v314 = vadd.f32 %v278, %v307
      %v315 = vadd.f32 %v279, %v307
      %v316 = vadd.f32 %v280, %v307
      %v317 = vadd.f32 %v281, %v307
      %v318 = vadd.f32 %v282, %v307
      %v319 = vadd.f32 %v283, %v307
      %v320 = vadd.f32 %v284, %v307
      %v321 = vadd.f32 %v285, %v307
      %v322 = vadd.f32 %v286, %v307
      %v323 = vadd.f32 %v287, %v307
      %v324 = vadd.f32 %v288, %v307
      %v325 = vadd.f32 %v289, %v307
      %v326 = vadd.f32 %v290, %v307
      %v327 = vadd.f32 %v291, %v307
      %v328 = vadd.f32 %v292, %v307
      %v329 = vadd.f32 %v293, %v307
      %v330 = vadd.f32 %v294, %v307
      %v331 = vadd.f32 %v295, %v307
      %v332 = vadd.f32 %v296, %v307
      %v333 = vadd.f32 %v297, %v307
      %v334 = vadd.f32 %v298, %v307
      %v335 = vadd.f32 %v299, %v307
      %v336 = vadd.f32 %v300, %v307
      %v337 = vadd.f32 %v301, %v307
      %v338 = vadd.f32 %v302, %v307
      %v339 = vadd.f32 %v303, %v307
      %v340 = vadd.f32 %v304, %v307
      %vm341 = vcmp.ge.f32.partialorder %v309, 0.0
      %vm342 = vcmp.ge.f32.partialorder %v310, 0.0
      %vm343 = vcmp.ge.f32.partialorder %v311, 0.0
      %vm344 = vcmp.ge.f32.partialorder %v312, 0.0
      %vm345 = vcmp.ge.f32.partialorder %v313, 0.0
      %vm346 = vcmp.ge.f32.partialorder %v314, 0.0
      %vm347 = vcmp.ge.f32.partialorder %v315, 0.0
      %vm348 = vcmp.ge.f32.partialorder %v316, 0.0
      %vm349 = vcmp.ge.f32.partialorder %v317, 0.0
      %vm350 = vcmp.ge.f32.partialorder %v318, 0.0
      %vm351 = vcmp.ge.f32.partialorder %v319, 0.0
      %vm352 = vcmp.ge.f32.partialorder %v320, 0.0
      %vm353 = vcmp.ge.f32.partialorder %v321, 0.0
      %vm354 = vcmp.ge.f32.partialorder %v322, 0.0
      %vm355 = vcmp.ge.f32.partialorder %v323, 0.0
      %vm356 = vcmp.ge.f32.partialorder %v324, 0.0
      %vm357 = vcmp.ge.f32.partialorder %v325, 0.0
      %vm358 = vcmp.ge.f32.partialorder %v326, 0.0
      %vm359 = vcmp.ge.f32.partialorder %v327, 0.0
      %vm360 = vcmp.ge.f32.partialorder %v328, 0.0
      %vm361 = vcmp.ge.f32.partialorder %v329, 0.0
      %vm362 = vcmp.ge.f32.partialorder %v330, 0.0
      %vm363 = vcmp.ge.f32.partialorder %v331, 0.0
      %vm364 = vcmp.ge.f32.partialorder %v332, 0.0
      %vm365 = vcmp.ge.f32.partialorder %v333, 0.0
      %vm366 = vcmp.ge.f32.partialorder %v334, 0.0
      %vm367 = vcmp.ge.f32.partialorder %v335, 0.0
      %vm368 = vcmp.ge.f32.partialorder %v336, 0.0
      %vm369 = vcmp.ge.f32.partialorder %v337, 0.0
      %vm370 = vcmp.ge.f32.partialorder %v338, 0.0
      %vm371 = vcmp.ge.f32.partialorder %v339, 0.0
      %vm372 = vcmp.ge.f32.partialorder %v340, 0.0
      %v373 = vmul.f32 %v309, 0.01
      %v374 = vmul.f32 %v310, 0.01
      %v375 = vmul.f32 %v311, 0.01
      %v376 = vmul.f32 %v312, 0.01
      %v377 = vmul.f32 %v313, 0.01
      %v378 = vmul.f32 %v314, 0.01
      %v379 = vmul.f32 %v315, 0.01
      %v380 = vmul.f32 %v316, 0.01
      %v381 = vmul.f32 %v317, 0.01
      %v382 = vmul.f32 %v318, 0.01
      %v383 = vmul.f32 %v319, 0.01
      %v384 = vmul.f32 %v320, 0.01
      %v385 = vmul.f32 %v321, 0.01
      %v386 = vmul.f32 %v322, 0.01
      %v387 = vmul.f32 %v323, 0.01
      %v388 = vmul.f32 %v324, 0.01
      %v389 = vmul.f32 %v325, 0.01
      %v390 = vmul.f32 %v326, 0.01
      %v391 = vmul.f32 %v327, 0.01
      %v392 = vmul.f32 %v328, 0.01
      %v393 = vmul.f32 %v329, 0.01
      %v394 = vmul.f32 %v330, 0.01
      %v395 = vmul.f32 %v331, 0.01
      %v396 = vmul.f32 %v332, 0.01
      %v397 = vmul.f32 %v333, 0.01
      %v398 = vmul.f32 %v334, 0.01
      %v399 = vmul.f32 %v335, 0.01
      %v400 = vmul.f32 %v336, 0.01
      %v401 = vmul.f32 %v337, 0.01
      %v402 = vmul.f32 %v338, 0.01
      %v403 = vmul.f32 %v339, 0.01
      %v404 = vmul.f32 %v340, 0.01
      %v405 = vsel %vm341, %v309, %v373
      %v406 = vsel %vm342, %v310, %v374
      %v407 = vsel %vm343, %v311, %v375
      %v408 = vsel %vm344, %v312, %v376
      %v409 = vsel %vm345, %v313, %v377
      %v410 = vsel %vm346, %v314, %v378
      %v411 = vsel %vm347, %v315, %v379
      %v412 = vsel %vm348, %v316, %v380
      %v413 = vsel %vm349, %v317, %v381
      %v414 = vsel %vm350, %v318, %v382
      %v415 = vsel %vm351, %v319, %v383
      %v416 = vsel %vm352, %v320, %v384
      %v417 = vsel %vm353, %v321, %v385
      %v418 = vsel %vm354, %v322, %v386
      %v419 = vsel %vm355, %v323, %v387
      %v420 = vsel %vm356, %v324, %v388
      %v421 = vsel %vm357, %v325, %v389
      %v422 = vsel %vm358, %v326, %v390
      %v423 = vsel %vm359, %v327, %v391
      %v424 = vsel %vm360, %v328, %v392
      %v425 = vsel %vm361, %v329, %v393
      %v426 = vsel %vm362, %v330, %v394
      %v427 = vsel %vm363, %v331, %v395
      %v428 = vsel %vm364, %v332, %v396
      %v429 = vsel %vm365, %v333, %v397
      %v430 = vsel %vm366, %v334, %v398
      %v431 = vsel %vm367, %v335, %v399
      %v432 = vsel %vm368, %v336, %v400
      %v433 = vsel %vm369, %v337, %v401
      %v434 = vsel %vm370, %v338, %v402
      %v435 = vsel %vm371, %v339, %v403
      %v436 = vsel %vm372, %v340, %v404
      %vm437 = vcmask 523264
      %438 = vst.msk [vmem:[#allocation2] sm:$0xff] %vm437, 0.0
      %439 = vst.msk [vmem:[#allocation2 + $0x8] sm:$0xff] %vm437, 0.0
      %vm440 = vcmask 517120
      %441 = vst.msk [vmem:[#allocation2 + $0x10] sm:$0x3] %vm440, 0.0
      %s442 = scalar_lea.vmem [#allocation2], 408
      %443 = vst.msk [vmem:[%s442] sm:$0xff] %vm437, 0.0
      %444 = vst.msk [vmem:[%s442 + $0x8] sm:$0xff] %vm437, 0.0
      %445 = vst.msk [vmem:[%s442 + $0x10] sm:$0x3] %vm440, 0.0
      %vm446 = vcmask 516096
      %447 = vst.msk [vmem:[#allocation2] sm:$0x1] %vm446, 0.0
      %448 = vst.msk [vmem:[#allocation2 + $0x18] sm:$0x1] %vm446, 0.0
      %449 = vst.msk [vmem:[#allocation2 + $0x30] sm:$0x1] %vm446, 0.0
      %450 = vst.msk [vmem:[#allocation2 + $0x48] sm:$0x1] %vm446, 0.0
      %451 = vst.msk [vmem:[#allocation2 + $0x60] sm:$0x1] %vm446, 0.0
      %452 = vst.msk [vmem:[#allocation2 + $0x78] sm:$0x1] %vm446, 0.0
      %453 = vst.msk [vmem:[#allocation2 + $0x90] sm:$0x1] %vm446, 0.0
      %454 = vst.msk [vmem:[#allocation2 + $0xa8] sm:$0x1] %vm446, 0.0
      %455 = vst.msk [vmem:[#allocation2 + $0xc0] sm:$0x1] %vm446, 0.0
      %456 = vst.msk [vmem:[#allocation2 + $0xd8] sm:$0x1] %vm446, 0.0
      %457 = vst.msk [vmem:[#allocation2 + $0xf0] sm:$0x1] %vm446, 0.0
      %458 = vst.msk [vmem:[#allocation2 + $0x108] sm:$0x1] %vm446, 0.0
      %459 = vst.msk [vmem:[#allocation2 + $0x120] sm:$0x1] %vm446, 0.0
      %460 = vst.msk [vmem:[#allocation2 + $0x138] sm:$0x1] %vm446, 0.0
      %461 = vst.msk [vmem:[#allocation2 + $0x150] sm:$0x1] %vm446, 0.0
      %462 = vst.msk [vmem:[#allocation2 + $0x168] sm:$0x1] %vm446, 0.0
      %463 = vst.msk [vmem:[#allocation2 + $0x180] sm:$0x1] %vm446, 0.0
      %464 = vst.msk [vmem:[#allocation2 + $0x198] sm:$0x1] %vm446, 0.0
      %465 = vst.msk [vmem:[#allocation2 + $0x11] sm:$0x1] %vm446, 0.0
      %466 = vst.msk [vmem:[#allocation2 + $0x29] sm:$0x1] %vm446, 0.0
      %467 = vst.msk [vmem:[#allocation2 + $0x41] sm:$0x1] %vm446, 0.0
      %468 = vst.msk [vmem:[#allocation2 + $0x59] sm:$0x1] %vm446, 0.0
      %469 = vst.msk [vmem:[#allocation2 + $0x71] sm:$0x1] %vm446, 0.0
      %470 = vst.msk [vmem:[#allocation2 + $0x89] sm:$0x1] %vm446, 0.0
      %471 = vst.msk [vmem:[#allocation2 + $0xa1] sm:$0x1] %vm446, 0.0
      %472 = vst.msk [vmem:[#allocation2 + $0xb9] sm:$0x1] %vm446, 0.0
      %473 = vst.msk [vmem:[#allocation2 + $0xd1] sm:$0x1] %vm446, 0.0
      %474 = vst.msk [vmem:[#allocation2 + $0xe9] sm:$0x1] %vm446, 0.0
      %475 = vst.msk [vmem:[#allocation2 + $0x101] sm:$0x1] %vm446, 0.0
      %476 = vst.msk [vmem:[#allocation2 + $0x119] sm:$0x1] %vm446, 0.0
      %477 = vst.msk [vmem:[#allocation2 + $0x131] sm:$0x1] %vm446, 0.0
      %478 = vst.msk [vmem:[#allocation2 + $0x149] sm:$0x1] %vm446, 0.0
      %479 = vst.msk [vmem:[#allocation2 + $0x161] sm:$0x1] %vm446, 0.0
      %480 = vst.msk [vmem:[#allocation2 + $0x179] sm:$0x1] %vm446, 0.0
      %481 = vst.msk [vmem:[#allocation2 + $0x191] sm:$0x1] %vm446, 0.0
      %482 = vst.msk [vmem:[#allocation2 + $0x1a9] sm:$0x1] %vm446, 0.0
      %s483 = scalar_lea.vmem [#allocation2], 24
      %484 = vst.msk [vmem:[%s483 + $0x1] sm:$0xff] %vm437, %v405
      %485 = vst.msk [vmem:[%s483 + $0x9] sm:$0xff] %vm437, %v406
      %486 = vst.msk [vmem:[%s483 + $0x19] sm:$0xff] %vm437, %v407
      %487 = vst.msk [vmem:[%s483 + $0x21] sm:$0xff] %vm437, %v408
      %488 = vst.msk [vmem:[%s483 + $0x31] sm:$0xff] %vm437, %v409
      %489 = vst.msk [vmem:[%s483 + $0x39] sm:$0xff] %vm437, %v410
      %490 = vst.msk [vmem:[%s483 + $0x49] sm:$0xff] %vm437, %v411
      %491 = vst.msk [vmem:[%s483 + $0x51] sm:$0xff] %vm437, %v412
      %492 = vst.msk [vmem:[%s483 + $0x61] sm:$0xff] %vm437, %v413
      %493 = vst.msk [vmem:[%s483 + $0x69] sm:$0xff] %vm437, %v414
      %494 = vst.msk [vmem:[%s483 + $0x79] sm:$0xff] %vm437, %v415
      %495 = vst.msk [vmem:[%s483 + $0x81] sm:$0xff] %vm437, %v416
      %496 = vst.msk [vmem:[%s483 + $0x91] sm:$0xff] %vm437, %v417
      %497 = vst.msk [vmem:[%s483 + $0x99] sm:$0xff] %vm437, %v418
      %498 = vst.msk [vmem:[%s483 + $0xa9] sm:$0xff] %vm437, %v419
      %499 = vst.msk [vmem:[%s483 + $0xb1] sm:$0xff] %vm437, %v420
      %500 = vst.msk [vmem:[%s483 + $0xc1] sm:$0xff] %vm437, %v421
      %501 = vst.msk [vmem:[%s483 + $0xc9] sm:$0xff] %vm437, %v422
      %502 = vst.msk [vmem:[%s483 + $0xd9] sm:$0xff] %vm437, %v423
      %503 = vst.msk [vmem:[%s483 + $0xe1] sm:$0xff] %vm437, %v424
      %504 = vst.msk [vmem:[%s483 + $0xf1] sm:$0xff] %vm437, %v425
      %505 = vst.msk [vmem:[%s483 + $0xf9] sm:$0xff] %vm437, %v426
      %506 = vst.msk [vmem:[%s483 + $0x109] sm:$0xff] %vm437, %v427
      %507 = vst.msk [vmem:[%s483 + $0x111] sm:$0xff] %vm437, %v428
      %508 = vst.msk [vmem:[%s483 + $0x121] sm:$0xff] %vm437, %v429
      %509 = vst.msk [vmem:[%s483 + $0x129] sm:$0xff] %vm437, %v430
      %510 = vst.msk [vmem:[%s483 + $0x139] sm:$0xff] %vm437, %v431
      %511 = vst.msk [vmem:[%s483 + $0x141] sm:$0xff] %vm437, %v432
      %512 = vst.msk [vmem:[%s483 + $0x151] sm:$0xff] %vm437, %v433
      %513 = vst.msk [vmem:[%s483 + $0x159] sm:$0xff] %vm437, %v434
      %514 = vst.msk [vmem:[%s483 + $0x169] sm:$0xff] %vm437, %v435
      %515 = vst.msk [vmem:[%s483 + $0x171] sm:$0xff] %vm437, %v436
      %v516 = vld [vmem:[#allocation2] sm:$0xff]
      %v517 = vld [vmem:[#allocation2 + $0x8] sm:$0xff]
      %v518 = vld [vmem:[#allocation2 + $0x18] sm:$0xff]
      %v519 = vld [vmem:[#allocation2 + $0x20] sm:$0xff]
      %v520 = vld [vmem:[#allocation2 + $0x30] sm:$0xff]
      %v521 = vld [vmem:[#allocation2 + $0x38] sm:$0xff]
      %v522 = vld [vmem:[#allocation2 + $0x48] sm:$0xff]
      %v523 = vld [vmem:[#allocation2 + $0x50] sm:$0xff]
      %v524 = vld [vmem:[#allocation2 + $0x60] sm:$0xff]
      %v525 = vld [vmem:[#allocation2 + $0x68] sm:$0xff]
      %v526 = vld [vmem:[#allocation2 + $0x78] sm:$0xff]
      %v527 = vld [vmem:[#allocation2 + $0x80] sm:$0xff]
      %v528 = vld [vmem:[#allocation2 + $0x90] sm:$0xff]
      %v529 = vld [vmem:[#allocation2 + $0x98] sm:$0xff]
      %v530 = vld [vmem:[#allocation2 + $0xa8] sm:$0xff]
      %v531 = vld [vmem:[#allocation2 + $0xb0] sm:$0xff]
      %v532 = vld [vmem:[#allocation2 + $0xc0] sm:$0xff]
      %v533 = vld [vmem:[#allocation2 + $0xc8] sm:$0xff]
      %v534 = vld [vmem:[#allocation2 + $0xd8] sm:$0xff]
      %v535 = vld [vmem:[#allocation2 + $0xe0] sm:$0xff]
      %v536 = vld [vmem:[#allocation2 + $0xf0] sm:$0xff]
      %v537 = vld [vmem:[#allocation2 + $0xf8] sm:$0xff]
      %v538 = vld [vmem:[#allocation2 + $0x108] sm:$0xff]
      %v539 = vld [vmem:[#allocation2 + $0x110] sm:$0xff]
      %v540 = vld [vmem:[#allocation2 + $0x120] sm:$0xff]
      %v541 = vld [vmem:[#allocation2 + $0x128] sm:$0xff]
      %v542 = vld [vmem:[#allocation2 + $0x138] sm:$0xff]
      %v543 = vld [vmem:[#allocation2 + $0x140] sm:$0xff]
      %v544 = vld [vmem:[#allocation2 + $0x150] sm:$0xff]
      %v545 = vld [vmem:[#allocation2 + $0x158] sm:$0xff]
      %v546 = vld [vmem:[#allocation2 + $0x168] sm:$0xff]
      %v547 = vld [vmem:[#allocation2 + $0x170] sm:$0xff]
      %v548 = vld [vmem:[#allocation2 + $0x1] sm:$0xff]
      %v549 = vld [vmem:[#allocation2 + $0x9] sm:$0xff]
      %v550 = vld [vmem:[#allocation2 + $0x19] sm:$0xff]
      %v551 = vld [vmem:[#allocation2 + $0x21] sm:$0xff]
      %v552 = vld [vmem:[#allocation2 + $0x31] sm:$0xff]
      %v553 = vld [vmem:[#allocation2 + $0x39] sm:$0xff]
      %v554 = vld [vmem:[#allocation2 + $0x49] sm:$0xff]
      %v555 = vld [vmem:[#allocation2 + $0x51] sm:$0xff]
      %v556 = vld [vmem:[#allocation2 + $0x61] sm:$0xff]
      %v557 = vld [vmem:[#allocation2 + $0x69] sm:$0xff]
      %v558 = vld [vmem:[#allocation2 + $0x79] sm:$0xff]
      %v559 = vld [vmem:[#allocation2 + $0x81] sm:$0xff]
      %v560 = vld [vmem:[#allocation2 + $0x91] sm:$0xff]
      %v561 = vld [vmem:[#allocation2 + $0x99] sm:$0xff]
      %v562 = vld [vmem:[#allocation2 + $0xa9] sm:$0xff]
      %v563 = vld [vmem:[#allocation2 + $0xb1] sm:$0xff]
      %v564 = vld [vmem:[#allocation2 + $0xc1] sm:$0xff]
      %v565 = vld [vmem:[#allocation2 + $0xc9] sm:$0xff]
      %v566 = vld [vmem:[#allocation2 + $0xd9] sm:$0xff]
      %v567 = vld [vmem:[#allocation2 + $0xe1] sm:$0xff]
      %v568 = vld [vmem:[#allocation2 + $0xf1] sm:$0xff]
      %v569 = vld [vmem:[#allocation2 + $0xf9] sm:$0xff]
      %v570 = vld [vmem:[#allocation2 + $0x109] sm:$0xff]
      %v571 = vld [vmem:[#allocation2 + $0x111] sm:$0xff]
      %v572 = vld [vmem:[#allocation2 + $0x121] sm:$0xff]
      %v573 = vld [vmem:[#allocation2 + $0x129] sm:$0xff]
      %v574 = vld [vmem:[#allocation2 + $0x139] sm:$0xff]
      %v575 = vld [vmem:[#allocation2 + $0x141] sm:$0xff]
      %v576 = vld [vmem:[#allocation2 + $0x151] sm:$0xff]
      %v577 = vld [vmem:[#allocation2 + $0x159] sm:$0xff]
      %v578 = vld [vmem:[#allocation2 + $0x169] sm:$0xff]
      %v579 = vld [vmem:[#allocation2 + $0x171] sm:$0xff]
      %v580 = vld [vmem:[#allocation2 + $0x2] sm:$0xff]
      %v581 = vld [vmem:[#allocation2 + $0xa] sm:$0xff]
      %v582 = vld [vmem:[#allocation2 + $0x1a] sm:$0xff]
      %v583 = vld [vmem:[#allocation2 + $0x22] sm:$0xff]
      %v584 = vld [vmem:[#allocation2 + $0x32] sm:$0xff]
      %v585 = vld [vmem:[#allocation2 + $0x3a] sm:$0xff]
      %v586 = vld [vmem:[#allocation2 + $0x4a] sm:$0xff]
      %v587 = vld [vmem:[#allocation2 + $0x52] sm:$0xff]
      %v588 = vld [vmem:[#allocation2 + $0x62] sm:$0xff]
      %v589 = vld [vmem:[#allocation2 + $0x6a] sm:$0xff]
      %v590 = vld [vmem:[#allocation2 + $0x7a] sm:$0xff]
      %v591 = vld [vmem:[#allocation2 + $0x82] sm:$0xff]
      %v592 = vld [vmem:[#allocation2 + $0x92] sm:$0xff]
      %v593 = vld [vmem:[#allocation2 + $0x9a] sm:$0xff]
      %v594 = vld [vmem:[#allocation2 + $0xaa] sm:$0xff]
      %v595 = vld [vmem:[#allocation2 + $0xb2] sm:$0xff]
      %v596 = vld [vmem:[#allocation2 + $0xc2] sm:$0xff]
      %v597 = vld [vmem:[#allocation2 + $0xca] sm:$0xff]
      %v598 = vld [vmem:[#allocation2 + $0xda] sm:$0xff]
      %v599 = vld [vmem:[#allocation2 + $0xe2] sm:$0xff]
      %v600 = vld [vmem:[#allocation2 + $0xf2] sm:$0xff]
      %v601 = vld [vmem:[#allocation2 + $0xfa] sm:$0xff]
      %v602 = vld [vmem:[#allocation2 + $0x10a] sm:$0xff]
      %v603 = vld [vmem:[#allocation2 + $0x112] sm:$0xff]
      %v604 = vld [vmem:[#allocation2 + $0x122] sm:$0xff]
      %v605 = vld [vmem:[#allocation2 + $0x12a] sm:$0xff]
      %v606 = vld [vmem:[#allocation2 + $0x13a] sm:$0xff]
      %v607 = vld [vmem:[#allocation2 + $0x142] sm:$0xff]
      %v608 = vld [vmem:[#allocation2 + $0x152] sm:$0xff]
      %v609 = vld [vmem:[#allocation2 + $0x15a] sm:$0xff]
      %v610 = vld [vmem:[#allocation2 + $0x16a] sm:$0xff]
      %v611 = vld [vmem:[#allocation2 + $0x172] sm:$0xff]
      %v612 = vld [vmem:[%s483] sm:$0xff]
      %v613 = vld [vmem:[%s483 + $0x8] sm:$0xff]
      %v614 = vld [vmem:[%s483 + $0x18] sm:$0xff]
      %v615 = vld [vmem:[%s483 + $0x20] sm:$0xff]
      %v616 = vld [vmem:[%s483 + $0x30] sm:$0xff]
      %v617 = vld [vmem:[%s483 + $0x38] sm:$0xff]
      %v618 = vld [vmem:[%s483 + $0x48] sm:$0xff]
      %v619 = vld [vmem:[%s483 + $0x50] sm:$0xff]
      %v620 = vld [vmem:[%s483 + $0x60] sm:$0xff]
      %v621 = vld [vmem:[%s483 + $0x68] sm:$0xff]
      %v622 = vld [vmem:[%s483 + $0x78] sm:$0xff]
      %v623 = vld [vmem:[%s483 + $0x80] sm:$0xff]
      %v624 = vld [vmem:[%s483 + $0x90] sm:$0xff]
      %v625 = vld [vmem:[%s483 + $0x98] sm:$0xff]
      %v626 = vld [vmem:[%s483 + $0xa8] sm:$0xff]
      %v627 = vld [vmem:[%s483 + $0xb0] sm:$0xff]
      %v628 = vld [vmem:[%s483 + $0xc0] sm:$0xff]
      %v629 = vld [vmem:[%s483 + $0xc8] sm:$0xff]
      %v630 = vld [vmem:[%s483 + $0xd8] sm:$0xff]
      %v631 = vld [vmem:[%s483 + $0xe0] sm:$0xff]
      %v632 = vld [vmem:[%s483 + $0xf0] sm:$0xff]
      %v633 = vld [vmem:[%s483 + $0xf8] sm:$0xff]
      %v634 = vld [vmem:[%s483 + $0x108] sm:$0xff]
      %v635 = vld [vmem:[%s483 + $0x110] sm:$0xff]
      %v636 = vld [vmem:[%s483 + $0x120] sm:$0xff]
      %v637 = vld [vmem:[%s483 + $0x128] sm:$0xff]
      %v638 = vld [vmem:[%s483 + $0x138] sm:$0xff]
      %v639 = vld [vmem:[%s483 + $0x140] sm:$0xff]
      %v640 = vld [vmem:[%s483 + $0x150] sm:$0xff]
      %v641 = vld [vmem:[%s483 + $0x158] sm:$0xff]
      %v642 = vld [vmem:[%s483 + $0x168] sm:$0xff]
      %v643 = vld [vmem:[%s483 + $0x170] sm:$0xff]
      %v644 = vld [vmem:[%s483 + $0x1] sm:$0xff]
      %v645 = vld [vmem:[%s483 + $0x9] sm:$0xff]
      %v646 = vld [vmem:[%s483 + $0x19] sm:$0xff]
      %v647 = vld [vmem:[%s483 + $0x21] sm:$0xff]
      %v648 = vld [vmem:[%s483 + $0x31] sm:$0xff]
      %v649 = vld [vmem:[%s483 + $0x39] sm:$0xff]
      %v650 = vld [vmem:[%s483 + $0x49] sm:$0xff]
      %v651 = vld [vmem:[%s483 + $0x51] sm:$0xff]
      %v652 = vld [vmem:[%s483 + $0x61] sm:$0xff]
      %v653 = vld [vmem:[%s483 + $0x69] sm:$0xff]
      %v654 = vld [vmem:[%s483 + $0x79] sm:$0xff]
      %v655 = vld [vmem:[%s483 + $0x81] sm:$0xff]
      %v656 = vld [vmem:[%s483 + $0x91] sm:$0xff]
      %v657 = vld [vmem:[%s483 + $0x99] sm:$0xff]
      %v658 = vld [vmem:[%s483 + $0xa9] sm:$0xff]
      %v659 = vld [vmem:[%s483 + $0xb1] sm:$0xff]
      %v660 = vld [vmem:[%s483 + $0xc1] sm:$0xff]
      %v661 = vld [vmem:[%s483 + $0xc9] sm:$0xff]
      %v662 = vld [vmem:[%s483 + $0xd9] sm:$0xff]
      %v663 = vld [vmem:[%s483 + $0xe1] sm:$0xff]
      %v664 = vld [vmem:[%s483 + $0xf1] sm:$0xff]
      %v665 = vld [vmem:[%s483 + $0xf9] sm:$0xff]
      %v666 = vld [vmem:[%s483 + $0x109] sm:$0xff]
      %v667 = vld [vmem:[%s483 + $0x111] sm:$0xff]
      %v668 = vld [vmem:[%s483 + $0x121] sm:$0xff]
      %v669 = vld [vmem:[%s483 + $0x129] sm:$0xff]
      %v670 = vld [vmem:[%s483 + $0x139] sm:$0xff]
      %v671 = vld [vmem:[%s483 + $0x141] sm:$0xff]
      %v672 = vld [vmem:[%s483 + $0x151] sm:$0xff]
      %v673 = vld [vmem:[%s483 + $0x159] sm:$0xff]
      %v674 = vld [vmem:[%s483 + $0x169] sm:$0xff]
      %v675 = vld [vmem:[%s483 + $0x171] sm:$0xff]
      %v676 = vld [vmem:[%s483 + $0x2] sm:$0xff]
      %v677 = vld [vmem:[%s483 + $0xa] sm:$0xff]
      %v678 = vld [vmem:[%s483 + $0x1a] sm:$0xff]
      %v679 = vld [vmem:[%s483 + $0x22] sm:$0xff]
      %v680 = vld [vmem:[%s483 + $0x32] sm:$0xff]
      %v681 = vld [vmem:[%s483 + $0x3a] sm:$0xff]
      %v682 = vld [vmem:[%s483 + $0x4a] sm:$0xff]
      %v683 = vld [vmem:[%s483 + $0x52] sm:$0xff]
      %v684 = vld [vmem:[%s483 + $0x62] sm:$0xff]
      %v685 = vld [vmem:[%s483 + $0x6a] sm:$0xff]
      %v686 = vld [vmem:[%s483 + $0x7a] sm:$0xff]
      %v687 = vld [vmem:[%s483 + $0x82] sm:$0xff]
      %v688 = vld [vmem:[%s483 + $0x92] sm:$0xff]
      %v689 = vld [vmem:[%s483 + $0x9a] sm:$0xff]
      %v690 = vld [vmem:[%s483 + $0xaa] sm:$0xff]
      %v691 = vld [vmem:[%s483 + $0xb2] sm:$0xff]
      %v692 = vld [vmem:[%s483 + $0xc2] sm:$0xff]
      %v693 = vld [vmem:[%s483 + $0xca] sm:$0xff]
      %v694 = vld [vmem:[%s483 + $0xda] sm:$0xff]
      %v695 = vld [vmem:[%s483 + $0xe2] sm:$0xff]
      %v696 = vld [vmem:[%s483 + $0xf2] sm:$0xff]
      %v697 = vld [vmem:[%s483 + $0xfa] sm:$0xff]
      %v698 = vld [vmem:[%s483 + $0x10a] sm:$0xff]
      %v699 = vld [vmem:[%s483 + $0x112] sm:$0xff]
      %v700 = vld [vmem:[%s483 + $0x122] sm:$0xff]
      %v701 = vld [vmem:[%s483 + $0x12a] sm:$0xff]
      %v702 = vld [vmem:[%s483 + $0x13a] sm:$0xff]
      %v703 = vld [vmem:[%s483 + $0x142] sm:$0xff]
      %v704 = vld [vmem:[%s483 + $0x152] sm:$0xff]
      %v705 = vld [vmem:[%s483 + $0x15a] sm:$0xff]
      %v706 = vld [vmem:[%s483 + $0x16a] sm:$0xff]
      %v707 = vld [vmem:[%s483 + $0x172] sm:$0xff]
      %s708 = scalar_lea.vmem [#allocation2], 48
      %v709 = vld [vmem:[%s708] sm:$0xff]
      %v710 = vld [vmem:[%s708 + $0x8] sm:$0xff]
      %v711 = vld [vmem:[%s708 + $0x18] sm:$0xff]
      %v712 = vld [vmem:[%s708 + $0x20] sm:$0xff]
      %v713 = vld [vmem:[%s708 + $0x30] sm:$0xff]
      %v714 = vld [vmem:[%s708 + $0x38] sm:$0xff]
      %v715 = vld [vmem:[%s708 + $0x48] sm:$0xff]
      %v716 = vld [vmem:[%s708 + $0x50] sm:$0xff]
      %v717 = vld [vmem:[%s708 + $0x60] sm:$0xff]
      %v718 = vld [vmem:[%s708 + $0x68] sm:$0xff]
      %v719 = vld [vmem:[%s708 + $0x78] sm:$0xff]
      %v720 = vld [vmem:[%s708 + $0x80] sm:$0xff]
      %v721 = vld [vmem:[%s708 + $0x90] sm:$0xff]
      %v722 = vld [vmem:[%s708 + $0x98] sm:$0xff]
      %v723 = vld [vmem:[%s708 + $0xa8] sm:$0xff]
      %v724 = vld [vmem:[%s708 + $0xb0] sm:$0xff]
      %v725 = vld [vmem:[%s708 + $0xc0] sm:$0xff]
      %v726 = vld [vmem:[%s708 + $0xc8] sm:$0xff]
      %v727 = vld [vmem:[%s708 + $0xd8] sm:$0xff]
      %v728 = vld [vmem:[%s708 + $0xe0] sm:$0xff]
      %v729 = vld [vmem:[%s708 + $0xf0] sm:$0xff]
      %v730 = vld [vmem:[%s708 + $0xf8] sm:$0xff]
      %v731 = vld [vmem:[%s708 + $0x108] sm:$0xff]
      %v732 = vld [vmem:[%s708 + $0x110] sm:$0xff]
      %v733 = vld [vmem:[%s708 + $0x120] sm:$0xff]
      %v734 = vld [vmem:[%s708 + $0x128] sm:$0xff]
      %v735 = vld [vmem:[%s708 + $0x138] sm:$0xff]
      %v736 = vld [vmem:[%s708 + $0x140] sm:$0xff]
      %v737 = vld [vmem:[%s708 + $0x150] sm:$0xff]
      %v738 = vld [vmem:[%s708 + $0x158] sm:$0xff]
      %v739 = vld [vmem:[%s708 + $0x168] sm:$0xff]
      %v740 = vld [vmem:[%s708 + $0x170] sm:$0xff]
      %v741 = vld [vmem:[%s708 + $0x1] sm:$0xff]
      %v742 = vld [vmem:[%s708 + $0x9] sm:$0xff]
      %v743 = vld [vmem:[%s708 + $0x19] sm:$0xff]
      %v744 = vld [vmem:[%s708 + $0x21] sm:$0xff]
      %v745 = vld [vmem:[%s708 + $0x31] sm:$0xff]
      %v746 = vld [vmem:[%s708 + $0x39] sm:$0xff]
      %v747 = vld [vmem:[%s708 + $0x49] sm:$0xff]
      %v748 = vld [vmem:[%s708 + $0x51] sm:$0xff]
      %v749 = vld [vmem:[%s708 + $0x61] sm:$0xff]
      %v750 = vld [vmem:[%s708 + $0x69] sm:$0xff]
      %v751 = vld [vmem:[%s708 + $0x79] sm:$0xff]
      %v752 = vld [vmem:[%s708 + $0x81] sm:$0xff]
      %v753 = vld [vmem:[%s708 + $0x91] sm:$0xff]
      %v754 = vld [vmem:[%s708 + $0x99] sm:$0xff]
      %v755 = vld [vmem:[%s708 + $0xa9] sm:$0xff]
      %v756 = vld [vmem:[%s708 + $0xb1] sm:$0xff]
      %v757 = vld [vmem:[%s708 + $0xc1] sm:$0xff]
      %v758 = vld [vmem:[%s708 + $0xc9] sm:$0xff]
      %v759 = vld [vmem:[%s708 + $0xd9] sm:$0xff]
      %v760 = vld [vmem:[%s708 + $0xe1] sm:$0xff]
      %v761 = vld [vmem:[%s708 + $0xf1] sm:$0xff]
      %v762 = vld [vmem:[%s708 + $0xf9] sm:$0xff]
      %v763 = vld [vmem:[%s708 + $0x109] sm:$0xff]
      %v764 = vld [vmem:[%s708 + $0x111] sm:$0xff]
      %v765 = vld [vmem:[%s708 + $0x121] sm:$0xff]
      %v766 = vld [vmem:[%s708 + $0x129] sm:$0xff]
      %v767 = vld [vmem:[%s708 + $0x139] sm:$0xff]
      %v768 = vld [vmem:[%s708 + $0x141] sm:$0xff]
      %v769 = vld [vmem:[%s708 + $0x151] sm:$0xff]
      %v770 = vld [vmem:[%s708 + $0x159] sm:$0xff]
      %v771 = vld [vmem:[%s708 + $0x169] sm:$0xff]
      %v772 = vld [vmem:[%s708 + $0x171] sm:$0xff]
      %v773 = vld [vmem:[%s708 + $0x2] sm:$0xff]
      %v774 = vld [vmem:[%s708 + $0xa] sm:$0xff]
      %v775 = vld [vmem:[%s708 + $0x1a] sm:$0xff]
      %v776 = vld [vmem:[%s708 + $0x22] sm:$0xff]
      %v777 = vld [vmem:[%s708 + $0x32] sm:$0xff]
      %v778 = vld [vmem:[%s708 + $0x3a] sm:$0xff]
      %v779 = vld [vmem:[%s708 + $0x4a] sm:$0xff]
      %v780 = vld [vmem:[%s708 + $0x52] sm:$0xff]
      %v781 = vld [vmem:[%s708 + $0x62] sm:$0xff]
      %v782 = vld [vmem:[%s708 + $0x6a] sm:$0xff]
      %v783 = vld [vmem:[%s708 + $0x7a] sm:$0xff]
      %v784 = vld [vmem:[%s708 + $0x82] sm:$0xff]
      %v785 = vld [vmem:[%s708 + $0x92] sm:$0xff]
      %v786 = vld [vmem:[%s708 + $0x9a] sm:$0xff]
      %v787 = vld [vmem:[%s708 + $0xaa] sm:$0xff]
      %v788 = vld [vmem:[%s708 + $0xb2] sm:$0xff]
      %v789 = vld [vmem:[%s708 + $0xc2] sm:$0xff]
      %v790 = vld [vmem:[%s708 + $0xca] sm:$0xff]
      %v791 = vld [vmem:[%s708 + $0xda] sm:$0xff]
      %v792 = vld [vmem:[%s708 + $0xe2] sm:$0xff]
      %v793 = vld [vmem:[%s708 + $0xf2] sm:$0xff]
      %v794 = vld [vmem:[%s708 + $0xfa] sm:$0xff]
      %v795 = vld [vmem:[%s708 + $0x10a] sm:$0xff]
      %v796 = vld [vmem:[%s708 + $0x112] sm:$0xff]
      %v797 = vld [vmem:[%s708 + $0x122] sm:$0xff]
      %v798 = vld [vmem:[%s708 + $0x12a] sm:$0xff]
      %v799 = vld [vmem:[%s708 + $0x13a] sm:$0xff]
      %v800 = vld [vmem:[%s708 + $0x142] sm:$0xff]
      %v801 = vld [vmem:[%s708 + $0x152] sm:$0xff]
      %v802 = vld [vmem:[%s708 + $0x15a] sm:$0xff]
      %v803 = vld [vmem:[%s708 + $0x16a] sm:$0xff]
      %v804 = vld [vmem:[%s708 + $0x172] sm:$0xff]
      %837 = vrot.lane.b32.xlu0 %v548, 64
      %v838 = vpop.permute.xlu0 %837
      %839 = vrot.lane.b32.xlu0 %v549, 64
      %v840 = vpop.permute.xlu0 %839
      %841 = vrot.lane.b32.xlu0 %v550, 64
      %v842 = vpop.permute.xlu0 %841
      %843 = vrot.lane.b32.xlu0 %v551, 64
      %v844 = vpop.permute.xlu0 %843
      %845 = vrot.lane.b32.xlu0 %v552, 64
      %v846 = vpop.permute.xlu0 %845
      %847 = vrot.lane.b32.xlu0 %v553, 64
      %v848 = vpop.permute.xlu0 %847
      %849 = vrot.lane.b32.xlu0 %v554, 64
      %v850 = vpop.permute.xlu0 %849
      %851 = vrot.lane.b32.xlu0 %v555, 64
      %v852 = vpop.permute.xlu0 %851
      %853 = vrot.lane.b32.xlu0 %v556, 64
      %v854 = vpop.permute.xlu0 %853
      %855 = vrot.lane.b32.xlu0 %v557, 64
      %v856 = vpop.permute.xlu0 %855
      %857 = vrot.lane.b32.xlu0 %v558, 64
      %v858 = vpop.permute.xlu0 %857
      %859 = vrot.lane.b32.xlu0 %v559, 64
      %v860 = vpop.permute.xlu0 %859
      %861 = vrot.lane.b32.xlu0 %v560, 64
      %v862 = vpop.permute.xlu0 %861
      %863 = vrot.lane.b32.xlu0 %v561, 64
      %v864 = vpop.permute.xlu0 %863
      %865 = vrot.lane.b32.xlu0 %v562, 64
      %v866 = vpop.permute.xlu0 %865
      %867 = vrot.lane.b32.xlu0 %v563, 64
      %v868 = vpop.permute.xlu0 %867
      %869 = vrot.lane.b32.xlu0 %v564, 64
      %v870 = vpop.permute.xlu0 %869
      %871 = vrot.lane.b32.xlu0 %v565, 64
      %v872 = vpop.permute.xlu0 %871
      %873 = vrot.lane.b32.xlu0 %v566, 64
      %v874 = vpop.permute.xlu0 %873
      %875 = vrot.lane.b32.xlu0 %v567, 64
      %v876 = vpop.permute.xlu0 %875
      %877 = vrot.lane.b32.xlu0 %v568, 64
      %v878 = vpop.permute.xlu0 %877
      %879 = vrot.lane.b32.xlu0 %v569, 64
      %v880 = vpop.permute.xlu0 %879
      %881 = vrot.lane.b32.xlu0 %v570, 64
      %v882 = vpop.permute.xlu0 %881
      %883 = vrot.lane.b32.xlu0 %v571, 64
      %v884 = vpop.permute.xlu0 %883
      %885 = vrot.lane.b32.xlu0 %v572, 64
      %v886 = vpop.permute.xlu0 %885
      %887 = vrot.lane.b32.xlu0 %v573, 64
      %v888 = vpop.permute.xlu0 %887
      %889 = vrot.lane.b32.xlu0 %v574, 64
      %v890 = vpop.permute.xlu0 %889
      %891 = vrot.lane.b32.xlu0 %v575, 64
      %v892 = vpop.permute.xlu0 %891
      %893 = vrot.lane.b32.xlu0 %v576, 64
      %v894 = vpop.permute.xlu0 %893
      %895 = vrot.lane.b32.xlu0 %v577, 64
      %v896 = vpop.permute.xlu0 %895
      %897 = vrot.lane.b32.xlu0 %v578, 64
      %v898 = vpop.permute.xlu0 %897
      %899 = vrot.lane.b32.xlu0 %v579, 64
      %v900 = vpop.permute.xlu0 %899
      %965 = vrot.lane.b32.xlu0 %v612, 64
      %v966 = vpop.permute.xlu0 %965
      %967 = vrot.lane.b32.xlu0 %v613, 64
      %v968 = vpop.permute.xlu0 %967
      %969 = vrot.lane.b32.xlu0 %v614, 64
      %v970 = vpop.permute.xlu0 %969
      %971 = vrot.lane.b32.xlu0 %v615, 64
      %v972 = vpop.permute.xlu0 %971
      %973 = vrot.lane.b32.xlu0 %v616, 64
      %v974 = vpop.permute.xlu0 %973
      %975 = vrot.lane.b32.xlu0 %v617, 64
      %v976 = vpop.permute.xlu0 %975
      %977 = vrot.lane.b32.xlu0 %v618, 64
      %v978 = vpop.permute.xlu0 %977
      %979 = vrot.lane.b32.xlu0 %v619, 64
      %v980 = vpop.permute.xlu0 %979
      %981 = vrot.lane.b32.xlu0 %v620, 64
      %v982 = vpop.permute.xlu0 %981
      %983 = vrot.lane.b32.xlu0 %v621, 64
      %v984 = vpop.permute.xlu0 %983
      %985 = vrot.lane.b32.xlu0 %v622, 64
      %v986 = vpop.permute.xlu0 %985
      %987 = vrot.lane.b32.xlu0 %v623, 64
      %v988 = vpop.permute.xlu0 %987
      %989 = vrot.lane.b32.xlu0 %v624, 64
      %v990 = vpop.permute.xlu0 %989
      %991 = vrot.lane.b32.xlu0 %v625, 64
      %v992 = vpop.permute.xlu0 %991
      %993 = vrot.lane.b32.xlu0 %v626, 64
      %v994 = vpop.permute.xlu0 %993
      %995 = vrot.lane.b32.xlu0 %v627, 64
      %v996 = vpop.permute.xlu0 %995
      %997 = vrot.lane.b32.xlu0 %v628, 64
      %v998 = vpop.permute.xlu0 %997
      %999 = vrot.lane.b32.xlu0 %v629, 64
      %v1000 = vpop.permute.xlu0 %999
      %1001 = vrot.lane.b32.xlu0 %v630, 64
      %v1002 = vpop.permute.xlu0 %1001
      %1003 = vrot.lane.b32.xlu0 %v631, 64
      %v1004 = vpop.permute.xlu0 %1003
      %1005 = vrot.lane.b32.xlu0 %v632, 64
      %v1006 = vpop.permute.xlu0 %1005
      %1007 = vrot.lane.b32.xlu0 %v633, 64
      %v1008 = vpop.permute.xlu0 %1007
      %1009 = vrot.lane.b32.xlu0 %v634, 64
      %v1010 = vpop.permute.xlu0 %1009
      %1011 = vrot.lane.b32.xlu0 %v635, 64
      %v1012 = vpop.permute.xlu0 %1011
      %1013 = vrot.lane.b32.xlu0 %v636, 64
      %v1014 = vpop.permute.xlu0 %1013
      %1015 = vrot.lane.b32.xlu0 %v637, 64
      %v1016 = vpop.permute.xlu0 %1015
      %1017 = vrot.lane.b32.xlu0 %v638, 64
      %v1018 = vpop.permute.xlu0 %1017
      %1019 = vrot.lane.b32.xlu0 %v639, 64
      %v1020 = vpop.permute.xlu0 %1019
      %1021 = vrot.lane.b32.xlu0 %v640, 64
      %v1022 = vpop.permute.xlu0 %1021
      %1023 = vrot.lane.b32.xlu0 %v641, 64
      %v1024 = vpop.permute.xlu0 %1023
      %1025 = vrot.lane.b32.xlu0 %v642, 64
      %v1026 = vpop.permute.xlu0 %1025
      %1027 = vrot.lane.b32.xlu0 %v643, 64
      %v1028 = vpop.permute.xlu0 %1027
      %1093 = vrot.lane.b32.xlu0 %v676, 64
      %v1094 = vpop.permute.xlu0 %1093
      %1095 = vrot.lane.b32.xlu0 %v677, 64
      %v1096 = vpop.permute.xlu0 %1095
      %1097 = vrot.lane.b32.xlu0 %v678, 64
      %v1098 = vpop.permute.xlu0 %1097
      %1099 = vrot.lane.b32.xlu0 %v679, 64
      %v1100 = vpop.permute.xlu0 %1099
      %1101 = vrot.lane.b32.xlu0 %v680, 64
      %v1102 = vpop.permute.xlu0 %1101
      %1103 = vrot.lane.b32.xlu0 %v681, 64
      %v1104 = vpop.permute.xlu0 %1103
      %1105 = vrot.lane.b32.xlu0 %v682, 64
      %v1106 = vpop.permute.xlu0 %1105
      %1107 = vrot.lane.b32.xlu0 %v683, 64
      %v1108 = vpop.permute.xlu0 %1107
      %1109 = vrot.lane.b32.xlu0 %v684, 64
      %v1110 = vpop.permute.xlu0 %1109
      %1111 = vrot.lane.b32.xlu0 %v685, 64
      %v1112 = vpop.permute.xlu0 %1111
      %1113 = vrot.lane.b32.xlu0 %v686, 64
      %v1114 = vpop.permute.xlu0 %1113
      %1115 = vrot.lane.b32.xlu0 %v687, 64
      %v1116 = vpop.permute.xlu0 %1115
      %1117 = vrot.lane.b32.xlu0 %v688, 64
      %v1118 = vpop.permute.xlu0 %1117
      %1119 = vrot.lane.b32.xlu0 %v689, 64
      %v1120 = vpop.permute.xlu0 %1119
      %1121 = vrot.lane.b32.xlu0 %v690, 64
      %v1122 = vpop.permute.xlu0 %1121
      %1123 = vrot.lane.b32.xlu0 %v691, 64
      %v1124 = vpop.permute.xlu0 %1123
      %1125 = vrot.lane.b32.xlu0 %v692, 64
      %v1126 = vpop.permute.xlu0 %1125
      %1127 = vrot.lane.b32.xlu0 %v693, 64
      %v1128 = vpop.permute.xlu0 %1127
      %1129 = vrot.lane.b32.xlu0 %v694, 64
      %v1130 = vpop.permute.xlu0 %1129
      %1131 = vrot.lane.b32.xlu0 %v695, 64
      %v1132 = vpop.permute.xlu0 %1131
      %1133 = vrot.lane.b32.xlu0 %v696, 64
      %v1134 = vpop.permute.xlu0 %1133
      %1135 = vrot.lane.b32.xlu0 %v697, 64
      %v1136 = vpop.permute.xlu0 %1135
      %1137 = vrot.lane.b32.xlu0 %v698, 64
      %v1138 = vpop.permute.xlu0 %1137
      %1139 = vrot.lane.b32.xlu0 %v699, 64
      %v1140 = vpop.permute.xlu0 %1139
      %1141 = vrot.lane.b32.xlu0 %v700, 64
      %v1142 = vpop.permute.xlu0 %1141
      %1143 = vrot.lane.b32.xlu0 %v701, 64
      %v1144 = vpop.permute.xlu0 %1143
      %1145 = vrot.lane.b32.xlu0 %v702, 64
      %v1146 = vpop.permute.xlu0 %1145
      %1147 = vrot.lane.b32.xlu0 %v703, 64
      %v1148 = vpop.permute.xlu0 %1147
      %1149 = vrot.lane.b32.xlu0 %v704, 64
      %v1150 = vpop.permute.xlu0 %1149
      %1151 = vrot.lane.b32.xlu0 %v705, 64
      %v1152 = vpop.permute.xlu0 %1151
      %1153 = vrot.lane.b32.xlu0 %v706, 64
      %v1154 = vpop.permute.xlu0 %1153
      %1155 = vrot.lane.b32.xlu0 %v707, 64
      %v1156 = vpop.permute.xlu0 %1155
      %1221 = vrot.lane.b32.xlu0 %v741, 64
      %v1222 = vpop.permute.xlu0 %1221
      %1223 = vrot.lane.b32.xlu0 %v742, 64
      %v1224 = vpop.permute.xlu0 %1223
      %1225 = vrot.lane.b32.xlu0 %v743, 64
      %v1226 = vpop.permute.xlu0 %1225
      %1227 = vrot.lane.b32.xlu0 %v744, 64
      %v1228 = vpop.permute.xlu0 %1227
      %1229 = vrot.lane.b32.xlu0 %v745, 64
      %v1230 = vpop.permute.xlu0 %1229
      %1231 = vrot.lane.b32.xlu0 %v746, 64
      %v1232 = vpop.permute.xlu0 %1231
      %1233 = vrot.lane.b32.xlu0 %v747, 64
      %v1234 = vpop.permute.xlu0 %1233
      %1235 = vrot.lane.b32.xlu0 %v748, 64
      %v1236 = vpop.permute.xlu0 %1235
      %1237 = vrot.lane.b32.xlu0 %v749, 64
      %v1238 = vpop.permute.xlu0 %1237
      %1239 = vrot.lane.b32.xlu0 %v750, 64
      %v1240 = vpop.permute.xlu0 %1239
      %1241 = vrot.lane.b32.xlu0 %v751, 64
      %v1242 = vpop.permute.xlu0 %1241
      %1243 = vrot.lane.b32.xlu0 %v752, 64
      %v1244 = vpop.permute.xlu0 %1243
      %1245 = vrot.lane.b32.xlu0 %v753, 64
      %v1246 = vpop.permute.xlu0 %1245
      %1247 = vrot.lane.b32.xlu0 %v754, 64
      %v1248 = vpop.permute.xlu0 %1247
      %1249 = vrot.lane.b32.xlu0 %v755, 64
      %v1250 = vpop.permute.xlu0 %1249
      %1251 = vrot.lane.b32.xlu0 %v756, 64
      %v1252 = vpop.permute.xlu0 %1251
      %1253 = vrot.lane.b32.xlu0 %v757, 64
      %v1254 = vpop.permute.xlu0 %1253
      %1255 = vrot.lane.b32.xlu0 %v758, 64
      %v1256 = vpop.permute.xlu0 %1255
      %1257 = vrot.lane.b32.xlu0 %v759, 64
      %v1258 = vpop.permute.xlu0 %1257
      %1259 = vrot.lane.b32.xlu0 %v760, 64
      %v1260 = vpop.permute.xlu0 %1259
      %1261 = vrot.lane.b32.xlu0 %v761, 64
      %v1262 = vpop.permute.xlu0 %1261
      %1263 = vrot.lane.b32.xlu0 %v762, 64
      %v1264 = vpop.permute.xlu0 %1263
      %1265 = vrot.lane.b32.xlu0 %v763, 64
      %v1266 = vpop.permute.xlu0 %1265
      %1267 = vrot.lane.b32.xlu0 %v764, 64
      %v1268 = vpop.permute.xlu0 %1267
      %1269 = vrot.lane.b32.xlu0 %v765, 64
      %v1270 = vpop.permute.xlu0 %1269
      %1271 = vrot.lane.b32.xlu0 %v766, 64
      %v1272 = vpop.permute.xlu0 %1271
      %1273 = vrot.lane.b32.xlu0 %v767, 64
      %v1274 = vpop.permute.xlu0 %1273
      %1275 = vrot.lane.b32.xlu0 %v768, 64
      %v1276 = vpop.permute.xlu0 %1275
      %1277 = vrot.lane.b32.xlu0 %v769, 64
      %v1278 = vpop.permute.xlu0 %1277
      %1279 = vrot.lane.b32.xlu0 %v770, 64
      %v1280 = vpop.permute.xlu0 %1279
      %1281 = vrot.lane.b32.xlu0 %v771, 64
      %v1282 = vpop.permute.xlu0 %1281
      %1283 = vrot.lane.b32.xlu0 %v772, 64
      %v1284 = vpop.permute.xlu0 %1283
      %v1317 = vsel %vm437, %v516, %v838
      %v1318 = vsel %vm437, %v517, %v840
      %v1319 = vsel %vm437, %v518, %v842
      %v1320 = vsel %vm437, %v519, %v844
      %v1321 = vsel %vm437, %v520, %v846
      %v1322 = vsel %vm437, %v521, %v848
      %v1323 = vsel %vm437, %v522, %v850
      %v1324 = vsel %vm437, %v523, %v852
      %v1325 = vsel %vm437, %v524, %v854
      %v1326 = vsel %vm437, %v525, %v856
      %v1327 = vsel %vm437, %v526, %v858
      %v1328 = vsel %vm437, %v527, %v860
      %v1329 = vsel %vm437, %v528, %v862
      %v1330 = vsel %vm437, %v529, %v864
      %v1331 = vsel %vm437, %v530, %v866
      %v1332 = vsel %vm437, %v531, %v868
      %v1333 = vsel %vm437, %v532, %v870
      %v1334 = vsel %vm437, %v533, %v872
      %v1335 = vsel %vm437, %v534, %v874
      %v1336 = vsel %vm437, %v535, %v876
      %v1337 = vsel %vm437, %v536, %v878
      %v1338 = vsel %vm437, %v537, %v880
      %v1339 = vsel %vm437, %v538, %v882
      %v1340 = vsel %vm437, %v539, %v884
      %v1341 = vsel %vm437, %v540, %v886
      %v1342 = vsel %vm437, %v541, %v888
      %v1343 = vsel %vm437, %v542, %v890
      %v1344 = vsel %vm437, %v543, %v892
      %v1345 = vsel %vm437, %v544, %v894
      %v1346 = vsel %vm437, %v545, %v896
      %v1347 = vsel %vm437, %v546, %v898
      %v1348 = vsel %vm437, %v547, %v900
      %v1349 = vsel %vm437, %v580, %v966
      %v1350 = vsel %vm437, %v581, %v968
      %v1351 = vsel %vm437, %v582, %v970
      %v1352 = vsel %vm437, %v583, %v972
      %v1353 = vsel %vm437, %v584, %v974
      %v1354 = vsel %vm437, %v585, %v976
      %v1355 = vsel %vm437, %v586, %v978
      %v1356 = vsel %vm437, %v587, %v980
      %v1357 = vsel %vm437, %v588, %v982
      %v1358 = vsel %vm437, %v589, %v984
      %v1359 = vsel %vm437, %v590, %v986
      %v1360 = vsel %vm437, %v591, %v988
      %v1361 = vsel %vm437, %v592, %v990
      %v1362 = vsel %vm437, %v593, %v992
      %v1363 = vsel %vm437, %v594, %v994
      %v1364 = vsel %vm437, %v595, %v996
      %v1365 = vsel %vm437, %v596, %v998
      %v1366 = vsel %vm437, %v597, %v1000
      %v1367 = vsel %vm437, %v598, %v1002
      %v1368 = vsel %vm437, %v599, %v1004
      %v1369 = vsel %vm437, %v600, %v1006
      %v1370 = vsel %vm437, %v601, %v1008
      %v1371 = vsel %vm437, %v602, %v1010
      %v1372 = vsel %vm437, %v603, %v1012
      %v1373 = vsel %vm437, %v604, %v1014
      %v1374 = vsel %vm437, %v605, %v1016
      %v1375 = vsel %vm437, %v606, %v1018
      %v1376 = vsel %vm437, %v607, %v1020
      %v1377 = vsel %vm437, %v608, %v1022
      %v1378 = vsel %vm437, %v609, %v1024
      %v1379 = vsel %vm437, %v610, %v1026
      %v1380 = vsel %vm437, %v611, %v1028
      %v1381 = vsel %vm437, %v644, %v1094
      %v1382 = vsel %vm437, %v645, %v1096
      %v1383 = vsel %vm437, %v646, %v1098
      %v1384 = vsel %vm437, %v647, %v1100
      %v1385 = vsel %vm437, %v648, %v1102
      %v1386 = vsel %vm437, %v649, %v1104
      %v1387 = vsel %vm437, %v650, %v1106
      %v1388 = vsel %vm437, %v651, %v1108
      %v1389 = vsel %vm437, %v652, %v1110
      %v1390 = vsel %vm437, %v653, %v1112
      %v1391 = vsel %vm437, %v654, %v1114
      %v1392 = vsel %vm437, %v655, %v1116
      %v1393 = vsel %vm437, %v656, %v1118
      %v1394 = vsel %vm437, %v657, %v1120
      %v1395 = vsel %vm437, %v658, %v1122
      %v1396 = vsel %vm437, %v659, %v1124
      %v1397 = vsel %vm437, %v660, %v1126
      %v1398 = vsel %vm437, %v661, %v1128
      %v1399 = vsel %vm437, %v662, %v1130
      %v1400 = vsel %vm437, %v663, %v1132
      %v1401 = vsel %vm437, %v664, %v1134
      %v1402 = vsel %vm437, %v665, %v1136
      %v1403 = vsel %vm437, %v666, %v1138
      %v1404 = vsel %vm437, %v667, %v1140
      %v1405 = vsel %vm437, %v668, %v1142
      %v1406 = vsel %vm437, %v669, %v1144
      %v1407 = vsel %vm437, %v670, %v1146
      %v1408 = vsel %vm437, %v671, %v1148
      %v1409 = vsel %vm437, %v672, %v1150
      %v1410 = vsel %vm437, %v673, %v1152
      %v1411 = vsel %vm437, %v674, %v1154
      %v1412 = vsel %vm437, %v675, %v1156
      %v1413 = vsel %vm437, %v709, %v1222
      %v1414 = vsel %vm437, %v710, %v1224
      %v1415 = vsel %vm437, %v711, %v1226
      %v1416 = vsel %vm437, %v712, %v1228
      %v1417 = vsel %vm437, %v713, %v1230
      %v1418 = vsel %vm437, %v714, %v1232
      %v1419 = vsel %vm437, %v715, %v1234
      %v1420 = vsel %vm437, %v716, %v1236
      %v1421 = vsel %vm437, %v717, %v1238
      %v1422 = vsel %vm437, %v718, %v1240
      %v1423 = vsel %vm437, %v719, %v1242
      %v1424 = vsel %vm437, %v720, %v1244
      %v1425 = vsel %vm437, %v721, %v1246
      %v1426 = vsel %vm437, %v722, %v1248
      %v1427 = vsel %vm437, %v723, %v1250
      %v1428 = vsel %vm437, %v724, %v1252
      %v1429 = vsel %vm437, %v725, %v1254
      %v1430 = vsel %vm437, %v726, %v1256
      %v1431 = vsel %vm437, %v727, %v1258
      %v1432 = vsel %vm437, %v728, %v1260
      %v1433 = vsel %vm437, %v729, %v1262
      %v1434 = vsel %vm437, %v730, %v1264
      %v1435 = vsel %vm437, %v731, %v1266
      %v1436 = vsel %vm437, %v732, %v1268
      %v1437 = vsel %vm437, %v733, %v1270
      %v1438 = vsel %vm437, %v734, %v1272
      %v1439 = vsel %vm437, %v735, %v1274
      %v1440 = vsel %vm437, %v736, %v1276
      %v1441 = vsel %vm437, %v737, %v1278
      %v1442 = vsel %vm437, %v738, %v1280
      %v1443 = vsel %vm437, %v739, %v1282
      %v1444 = vsel %vm437, %v740, %v1284
      %v1445 = vpack.c.bf16 %v1318, %v1317
      %v1446 = vpack.c.bf16 %v1350, %v1349
      %v1447 = vpack.c.bf16 %v1382, %v1381
      %v1448 = vpack.c.bf16 %v1414, %v1413
      %v1449 = vpack.c.bf16 %v774, %v773
      %v1450 = vpack.c.bf16 %v1320, %v1319
      %v1451 = vpack.c.bf16 %v1352, %v1351
      %v1452 = vpack.c.bf16 %v1384, %v1383
      %v1453 = vpack.c.bf16 %v1416, %v1415
      %v1454 = vpack.c.bf16 %v776, %v775
      %v1455 = vpack.c.bf16 %v1322, %v1321
      %v1456 = vpack.c.bf16 %v1354, %v1353
      %v1457 = vpack.c.bf16 %v1386, %v1385
      %v1458 = vpack.c.bf16 %v1418, %v1417
      %v1459 = vpack.c.bf16 %v778, %v777
      %v1460 = vpack.c.bf16 %v1324, %v1323
      %v1461 = vpack.c.bf16 %v1356, %v1355
      %v1462 = vpack.c.bf16 %v1388, %v1387
      %v1463 = vpack.c.bf16 %v1420, %v1419
      %v1464 = vpack.c.bf16 %v780, %v779
      %v1465 = vpack.c.bf16 %v1326, %v1325
      %v1466 = vpack.c.bf16 %v1358, %v1357
      %v1467 = vpack.c.bf16 %v1390, %v1389
      %v1468 = vpack.c.bf16 %v1422, %v1421
      %v1469 = vpack.c.bf16 %v782, %v781
      %v1470 = vpack.c.bf16 %v1328, %v1327
      %v1471 = vpack.c.bf16 %v1360, %v1359
      %v1472 = vpack.c.bf16 %v1392, %v1391
      %v1473 = vpack.c.bf16 %v1424, %v1423
      %v1474 = vpack.c.bf16 %v784, %v783
      %v1475 = vpack.c.bf16 %v1330, %v1329
      %v1476 = vpack.c.bf16 %v1362, %v1361
      %v1477 = vpack.c.bf16 %v1394, %v1393
      %v1478 = vpack.c.bf16 %v1426, %v1425
      %v1479 = vpack.c.bf16 %v786, %v785
      %v1480 = vpack.c.bf16 %v1332, %v1331
      %v1481 = vpack.c.bf16 %v1364, %v1363
      %v1482 = vpack.c.bf16 %v1396, %v1395
      %v1483 = vpack.c.bf16 %v1428, %v1427
      %v1484 = vpack.c.bf16 %v788, %v787
      %v1485 = vpack.c.bf16 %v1334, %v1333
      %v1486 = vpack.c.bf16 %v1366, %v1365
      %v1487 = vpack.c.bf16 %v1398, %v1397
      %v1488 = vpack.c.bf16 %v1430, %v1429
      %v1489 = vpack.c.bf16 %v790, %v789
      %v1490 = vpack.c.bf16 %v1336, %v1335
      %v1491 = vpack.c.bf16 %v1368, %v1367
      %v1492 = vpack.c.bf16 %v1400, %v1399
      %v1493 = vpack.c.bf16 %v1432, %v1431
      %v1494 = vpack.c.bf16 %v792, %v791
      %v1495 = vpack.c.bf16 %v1338, %v1337
      %v1496 = vpack.c.bf16 %v1370, %v1369
      %v1497 = vpack.c.bf16 %v1402, %v1401
      %v1498 = vpack.c.bf16 %v1434, %v1433
      %v1499 = vpack.c.bf16 %v794, %v793
      %v1500 = vpack.c.bf16 %v1340, %v1339
      %v1501 = vpack.c.bf16 %v1372, %v1371
      %v1502 = vpack.c.bf16 %v1404, %v1403
      %v1503 = vpack.c.bf16 %v1436, %v1435
      %v1504 = vpack.c.bf16 %v796, %v795
      %v1505 = vpack.c.bf16 %v1342, %v1341
      %v1506 = vpack.c.bf16 %v1374, %v1373
      %v1507 = vpack.c.bf16 %v1406, %v1405
      %v1508 = vpack.c.bf16 %v1438, %v1437
      %v1509 = vpack.c.bf16 %v798, %v797
      %v1510 = vpack.c.bf16 %v1344, %v1343
      %v1511 = vpack.c.bf16 %v1376, %v1375
      %v1512 = vpack.c.bf16 %v1408, %v1407
      %v1513 = vpack.c.bf16 %v1440, %v1439
      %v1514 = vpack.c.bf16 %v800, %v799
      %v1515 = vpack.c.bf16 %v1346, %v1345
      %v1516 = vpack.c.bf16 %v1378, %v1377
      %v1517 = vpack.c.bf16 %v1410, %v1409
      %v1518 = vpack.c.bf16 %v1442, %v1441
      %v1519 = vpack.c.bf16 %v802, %v801
      %v1520 = vpack.c.bf16 %v1348, %v1347
      %v1521 = vpack.c.bf16 %v1380, %v1379
      %v1522 = vpack.c.bf16 %v1412, %v1411
      %v1523 = vpack.c.bf16 %v1444, %v1443
      %v1524 = vpack.c.bf16 %v804, %v803
      %v1525 = vld [vmem:[%s3] sm:$0xf]
      %v1526 = vld [vmem:[%s3 + $0x4] sm:$0xf]
      %v1527 = vld [vmem:[%s3 + $0x8] sm:$0xf]
      %v1528 = vld [vmem:[%s3 + $0xc] sm:$0xf]
      %v1529 = vld [vmem:[%s3 + $0x10] sm:$0xf]
      %v1530 = vld [vmem:[%s3 + $0x14] sm:$0xf]
      %v1531 = vld [vmem:[%s3 + $0x18] sm:$0xf]
      %v1532 = vld [vmem:[%s3 + $0x1c] sm:$0xf]
      %v1533 = vld [vmem:[%s3 + $0x20] sm:$0xf]
      %v1534 = vld [vmem:[%s3 + $0x24] sm:$0xf]
      %v1535 = vld [vmem:[%s3 + $0x28] sm:$0xf]
      %v1536 = vld [vmem:[%s3 + $0x2c] sm:$0xf]
      %v1537 = vld [vmem:[%s3 + $0x30] sm:$0xf]
      %v1538 = vld [vmem:[%s3 + $0x34] sm:$0xf]
      %v1539 = vld [vmem:[%s3 + $0x38] sm:$0xf]
      %v1540 = vld [vmem:[%s3 + $0x3c] sm:$0xf]
      %v1541 = vld [vmem:[%s3 + $0x40] sm:$0xf]
      %v1542 = vld [vmem:[%s3 + $0x44] sm:$0xf]
      %v1543 = vld [vmem:[%s3 + $0x48] sm:$0xf]
      %v1544 = vld [vmem:[%s3 + $0x4c] sm:$0xf]
      %v1545 = vld [vmem:[%s3 + $0x50] sm:$0xf]
      %v1546 = vld [vmem:[%s3 + $0x54] sm:$0xf]
      %v1547 = vld [vmem:[%s3 + $0x58] sm:$0xf]
      %v1548 = vld [vmem:[%s3 + $0x5c] sm:$0xf]
      %v1549 = vld [vmem:[%s3 + $0x60] sm:$0xf]
      %v1550 = vld [vmem:[%s3 + $0x64] sm:$0xf]
      %v1551 = vld [vmem:[%s3 + $0x68] sm:$0xf]
      %v1552 = vld [vmem:[%s3 + $0x6c] sm:$0xf]
      %v1553 = vld [vmem:[%s3 + $0x70] sm:$0xf]
      %v1554 = vld [vmem:[%s3 + $0x74] sm:$0xf]
      %v1555 = vld [vmem:[%s3 + $0x78] sm:$0xf]
      %v1556 = vld [vmem:[%s3 + $0x7c] sm:$0xf]
      %v1557 = vld [vmem:[%s3 + $0x80] sm:$0xf]
      %v1558 = vld [vmem:[%s3 + $0x84] sm:$0xf]
      %v1559 = vld [vmem:[%s3 + $0x88] sm:$0xf]
      %v1560 = vld [vmem:[%s3 + $0x8c] sm:$0xf]
      %v1561 = vld [vmem:[%s3 + $0x90] sm:$0xf]
      %v1562 = vld [vmem:[%s3 + $0x94] sm:$0xf]
      %v1563 = vld [vmem:[%s3 + $0x98] sm:$0xf]
      %v1564 = vld [vmem:[%s3 + $0x9c] sm:$0xf]
      %v1565 = vld [vmem:[%s3 + $0xa0] sm:$0xf]
      %v1566 = vld [vmem:[%s3 + $0xa4] sm:$0xf]
      %v1567 = vld [vmem:[%s3 + $0xa8] sm:$0xf]
      %v1568 = vld [vmem:[%s3 + $0xac] sm:$0xf]
      %v1569 = vld [vmem:[%s3 + $0xb0] sm:$0xf]
      %v1570 = vld [vmem:[%s3 + $0xb4] sm:$0xf]
      %v1571 = vld [vmem:[%s3 + $0xb8] sm:$0xf]
      %v1572 = vld [vmem:[%s3 + $0xbc] sm:$0xf]
      %v1573 = vld [vmem:[%s3 + $0xc0] sm:$0xf]
      %v1574 = vld [vmem:[%s3 + $0xc4] sm:$0xf]
      %v1575 = vld [vmem:[%s3 + $0xc8] sm:$0xf]
      %v1576 = vld [vmem:[%s3 + $0xcc] sm:$0xf]
      %v1577 = vld [vmem:[%s3 + $0xd0] sm:$0xf]
      %v1578 = vld [vmem:[%s3 + $0xd4] sm:$0xf]
      %v1579 = vld [vmem:[%s3 + $0xd8] sm:$0xf]
      %v1580 = vld [vmem:[%s3 + $0xdc] sm:$0xf]
      %v1581 = vld [vmem:[%s3 + $0xe0] sm:$0xf]
      %v1582 = vld [vmem:[%s3 + $0xe4] sm:$0xf]
      %v1583 = vld [vmem:[%s3 + $0xe8] sm:$0xf]
      %v1584 = vld [vmem:[%s3 + $0xec] sm:$0xf]
      %v1585 = vld [vmem:[%s3 + $0xf0] sm:$0xf]
      %v1586 = vld [vmem:[%s3 + $0xf4] sm:$0xf]
      %v1587 = vld [vmem:[%s3 + $0xf8] sm:$0xf]
      %v1588 = vld [vmem:[%s3 + $0xfc] sm:$0xf]
      %v1589 = vld [vmem:[%s3 + $0x100] sm:$0xf]
      %v1590 = vld [vmem:[%s3 + $0x104] sm:$0xf]
      %v1591 = vld [vmem:[%s3 + $0x108] sm:$0xf]
      %v1592 = vld [vmem:[%s3 + $0x10c] sm:$0xf]
      %v1593 = vld [vmem:[%s3 + $0x110] sm:$0xf]
      %v1594 = vld [vmem:[%s3 + $0x114] sm:$0xf]
      %v1595 = vld [vmem:[%s3 + $0x118] sm:$0xf]
      %v1596 = vld [vmem:[%s3 + $0x11c] sm:$0xf]
      %v1669 = vunpack.c.l.b16 %v1525
      %v1670 = vunpack.c.l.b16 %v1526
      %v1671 = vunpack.c.l.b16 %v1527
      %v1672 = vunpack.c.l.b16 %v1528
      %v1673 = vunpack.c.l.b16 %v1529
      %v1674 = vunpack.c.l.b16 %v1530
      %v1675 = vunpack.c.l.b16 %v1531
      %v1676 = vunpack.c.l.b16 %v1532
      %v1677 = vunpack.c.l.b16 %v1533
      %v1678 = vunpack.c.l.b16 %v1534
      %v1679 = vunpack.c.l.b16 %v1535
      %v1680 = vunpack.c.l.b16 %v1536
      %v1681 = vunpack.c.l.b16 %v1537
      %v1682 = vunpack.c.l.b16 %v1538
      %v1683 = vunpack.c.l.b16 %v1539
      %v1684 = vunpack.c.l.b16 %v1540
      %v1685 = vunpack.c.l.b16 %v1541
      %v1686 = vunpack.c.l.b16 %v1542
      %v1687 = vunpack.c.l.b16 %v1543
      %v1688 = vunpack.c.l.b16 %v1544
      %v1689 = vunpack.c.l.b16 %v1545
      %v1690 = vunpack.c.l.b16 %v1546
      %v1691 = vunpack.c.l.b16 %v1547
      %v1692 = vunpack.c.l.b16 %v1548
      %v1693 = vunpack.c.l.b16 %v1549
      %v1694 = vunpack.c.l.b16 %v1550
      %v1695 = vunpack.c.l.b16 %v1551
      %v1696 = vunpack.c.l.b16 %v1552
      %v1697 = vunpack.c.l.b16 %v1553
      %v1698 = vunpack.c.l.b16 %v1554
      %v1699 = vunpack.c.l.b16 %v1555
      %v1700 = vunpack.c.l.b16 %v1556
      %v1701 = vunpack.c.l.b16 %v1557
      %v1702 = vunpack.c.l.b16 %v1558
      %v1703 = vunpack.c.l.b16 %v1559
      %v1704 = vunpack.c.l.b16 %v1560
      %v1705 = vunpack.c.l.b16 %v1561
      %v1706 = vunpack.c.l.b16 %v1562
      %v1707 = vunpack.c.l.b16 %v1563
      %v1708 = vunpack.c.l.b16 %v1564
      %v1709 = vunpack.c.l.b16 %v1565
      %v1710 = vunpack.c.l.b16 %v1566
      %v1711 = vunpack.c.l.b16 %v1567
      %v1712 = vunpack.c.l.b16 %v1568
      %v1713 = vunpack.c.l.b16 %v1569
      %v1714 = vunpack.c.l.b16 %v1570
      %v1715 = vunpack.c.l.b16 %v1571
      %v1716 = vunpack.c.l.b16 %v1572
      %v1717 = vunpack.c.l.b16 %v1573
      %v1718 = vunpack.c.l.b16 %v1574
      %v1719 = vunpack.c.l.b16 %v1575
      %v1720 = vunpack.c.l.b16 %v1576
      %v1721 = vunpack.c.l.b16 %v1577
      %v1722 = vunpack.c.l.b16 %v1578
      %v1723 = vunpack.c.l.b16 %v1579
      %v1724 = vunpack.c.l.b16 %v1580
      %v1725 = vunpack.c.l.b16 %v1581
      %v1726 = vunpack.c.l.b16 %v1582
      %v1727 = vunpack.c.l.b16 %v1583
      %v1728 = vunpack.c.l.b16 %v1584
      %v1729 = vunpack.c.l.b16 %v1585
      %v1730 = vunpack.c.l.b16 %v1586
      %v1731 = vunpack.c.l.b16 %v1587
      %v1732 = vunpack.c.l.b16 %v1588
      %v1733 = vunpack.c.l.b16 %v1589
      %v1734 = vunpack.c.l.b16 %v1590
      %v1735 = vunpack.c.l.b16 %v1591
      %v1736 = vunpack.c.l.b16 %v1592
      %v1737 = vunpack.c.l.b16 %v1593
      %v1738 = vunpack.c.l.b16 %v1594
      %v1739 = vunpack.c.l.b16 %v1595
      %v1740 = vunpack.c.l.b16 %v1596
      %v1741 = vpack.c.b16 %v1670, %v1669
      %v1742 = vpack.c.b16 %v1672, %v1671
      %v1743 = vpack.c.b16 %v1674, %v1673
      %v1744 = vpack.c.b16 %v1676, %v1675
      %v1745 = vpack.c.b16 %v1678, %v1677
      %v1746 = vpack.c.b16 %v1680, %v1679
      %v1747 = vpack.c.b16 %v1682, %v1681
      %v1748 = vpack.c.b16 %v1684, %v1683
      %v1749 = vpack.c.b16 %v1686, %v1685
      %v1750 = vpack.c.b16 %v1688, %v1687
      %v1751 = vpack.c.b16 %v1690, %v1689
      %v1752 = vpack.c.b16 %v1692, %v1691
      %v1753 = vpack.c.b16 %v1694, %v1693
      %v1754 = vpack.c.b16 %v1696, %v1695
      %v1755 = vpack.c.b16 %v1698, %v1697
      %v1756 = vpack.c.b16 %v1700, %v1699
      %v1757 = vpack.c.b16 %v1702, %v1701
      %v1758 = vpack.c.b16 %v1704, %v1703
      %v1759 = vpack.c.b16 %v1706, %v1705
      %v1760 = vpack.c.b16 %v1708, %v1707
      %v1761 = vpack.c.b16 %v1710, %v1709
      %v1762 = vpack.c.b16 %v1712, %v1711
      %v1763 = vpack.c.b16 %v1714, %v1713
      %v1764 = vpack.c.b16 %v1716, %v1715
      %v1765 = vpack.c.b16 %v1718, %v1717
      %v1766 = vpack.c.b16 %v1720, %v1719
      %v1767 = vpack.c.b16 %v1722, %v1721
      %v1768 = vpack.c.b16 %v1724, %v1723
      %v1769 = vpack.c.b16 %v1726, %v1725
      %v1770 = vpack.c.b16 %v1728, %v1727
      %v1771 = vpack.c.b16 %v1730, %v1729
      %v1772 = vpack.c.b16 %v1732, %v1731
      %v1773 = vpack.c.b16 %v1734, %v1733
      %v1774 = vpack.c.b16 %v1736, %v1735
      %v1775 = vpack.c.b16 %v1738, %v1737
      %v1776 = vpack.c.b16 %v1740, %v1739
      %v1814 = vsel %vm437, %v1449, 0
      %v1817 = vsel %vm437, %v1454, 0
      %v1820 = vsel %vm437, %v1459, 0
      %v1823 = vsel %vm437, %v1464, 0
      %v1826 = vsel %vm437, %v1469, 0
      %v1829 = vsel %vm437, %v1474, 0
      %v1832 = vsel %vm437, %v1479, 0
      %v1835 = vsel %vm437, %v1484, 0
      %v1838 = vsel %vm437, %v1489, 0
      %v1841 = vsel %vm437, %v1494, 0
      %v1844 = vsel %vm437, %v1499, 0
      %v1847 = vsel %vm437, %v1504, 0
      %v1850 = vsel %vm437, %v1509, 0
      %v1853 = vsel %vm437, %v1514, 0
      %v1856 = vsel %vm437, %v1519, 0
      %v1859 = vsel %vm437, %v1524, 0
      %1861 = vmatpush.bf16.msra.mxu0 %v1748
      %1862 = vmatpush.bf16.msra.mxu0 %v1747
      %1863 = vmatpush.bf16.msra.mxu0 %v1746
      %1864 = vmatpush.bf16.msra.mxu0 %v1745
      %1865 = vmatpush.bf16.msra.mxu0 %v1744
      %1866 = vmatpush.bf16.msra.mxu0 %v1743
      %1867 = vmatpush.bf16.msra.mxu0 %v1742
      %1868 = vmatpush.bf16.msra.mxu0 %v1741
      %1869 = vmatmul.bf16.gmra.mxu0 %v1445
      %v1870 = vpop.f32.mrf.mxu0
      %v1871 = vadd.f32 0.0, %v1870
      %v1872 = vpop.f32.mrf.mxu0
      %v1873 = vadd.f32 0.0, %v1872
      %1874 = vmatmul.bf16.gmra.mxu0 %v1450
      %v1875 = vpop.f32.mrf.mxu0
      %v1876 = vadd.f32 0.0, %v1875
      %v1877 = vpop.f32.mrf.mxu0
      %v1878 = vadd.f32 0.0, %v1877
      %1879 = vmatmul.bf16.gmra.mxu0 %v1455
      %v1880 = vpop.f32.mrf.mxu0
      %v1881 = vadd.f32 0.0, %v1880
      %v1882 = vpop.f32.mrf.mxu0
      %v1883 = vadd.f32 0.0, %v1882
      %1884 = vmatmul.bf16.gmra.mxu0 %v1460
      %v1885 = vpop.f32.mrf.mxu0
      %v1886 = vadd.f32 0.0, %v1885
      %v1887 = vpop.f32.mrf.mxu0
      %v1888 = vadd.f32 0.0, %v1887
      %1889 = vmatmul.bf16.gmra.mxu0 %v1465
      %v1890 = vpop.f32.mrf.mxu0
      %v1891 = vadd.f32 0.0, %v1890
      %v1892 = vpop.f32.mrf.mxu0
      %v1893 = vadd.f32 0.0, %v1892
      %1894 = vmatmul.bf16.gmra.mxu0 %v1470
      %v1895 = vpop.f32.mrf.mxu0
      %v1896 = vadd.f32 0.0, %v1895
      %v1897 = vpop.f32.mrf.mxu0
      %v1898 = vadd.f32 0.0, %v1897
      %1899 = vmatmul.bf16.gmra.mxu0 %v1475
      %v1900 = vpop.f32.mrf.mxu0
      %v1901 = vadd.f32 0.0, %v1900
      %v1902 = vpop.f32.mrf.mxu0
      %v1903 = vadd.f32 0.0, %v1902
      %1904 = vmatmul.bf16.gmra.mxu0 %v1480
      %v1905 = vpop.f32.mrf.mxu0
      %v1906 = vadd.f32 0.0, %v1905
      %v1907 = vpop.f32.mrf.mxu0
      %v1908 = vadd.f32 0.0, %v1907
      %1909 = vmatmul.bf16.gmra.mxu0 %v1485
      %v1910 = vpop.f32.mrf.mxu0
      %v1911 = vadd.f32 0.0, %v1910
      %v1912 = vpop.f32.mrf.mxu0
      %v1913 = vadd.f32 0.0, %v1912
      %1914 = vmatmul.bf16.gmra.mxu0 %v1490
      %v1915 = vpop.f32.mrf.mxu0
      %v1916 = vadd.f32 0.0, %v1915
      %v1917 = vpop.f32.mrf.mxu0
      %v1918 = vadd.f32 0.0, %v1917
      %1919 = vmatmul.bf16.gmra.mxu0 %v1495
      %v1920 = vpop.f32.mrf.mxu0
      %v1921 = vadd.f32 0.0, %v1920
      %v1922 = vpop.f32.mrf.mxu0
      %v1923 = vadd.f32 0.0, %v1922
      %1924 = vmatmul.bf16.gmra.mxu0 %v1500
      %v1925 = vpop.f32.mrf.mxu0
      %v1926 = vadd.f32 0.0, %v1925
      %v1927 = vpop.f32.mrf.mxu0
      %v1928 = vadd.f32 0.0, %v1927
      %1929 = vmatmul.bf16.gmra.mxu0 %v1505
      %v1930 = vpop.f32.mrf.mxu0
      %v1931 = vadd.f32 0.0, %v1930
      %v1932 = vpop.f32.mrf.mxu0
      %v1933 = vadd.f32 0.0, %v1932
      %1934 = vmatmul.bf16.gmra.mxu0 %v1510
      %v1935 = vpop.f32.mrf.mxu0
      %v1936 = vadd.f32 0.0, %v1935
      %v1937 = vpop.f32.mrf.mxu0
      %v1938 = vadd.f32 0.0, %v1937
      %1939 = vmatmul.bf16.gmra.mxu0 %v1515
      %v1940 = vpop.f32.mrf.mxu0
      %v1941 = vadd.f32 0.0, %v1940
      %v1942 = vpop.f32.mrf.mxu0
      %v1943 = vadd.f32 0.0, %v1942
      %1944 = vmatmul.bf16.gmra.mxu0 %v1520
      %v1945 = vpop.f32.mrf.mxu0
      %v1946 = vadd.f32 0.0, %v1945
      %v1947 = vpop.f32.mrf.mxu0
      %v1948 = vadd.f32 0.0, %v1947
      %1949 = vdwg.mxu0
      %1950 = vmatpush.bf16.msra.mxu0 %v1756
      %1951 = vmatpush.bf16.msra.mxu0 %v1755
      %1952 = vmatpush.bf16.msra.mxu0 %v1754
      %1953 = vmatpush.bf16.msra.mxu0 %v1753
      %1954 = vmatpush.bf16.msra.mxu0 %v1752
      %1955 = vmatpush.bf16.msra.mxu0 %v1751
      %1956 = vmatpush.bf16.msra.mxu0 %v1750
      %1957 = vmatpush.bf16.msra.mxu0 %v1749
      %1958 = vmatmul.bf16.gmra.mxu0 %v1446
      %v1959 = vpop.f32.mrf.mxu0
      %v1960 = vadd.f32 %v1871, %v1959
      %v1961 = vpop.f32.mrf.mxu0
      %v1962 = vadd.f32 %v1873, %v1961
      %1963 = vmatmul.bf16.gmra.mxu0 %v1451
      %v1964 = vpop.f32.mrf.mxu0
      %v1965 = vadd.f32 %v1876, %v1964
      %v1966 = vpop.f32.mrf.mxu0
      %v1967 = vadd.f32 %v1878, %v1966
      %1968 = vmatmul.bf16.gmra.mxu0 %v1456
      %v1969 = vpop.f32.mrf.mxu0
      %v1970 = vadd.f32 %v1881, %v1969
      %v1971 = vpop.f32.mrf.mxu0
      %v1972 = vadd.f32 %v1883, %v1971
      %1973 = vmatmul.bf16.gmra.mxu0 %v1461
      %v1974 = vpop.f32.mrf.mxu0
      %v1975 = vadd.f32 %v1886, %v1974
      %v1976 = vpop.f32.mrf.mxu0
      %v1977 = vadd.f32 %v1888, %v1976
      %1978 = vmatmul.bf16.gmra.mxu0 %v1466
      %v1979 = vpop.f32.mrf.mxu0
      %v1980 = vadd.f32 %v1891, %v1979
      %v1981 = vpop.f32.mrf.mxu0
      %v1982 = vadd.f32 %v1893, %v1981
      %1983 = vmatmul.bf16.gmra.mxu0 %v1471
      %v1984 = vpop.f32.mrf.mxu0
      %v1985 = vadd.f32 %v1896, %v1984
      %v1986 = vpop.f32.mrf.mxu0
      %v1987 = vadd.f32 %v1898, %v1986
      %1988 = vmatmul.bf16.gmra.mxu0 %v1476
      %v1989 = vpop.f32.mrf.mxu0
      %v1990 = vadd.f32 %v1901, %v1989
      %v1991 = vpop.f32.mrf.mxu0
      %v1992 = vadd.f32 %v1903, %v1991
      %1993 = vmatmul.bf16.gmra.mxu0 %v1481
      %v1994 = vpop.f32.mrf.mxu0
      %v1995 = vadd.f32 %v1906, %v1994
      %v1996 = vpop.f32.mrf.mxu0
      %v1997 = vadd.f32 %v1908, %v1996
      %1998 = vmatmul.bf16.gmra.mxu0 %v1486
      %v1999 = vpop.f32.mrf.mxu0
      %v2000 = vadd.f32 %v1911, %v1999
      %v2001 = vpop.f32.mrf.mxu0
      %v2002 = vadd.f32 %v1913, %v2001
      %2003 = vmatmul.bf16.gmra.mxu0 %v1491
      %v2004 = vpop.f32.mrf.mxu0
      %v2005 = vadd.f32 %v1916, %v2004
      %v2006 = vpop.f32.mrf.mxu0
      %v2007 = vadd.f32 %v1918, %v2006
      %2008 = vmatmul.bf16.gmra.mxu0 %v1496
      %v2009 = vpop.f32.mrf.mxu0
      %v2010 = vadd.f32 %v1921, %v2009
      %v2011 = vpop.f32.mrf.mxu0
      %v2012 = vadd.f32 %v1923, %v2011
      %2013 = vmatmul.bf16.gmra.mxu0 %v1501
      %v2014 = vpop.f32.mrf.mxu0
      %v2015 = vadd.f32 %v1926, %v2014
      %v2016 = vpop.f32.mrf.mxu0
      %v2017 = vadd.f32 %v1928, %v2016
      %2018 = vmatmul.bf16.gmra.mxu0 %v1506
      %v2019 = vpop.f32.mrf.mxu0
      %v2020 = vadd.f32 %v1931, %v2019
      %v2021 = vpop.f32.mrf.mxu0
      %v2022 = vadd.f32 %v1933, %v2021
      %2023 = vmatmul.bf16.gmra.mxu0 %v1511
      %v2024 = vpop.f32.mrf.mxu0
      %v2025 = vadd.f32 %v1936, %v2024
      %v2026 = vpop.f32.mrf.mxu0
      %v2027 = vadd.f32 %v1938, %v2026
      %2028 = vmatmul.bf16.gmra.mxu0 %v1516
      %v2029 = vpop.f32.mrf.mxu0
      %v2030 = vadd.f32 %v1941, %v2029
      %v2031 = vpop.f32.mrf.mxu0
      %v2032 = vadd.f32 %v1943, %v2031
      %2033 = vmatmul.bf16.gmra.mxu0 %v1521
      %v2034 = vpop.f32.mrf.mxu0
      %v2035 = vadd.f32 %v1946, %v2034
      %v2036 = vpop.f32.mrf.mxu0
      %v2037 = vadd.f32 %v1948, %v2036
      %2038 = vdwg.mxu0
      %2039 = vmatpush.bf16.msra.mxu0 %v1764
      %2040 = vmatpush.bf16.msra.mxu0 %v1763
      %2041 = vmatpush.bf16.msra.mxu0 %v1762
      %2042 = vmatpush.bf16.msra.mxu0 %v1761
      %2043 = vmatpush.bf16.msra.mxu0 %v1760
      %2044 = vmatpush.bf16.msra.mxu0 %v1759
      %2045 = vmatpush.bf16.msra.mxu0 %v1758
      %2046 = vmatpush.bf16.msra.mxu0 %v1757
      %2047 = vmatmul.bf16.gmra.mxu0 %v1447
      %v2048 = vpop.f32.mrf.mxu0
      %v2049 = vadd.f32 %v1960, %v2048
      %v2050 = vpop.f32.mrf.mxu0
      %v2051 = vadd.f32 %v1962, %v2050
      %2052 = vmatmul.bf16.gmra.mxu0 %v1452
      %v2053 = vpop.f32.mrf.mxu0
      %v2054 = vadd.f32 %v1965, %v2053
      %v2055 = vpop.f32.mrf.mxu0
      %v2056 = vadd.f32 %v1967, %v2055
      %2057 = vmatmul.bf16.gmra.mxu0 %v1457
      %v2058 = vpop.f32.mrf.mxu0
      %v2059 = vadd.f32 %v1970, %v2058
      %v2060 = vpop.f32.mrf.mxu0
      %v2061 = vadd.f32 %v1972, %v2060
      %2062 = vmatmul.bf16.gmra.mxu0 %v1462
      %v2063 = vpop.f32.mrf.mxu0
      %v2064 = vadd.f32 %v1975, %v2063
      %v2065 = vpop.f32.mrf.mxu0
      %v2066 = vadd.f32 %v1977, %v2065
      %2067 = vmatmul.bf16.gmra.mxu0 %v1467
      %v2068 = vpop.f32.mrf.mxu0
      %v2069 = vadd.f32 %v1980, %v2068
      %v2070 = vpop.f32.mrf.mxu0
      %v2071 = vadd.f32 %v1982, %v2070
      %2072 = vmatmul.bf16.gmra.mxu0 %v1472
      %v2073 = vpop.f32.mrf.mxu0
      %v2074 = vadd.f32 %v1985, %v2073
      %v2075 = vpop.f32.mrf.mxu0
      %v2076 = vadd.f32 %v1987, %v2075
      %2077 = vmatmul.bf16.gmra.mxu0 %v1477
      %v2078 = vpop.f32.mrf.mxu0
      %v2079 = vadd.f32 %v1990, %v2078
      %v2080 = vpop.f32.mrf.mxu0
      %v2081 = vadd.f32 %v1992, %v2080
      %2082 = vmatmul.bf16.gmra.mxu0 %v1482
      %v2083 = vpop.f32.mrf.mxu0
      %v2084 = vadd.f32 %v1995, %v2083
      %v2085 = vpop.f32.mrf.mxu0
      %v2086 = vadd.f32 %v1997, %v2085
      %2087 = vmatmul.bf16.gmra.mxu0 %v1487
      %v2088 = vpop.f32.mrf.mxu0
      %v2089 = vadd.f32 %v2000, %v2088
      %v2090 = vpop.f32.mrf.mxu0
      %v2091 = vadd.f32 %v2002, %v2090
      %2092 = vmatmul.bf16.gmra.mxu0 %v1492
      %v2093 = vpop.f32.mrf.mxu0
      %v2094 = vadd.f32 %v2005, %v2093
      %v2095 = vpop.f32.mrf.mxu0
      %v2096 = vadd.f32 %v2007, %v2095
      %2097 = vmatmul.bf16.gmra.mxu0 %v1497
      %v2098 = vpop.f32.mrf.mxu0
      %v2099 = vadd.f32 %v2010, %v2098
      %v2100 = vpop.f32.mrf.mxu0
      %v2101 = vadd.f32 %v2012, %v2100
      %2102 = vmatmul.bf16.gmra.mxu0 %v1502
      %v2103 = vpop.f32.mrf.mxu0
      %v2104 = vadd.f32 %v2015, %v2103
      %v2105 = vpop.f32.mrf.mxu0
      %v2106 = vadd.f32 %v2017, %v2105
      %2107 = vmatmul.bf16.gmra.mxu0 %v1507
      %v2108 = vpop.f32.mrf.mxu0
      %v2109 = vadd.f32 %v2020, %v2108
      %v2110 = vpop.f32.mrf.mxu0
      %v2111 = vadd.f32 %v2022, %v2110
      %2112 = vmatmul.bf16.gmra.mxu0 %v1512
      %v2113 = vpop.f32.mrf.mxu0
      %v2114 = vadd.f32 %v2025, %v2113
      %v2115 = vpop.f32.mrf.mxu0
      %v2116 = vadd.f32 %v2027, %v2115
      %2117 = vmatmul.bf16.gmra.mxu0 %v1517
      %v2118 = vpop.f32.mrf.mxu0
      %v2119 = vadd.f32 %v2030, %v2118
      %v2120 = vpop.f32.mrf.mxu0
      %v2121 = vadd.f32 %v2032, %v2120
      %2122 = vmatmul.bf16.gmra.mxu0 %v1522
      %v2123 = vpop.f32.mrf.mxu0
      %v2124 = vadd.f32 %v2035, %v2123
      %v2125 = vpop.f32.mrf.mxu0
      %v2126 = vadd.f32 %v2037, %v2125
      %2127 = vdwg.mxu0
      %2128 = vmatpush.bf16.msra.mxu0 %v1772
      %2129 = vmatpush.bf16.msra.mxu0 %v1771
      %2130 = vmatpush.bf16.msra.mxu0 %v1770
      %2131 = vmatpush.bf16.msra.mxu0 %v1769
      %2132 = vmatpush.bf16.msra.mxu0 %v1768
      %2133 = vmatpush.bf16.msra.mxu0 %v1767
      %2134 = vmatpush.bf16.msra.mxu0 %v1766
      %2135 = vmatpush.bf16.msra.mxu0 %v1765
      %2136 = vmatmul.bf16.gmra.mxu0 %v1448
      %v2137 = vpop.f32.mrf.mxu0
      %v2138 = vadd.f32 %v2049, %v2137
      %v2139 = vpop.f32.mrf.mxu0
      %v2140 = vadd.f32 %v2051, %v2139
      %2141 = vmatmul.bf16.gmra.mxu0 %v1453
      %v2142 = vpop.f32.mrf.mxu0
      %v2143 = vadd.f32 %v2054, %v2142
      %v2144 = vpop.f32.mrf.mxu0
      %v2145 = vadd.f32 %v2056, %v2144
      %2146 = vmatmul.bf16.gmra.mxu0 %v1458
      %v2147 = vpop.f32.mrf.mxu0
      %v2148 = vadd.f32 %v2059, %v2147
      %v2149 = vpop.f32.mrf.mxu0
      %v2150 = vadd.f32 %v2061, %v2149
      %2151 = vmatmul.bf16.gmra.mxu0 %v1463
      %v2152 = vpop.f32.mrf.mxu0
      %v2153 = vadd.f32 %v2064, %v2152
      %v2154 = vpop.f32.mrf.mxu0
      %v2155 = vadd.f32 %v2066, %v2154
      %2156 = vmatmul.bf16.gmra.mxu0 %v1468
      %v2157 = vpop.f32.mrf.mxu0
      %v2158 = vadd.f32 %v2069, %v2157
      %v2159 = vpop.f32.mrf.mxu0
      %v2160 = vadd.f32 %v2071, %v2159
      %2161 = vmatmul.bf16.gmra.mxu0 %v1473
      %v2162 = vpop.f32.mrf.mxu0
      %v2163 = vadd.f32 %v2074, %v2162
      %v2164 = vpop.f32.mrf.mxu0
      %v2165 = vadd.f32 %v2076, %v2164
      %2166 = vmatmul.bf16.gmra.mxu0 %v1478
      %v2167 = vpop.f32.mrf.mxu0
      %v2168 = vadd.f32 %v2079, %v2167
      %v2169 = vpop.f32.mrf.mxu0
      %v2170 = vadd.f32 %v2081, %v2169
      %2171 = vmatmul.bf16.gmra.mxu0 %v1483
      %v2172 = vpop.f32.mrf.mxu0
      %v2173 = vadd.f32 %v2084, %v2172
      %v2174 = vpop.f32.mrf.mxu0
      %v2175 = vadd.f32 %v2086, %v2174
      %2176 = vmatmul.bf16.gmra.mxu0 %v1488
      %v2177 = vpop.f32.mrf.mxu0
      %v2178 = vadd.f32 %v2089, %v2177
      %v2179 = vpop.f32.mrf.mxu0
      %v2180 = vadd.f32 %v2091, %v2179
      %2181 = vmatmul.bf16.gmra.mxu0 %v1493
      %v2182 = vpop.f32.mrf.mxu0
      %v2183 = vadd.f32 %v2094, %v2182
      %v2184 = vpop.f32.mrf.mxu0
      %v2185 = vadd.f32 %v2096, %v2184
      %2186 = vmatmul.bf16.gmra.mxu0 %v1498
      %v2187 = vpop.f32.mrf.mxu0
      %v2188 = vadd.f32 %v2099, %v2187
      %v2189 = vpop.f32.mrf.mxu0
      %v2190 = vadd.f32 %v2101, %v2189
      %2191 = vmatmul.bf16.gmra.mxu0 %v1503
      %v2192 = vpop.f32.mrf.mxu0
      %v2193 = vadd.f32 %v2104, %v2192
      %v2194 = vpop.f32.mrf.mxu0
      %v2195 = vadd.f32 %v2106, %v2194
      %2196 = vmatmul.bf16.gmra.mxu0 %v1508
      %v2197 = vpop.f32.mrf.mxu0
      %v2198 = vadd.f32 %v2109, %v2197
      %v2199 = vpop.f32.mrf.mxu0
      %v2200 = vadd.f32 %v2111, %v2199
      %2201 = vmatmul.bf16.gmra.mxu0 %v1513
      %v2202 = vpop.f32.mrf.mxu0
      %v2203 = vadd.f32 %v2114, %v2202
      %v2204 = vpop.f32.mrf.mxu0
      %v2205 = vadd.f32 %v2116, %v2204
      %2206 = vmatmul.bf16.gmra.mxu0 %v1518
      %v2207 = vpop.f32.mrf.mxu0
      %v2208 = vadd.f32 %v2119, %v2207
      %v2209 = vpop.f32.mrf.mxu0
      %v2210 = vadd.f32 %v2121, %v2209
      %2211 = vmatmul.bf16.gmra.mxu0 %v1523
      %v2212 = vpop.f32.mrf.mxu0
      %v2213 = vadd.f32 %v2124, %v2212
      %v2214 = vpop.f32.mrf.mxu0
      %v2215 = vadd.f32 %v2126, %v2214
      %2216 = vdwg.mxu0
      %2217 = vmatpush.bf16.msra.mxu0 0
      %2218 = vmatpush.bf16.msra.mxu0 0
      %2219 = vmatpush.bf16.msra.mxu0 0
      %2220 = vmatpush.bf16.msra.mxu0 0
      %2221 = vmatpush.bf16.msra.mxu0 %v1776
      %2222 = vmatpush.bf16.msra.mxu0 %v1775
      %2223 = vmatpush.bf16.msra.mxu0 %v1774
      %2224 = vmatpush.bf16.msra.mxu0 %v1773
      %2225 = vmatmul.bf16.gmra.mxu0 %v1814
      %v2226 = vpop.f32.mrf.mxu0
      %v2227 = vadd.f32 %v2138, %v2226
      %v2228 = vpop.f32.mrf.mxu0
      %v2229 = vadd.f32 %v2140, %v2228
      %2230 = vmatmul.bf16.gmra.mxu0 %v1817
      %v2231 = vpop.f32.mrf.mxu0
      %v2232 = vadd.f32 %v2143, %v2231
      %v2233 = vpop.f32.mrf.mxu0
      %v2234 = vadd.f32 %v2145, %v2233
      %2235 = vmatmul.bf16.gmra.mxu0 %v1820
      %v2236 = vpop.f32.mrf.mxu0
      %v2237 = vadd.f32 %v2148, %v2236
      %v2238 = vpop.f32.mrf.mxu0
      %v2239 = vadd.f32 %v2150, %v2238
      %2240 = vmatmul.bf16.gmra.mxu0 %v1823
      %v2241 = vpop.f32.mrf.mxu0
      %v2242 = vadd.f32 %v2153, %v2241
      %v2243 = vpop.f32.mrf.mxu0
      %v2244 = vadd.f32 %v2155, %v2243
      %2245 = vmatmul.bf16.gmra.mxu0 %v1826
      %v2246 = vpop.f32.mrf.mxu0
      %v2247 = vadd.f32 %v2158, %v2246
      %v2248 = vpop.f32.mrf.mxu0
      %v2249 = vadd.f32 %v2160, %v2248
      %2250 = vmatmul.bf16.gmra.mxu0 %v1829
      %v2251 = vpop.f32.mrf.mxu0
      %v2252 = vadd.f32 %v2163, %v2251
      %v2253 = vpop.f32.mrf.mxu0
      %v2254 = vadd.f32 %v2165, %v2253
      %2255 = vmatmul.bf16.gmra.mxu0 %v1832
      %v2256 = vpop.f32.mrf.mxu0
      %v2257 = vadd.f32 %v2168, %v2256
      %v2258 = vpop.f32.mrf.mxu0
      %v2259 = vadd.f32 %v2170, %v2258
      %2260 = vmatmul.bf16.gmra.mxu0 %v1835
      %v2261 = vpop.f32.mrf.mxu0
      %v2262 = vadd.f32 %v2173, %v2261
      %v2263 = vpop.f32.mrf.mxu0
      %v2264 = vadd.f32 %v2175, %v2263
      %2265 = vmatmul.bf16.gmra.mxu0 %v1838
      %v2266 = vpop.f32.mrf.mxu0
      %v2267 = vadd.f32 %v2178, %v2266
      %v2268 = vpop.f32.mrf.mxu0
      %v2269 = vadd.f32 %v2180, %v2268
      %2270 = vmatmul.bf16.gmra.mxu0 %v1841
      %v2271 = vpop.f32.mrf.mxu0
      %v2272 = vadd.f32 %v2183, %v2271
      %v2273 = vpop.f32.mrf.mxu0
      %v2274 = vadd.f32 %v2185, %v2273
      %2275 = vmatmul.bf16.gmra.mxu0 %v1844
      %v2276 = vpop.f32.mrf.mxu0
      %v2277 = vadd.f32 %v2188, %v2276
      %v2278 = vpop.f32.mrf.mxu0
      %v2279 = vadd.f32 %v2190, %v2278
      %2280 = vmatmul.bf16.gmra.mxu0 %v1847
      %v2281 = vpop.f32.mrf.mxu0
      %v2282 = vadd.f32 %v2193, %v2281
      %v2283 = vpop.f32.mrf.mxu0
      %v2284 = vadd.f32 %v2195, %v2283
      %2285 = vmatmul.bf16.gmra.mxu0 %v1850
      %v2286 = vpop.f32.mrf.mxu0
      %v2287 = vadd.f32 %v2198, %v2286
      %v2288 = vpop.f32.mrf.mxu0
      %v2289 = vadd.f32 %v2200, %v2288
      %2290 = vmatmul.bf16.gmra.mxu0 %v1853
      %v2291 = vpop.f32.mrf.mxu0
      %v2292 = vadd.f32 %v2203, %v2291
      %v2293 = vpop.f32.mrf.mxu0
      %v2294 = vadd.f32 %v2205, %v2293
      %2295 = vmatmul.bf16.gmra.mxu0 %v1856
      %v2296 = vpop.f32.mrf.mxu0
      %v2297 = vadd.f32 %v2208, %v2296
      %v2298 = vpop.f32.mrf.mxu0
      %v2299 = vadd.f32 %v2210, %v2298
      %2300 = vmatmul.bf16.gmra.mxu0 %v1859
      %v2301 = vpop.f32.mrf.mxu0
      %v2302 = vadd.f32 %v2213, %v2301
      %v2303 = vpop.f32.mrf.mxu0
      %v2304 = vadd.f32 %v2215, %v2303
      %2305 = vdwg.mxu0
      %2306 = vst.msk [vmem:[%s231] sm:$0xff] %vm437, %v2227
      %2307 = vst.msk [vmem:[%s231 + $0x8] sm:$0xff] %vm437, %v2229
      %2308 = vst.msk [vmem:[%s231 + $0x10] sm:$0xff] %vm437, %v2232
      %2309 = vst.msk [vmem:[%s231 + $0x18] sm:$0xff] %vm437, %v2234
      %2310 = vst.msk [vmem:[%s231 + $0x20] sm:$0xff] %vm437, %v2237
      %2311 = vst.msk [vmem:[%s231 + $0x28] sm:$0xff] %vm437, %v2239
      %2312 = vst.msk [vmem:[%s231 + $0x30] sm:$0xff] %vm437, %v2242
      %2313 = vst.msk [vmem:[%s231 + $0x38] sm:$0xff] %vm437, %v2244
      %2314 = vst.msk [vmem:[%s231 + $0x40] sm:$0xff] %vm437, %v2247
      %2315 = vst.msk [vmem:[%s231 + $0x48] sm:$0xff] %vm437, %v2249
      %2316 = vst.msk [vmem:[%s231 + $0x50] sm:$0xff] %vm437, %v2252
      %2317 = vst.msk [vmem:[%s231 + $0x58] sm:$0xff] %vm437, %v2254
      %2318 = vst.msk [vmem:[%s231 + $0x60] sm:$0xff] %vm437, %v2257
      %2319 = vst.msk [vmem:[%s231 + $0x68] sm:$0xff] %vm437, %v2259
      %2320 = vst.msk [vmem:[%s231 + $0x70] sm:$0xff] %vm437, %v2262
      %2321 = vst.msk [vmem:[%s231 + $0x78] sm:$0xff] %vm437, %v2264
      %2322 = vst.msk [vmem:[%s231 + $0x80] sm:$0xff] %vm437, %v2267
      %2323 = vst.msk [vmem:[%s231 + $0x88] sm:$0xff] %vm437, %v2269
      %2324 = vst.msk [vmem:[%s231 + $0x90] sm:$0xff] %vm437, %v2272
      %2325 = vst.msk [vmem:[%s231 + $0x98] sm:$0xff] %vm437, %v2274
      %2326 = vst.msk [vmem:[%s231 + $0xa0] sm:$0xff] %vm437, %v2277
      %2327 = vst.msk [vmem:[%s231 + $0xa8] sm:$0xff] %vm437, %v2279
      %2328 = vst.msk [vmem:[%s231 + $0xb0] sm:$0xff] %vm437, %v2282
      %2329 = vst.msk [vmem:[%s231 + $0xb8] sm:$0xff] %vm437, %v2284
      %2330 = vst.msk [vmem:[%s231 + $0xc0] sm:$0xff] %vm437, %v2287
      %2331 = vst.msk [vmem:[%s231 + $0xc8] sm:$0xff] %vm437, %v2289
      %2332 = vst.msk [vmem:[%s231 + $0xd0] sm:$0xff] %vm437, %v2292
      %2333 = vst.msk [vmem:[%s231 + $0xd8] sm:$0xff] %vm437, %v2294
      %2334 = vst.msk [vmem:[%s231 + $0xe0] sm:$0xff] %vm437, %v2297
      %2335 = vst.msk [vmem:[%s231 + $0xe8] sm:$0xff] %vm437, %v2299
      %2336 = vst.msk [vmem:[%s231 + $0xf0] sm:$0xff] %vm437, %v2302
      %2337 = vst.msk [vmem:[%s231 + $0xf8] sm:$0xff] %vm437, %v2304
      %v2338 = vsel %vm437, %v2227, 0.0
      %v2339 = vsel %vm437, %v2229, 0.0
      %v2340 = vadd.f32 %v2338, %v2339
      %v2341 = vsel %vm437, %v2232, 0.0
      %v2342 = vadd.f32 %v2340, %v2341
      %v2343 = vsel %vm437, %v2234, 0.0
      %v2344 = vadd.f32 %v2342, %v2343
      %v2345 = vsel %vm437, %v2237, 0.0
      %v2346 = vadd.f32 %v2344, %v2345
      %v2347 = vsel %vm437, %v2239, 0.0
      %v2348 = vadd.f32 %v2346, %v2347
      %v2349 = vsel %vm437, %v2242, 0.0
      %v2350 = vadd.f32 %v2348, %v2349
      %v2351 = vsel %vm437, %v2244, 0.0
      %v2352 = vadd.f32 %v2350, %v2351
      %v2353 = vsel %vm437, %v2247, 0.0
      %v2354 = vadd.f32 %v2352, %v2353
      %v2355 = vsel %vm437, %v2249, 0.0
      %v2356 = vadd.f32 %v2354, %v2355
      %v2357 = vsel %vm437, %v2252, 0.0
      %v2358 = vadd.f32 %v2356, %v2357
      %v2359 = vsel %vm437, %v2254, 0.0
      %v2360 = vadd.f32 %v2358, %v2359
      %v2361 = vsel %vm437, %v2257, 0.0
      %v2362 = vadd.f32 %v2360, %v2361
      %v2363 = vsel %vm437, %v2259, 0.0
      %v2364 = vadd.f32 %v2362, %v2363
      %v2365 = vsel %vm437, %v2262, 0.0
      %v2366 = vadd.f32 %v2364, %v2365
      %v2367 = vsel %vm437, %v2264, 0.0
      %v2368 = vadd.f32 %v2366, %v2367
      %v2369 = vsel %vm437, %v2267, 0.0
      %v2370 = vadd.f32 %v2368, %v2369
      %v2371 = vsel %vm437, %v2269, 0.0
      %v2372 = vadd.f32 %v2370, %v2371
      %v2373 = vsel %vm437, %v2272, 0.0
      %v2374 = vadd.f32 %v2372, %v2373
      %v2375 = vsel %vm437, %v2274, 0.0
      %v2376 = vadd.f32 %v2374, %v2375
      %v2377 = vsel %vm437, %v2277, 0.0
      %v2378 = vadd.f32 %v2376, %v2377
      %v2379 = vsel %vm437, %v2279, 0.0
      %v2380 = vadd.f32 %v2378, %v2379
      %v2381 = vsel %vm437, %v2282, 0.0
      %v2382 = vadd.f32 %v2380, %v2381
      %v2383 = vsel %vm437, %v2284, 0.0
      %v2384 = vadd.f32 %v2382, %v2383
      %v2385 = vsel %vm437, %v2287, 0.0
      %v2386 = vadd.f32 %v2384, %v2385
      %v2387 = vsel %vm437, %v2289, 0.0
      %v2388 = vadd.f32 %v2386, %v2387
      %v2389 = vsel %vm437, %v2292, 0.0
      %v2390 = vadd.f32 %v2388, %v2389
      %v2391 = vsel %vm437, %v2294, 0.0
      %v2392 = vadd.f32 %v2390, %v2391
      %v2393 = vsel %vm437, %v2297, 0.0
      %v2394 = vadd.f32 %v2392, %v2393
      %v2395 = vsel %vm437, %v2299, 0.0
      %v2396 = vadd.f32 %v2394, %v2395
      %v2397 = vsel %vm437, %v2302, 0.0
      %v2398 = vadd.f32 %v2396, %v2397
      %v2399 = vsel %vm437, %v2304, 0.0
      %v2400 = vadd.f32 %v2398, %v2399
      %v2401 = vrot.slane %v2400, 4
      %v2402 = vadd.f32 %v2400, %v2401
      %v2403 = vrot.slane %v2402, 2
      %v2404 = vadd.f32 %v2402, %v2403
      %v2405 = vrot.slane %v2404, 1
      %v2406 = vadd.f32 %v2404, %v2405
      %v2407 = vmul.f32 %v2227, %v2227
      %v2408 = vmul.f32 %v2229, %v2229
      %v2409 = vmul.f32 %v2232, %v2232
      %v2410 = vmul.f32 %v2234, %v2234
      %v2411 = vmul.f32 %v2237, %v2237
      %v2412 = vmul.f32 %v2239, %v2239
      %v2413 = vmul.f32 %v2242, %v2242
      %v2414 = vmul.f32 %v2244, %v2244
      %v2415 = vmul.f32 %v2247, %v2247
      %v2416 = vmul.f32 %v2249, %v2249
      %v2417 = vmul.f32 %v2252, %v2252
      %v2418 = vmul.f32 %v2254, %v2254
      %v2419 = vmul.f32 %v2257, %v2257
      %v2420 = vmul.f32 %v2259, %v2259
      %v2421 = vmul.f32 %v2262, %v2262
      %v2422 = vmul.f32 %v2264, %v2264
      %v2423 = vmul.f32 %v2267, %v2267
      %v2424 = vmul.f32 %v2269, %v2269
      %v2425 = vmul.f32 %v2272, %v2272
      %v2426 = vmul.f32 %v2274, %v2274
      %v2427 = vmul.f32 %v2277, %v2277
      %v2428 = vmul.f32 %v2279, %v2279
      %v2429 = vmul.f32 %v2282, %v2282
      %v2430 = vmul.f32 %v2284, %v2284
      %v2431 = vmul.f32 %v2287, %v2287
      %v2432 = vmul.f32 %v2289, %v2289
      %v2433 = vmul.f32 %v2292, %v2292
      %v2434 = vmul.f32 %v2294, %v2294
      %v2435 = vmul.f32 %v2297, %v2297
      %v2436 = vmul.f32 %v2299, %v2299
      %v2437 = vmul.f32 %v2302, %v2302
      %v2438 = vmul.f32 %v2304, %v2304
      %v2439 = vsel %vm437, %v2407, 0.0
      %v2440 = vsel %vm437, %v2408, 0.0
      %v2441 = vadd.f32 %v2439, %v2440
      %v2442 = vsel %vm437, %v2409, 0.0
      %v2443 = vadd.f32 %v2441, %v2442
      %v2444 = vsel %vm437, %v2410, 0.0
      %v2445 = vadd.f32 %v2443, %v2444
      %v2446 = vsel %vm437, %v2411, 0.0
      %v2447 = vadd.f32 %v2445, %v2446
      %v2448 = vsel %vm437, %v2412, 0.0
      %v2449 = vadd.f32 %v2447, %v2448
      %v2450 = vsel %vm437, %v2413, 0.0
      %v2451 = vadd.f32 %v2449, %v2450
      %v2452 = vsel %vm437, %v2414, 0.0
      %v2453 = vadd.f32 %v2451, %v2452
      %v2454 = vsel %vm437, %v2415, 0.0
      %v2455 = vadd.f32 %v2453, %v2454
      %v2456 = vsel %vm437, %v2416, 0.0
      %v2457 = vadd.f32 %v2455, %v2456
      %v2458 = vsel %vm437, %v2417, 0.0
      %v2459 = vadd.f32 %v2457, %v2458
      %v2460 = vsel %vm437, %v2418, 0.0
      %v2461 = vadd.f32 %v2459, %v2460
      %v2462 = vsel %vm437, %v2419, 0.0
      %v2463 = vadd.f32 %v2461, %v2462
      %v2464 = vsel %vm437, %v2420, 0.0
      %v2465 = vadd.f32 %v2463, %v2464
      %v2466 = vsel %vm437, %v2421, 0.0
      %v2467 = vadd.f32 %v2465, %v2466
      %v2468 = vsel %vm437, %v2422, 0.0
      %v2469 = vadd.f32 %v2467, %v2468
      %v2470 = vsel %vm437, %v2423, 0.0
      %v2471 = vadd.f32 %v2469, %v2470
      %v2472 = vsel %vm437, %v2424, 0.0
      %v2473 = vadd.f32 %v2471, %v2472
      %v2474 = vsel %vm437, %v2425, 0.0
      %v2475 = vadd.f32 %v2473, %v2474
      %v2476 = vsel %vm437, %v2426, 0.0
      %v2477 = vadd.f32 %v2475, %v2476
      %v2478 = vsel %vm437, %v2427, 0.0
      %v2479 = vadd.f32 %v2477, %v2478
      %v2480 = vsel %vm437, %v2428, 0.0
      %v2481 = vadd.f32 %v2479, %v2480
      %v2482 = vsel %vm437, %v2429, 0.0
      %v2483 = vadd.f32 %v2481, %v2482
      %v2484 = vsel %vm437, %v2430, 0.0
      %v2485 = vadd.f32 %v2483, %v2484
      %v2486 = vsel %vm437, %v2431, 0.0
      %v2487 = vadd.f32 %v2485, %v2486
      %v2488 = vsel %vm437, %v2432, 0.0
      %v2489 = vadd.f32 %v2487, %v2488
      %v2490 = vsel %vm437, %v2433, 0.0
      %v2491 = vadd.f32 %v2489, %v2490
      %v2492 = vsel %vm437, %v2434, 0.0
      %v2493 = vadd.f32 %v2491, %v2492
      %v2494 = vsel %vm437, %v2435, 0.0
      %v2495 = vadd.f32 %v2493, %v2494
      %v2496 = vsel %vm437, %v2436, 0.0
      %v2497 = vadd.f32 %v2495, %v2496
      %v2498 = vsel %vm437, %v2437, 0.0
      %v2499 = vadd.f32 %v2497, %v2498
      %v2500 = vsel %vm437, %v2438, 0.0
      %v2501 = vadd.f32 %v2499, %v2500
      %v2502 = vrot.slane %v2501, 4
      %v2503 = vadd.f32 %v2501, %v2502
      %v2504 = vrot.slane %v2503, 2
      %v2505 = vadd.f32 %v2503, %v2504
      %v2506 = vrot.slane %v2505, 1
      %v2507 = vadd.f32 %v2505, %v2506
      %vm2508 = vcmask 1040384
      %v2509 = vsel %vm2508, %v2406, %v2507
      %2510 = vst.msk [vmem:[%s235] sm:$0x3] %vm440, %v2509
      %p2511 = scmp.lt.s32.totalorder %s17, 1
      %s2512 = scalar_select %p2511, %s17, 1
      %s2513 = smul.addr %s2512, 32
      %s2514 = smul.addr %s2513, 8
      %s2515 = scalar_lea.vmem %s4, %s2514
      %p2516 = scmp.lt.s32.totalorder %s17, 1
      %s2517 = scalar_select %p2516, %s17, 1
      %s2518 = smul.addr %s2517, 2
      %s2519 = scalar_lea.vmem %s5, %s2518
      // Predicated region
      $region37: #{bottleneckx_forward.5} parent=35 // pred_check
        %p2520 = pneg %p124
      $region38: #{bottleneckx_forward.5} parent=35 // pred_check_branch
        %2522 = sbr.rel (%p2520) target = $region40
      $region39: #{bottleneckx_forward.5} parent=35 // pred_region
        _
      $region40: #{bottleneckx_forward.5} parent=35 // pred_fallthru
        _
      // Predicated region
      $region41: #{bottleneckx_forward.5} parent=35 // pred_check
        %p2523 = pneg %p150
      $region42: #{bottleneckx_forward.5} parent=35 // pred_check_branch
        %2525 = sbr.rel (%p2523) target = $region44
      $region43: #{bottleneckx_forward.5} parent=35 // pred_region
        _
      $region44: #{bottleneckx_forward.5} parent=35 // pred_fallthru
        _
    $region36: #{bottleneckx_forward.5} parent=5 // pred_fallthru
      _
    %p2526 = scmp.le.s32.totalorder 2, %s12
    // Predicated region
    $region45: #{bottleneckx_forward.5} parent=5 // pred_check
      %p2527 = pneg %p2526
    $region46: #{bottleneckx_forward.5} parent=5 // pred_check_branch
      %2529 = sbr.rel (%p2527) target = $region48
    $region47: #{bottleneckx_forward.5} parent=5 // pred_region
      %s2530 = ssub.s32 %s12, 2
      // Predicated region
      $region49: #{bottleneckx_forward.5} parent=47 // pred_check
        %p2531 = pneg %p130
      $region50: #{bottleneckx_forward.5} parent=47 // pred_check_branch
        %2533 = sbr.rel (%p2531) target = $region52
      $region51: #{bottleneckx_forward.5} parent=47 // pred_region
        %p2534 = scmp.lt.s32.totalorder %s18, 1
        %s2535 = scalar_select %p2534, %s18, 1
        %s2536 = smul.addr %s2535, 32
        %s2537 = smul.addr %s2536, 8
        %s2538 = scalar_lea.vmem %s4, %s2537
      $region52: #{bottleneckx_forward.5} parent=47 // pred_fallthru
        _
      // Predicated region
      $region53: #{bottleneckx_forward.5} parent=47 // pred_check
        %p2539 = pneg %p156
      $region54: #{bottleneckx_forward.5} parent=47 // pred_check_branch
        %2541 = sbr.rel (%p2539) target = $region56
      $region55: #{bottleneckx_forward.5} parent=47 // pred_region
        %p2542 = scmp.lt.s32.totalorder %s18, 1
        %s2543 = scalar_select %p2542, %s18, 1
        %s2544 = smul.addr %s2543, 2
        %s2545 = scalar_lea.vmem %s5, %s2544
      $region56: #{bottleneckx_forward.5} parent=47 // pred_fallthru
        _
    $region48: #{bottleneckx_forward.5} parent=5 // pred_fallthru
      _
  $region6: #{bottleneckx_forward.5} parent=0 // loop_footer
    %s16 = sadd.s32 1, %s12
  $region7: #{bottleneckx_forward.5} parent=0 // loop_footer_branch
    %11 = sbr.rel target = $region3
  $region8: #{bottleneckx_forward.5} parent=0 // loop_exit
    _

</llo_original>
